<compile_context>
chip_gen: v5e
topology: v5e:2x2
jax: 0.10.0
libtpu: 0.0.40
codegen_flags: <defaults>
</compile_context>

<pallas_src>
import jax
import jax.numpy as jnp
from jax.experimental import pallas as pl
from jax.experimental.pallas import tpu as pltpu


def autopad(k, p=None):
    if p is None:
        p = k // 2
    return p


def _round_up(x, m):
    return ((x + m - 1) // m) * m


def _choose_row_tile(H, W, C1, C2P):
    # Largest TH dividing H with (TH*W) % 8 == 0 such that the double-buffered
    # halo-input tile + output tile stay inside a conservative VMEM budget.
    budget = 12 * 1024 * 1024                      # bytes for in+out tiles
    bytes_per_row = 8 * (C1 + C2P)                 # f32 * 2 (double buffering)
    cap = max(8, min(4096, budget // max(1, bytes_per_row)))
    for th in range(H, 0, -1):
        if H % th == 0 and (th * W) % 8 == 0 and th * W <= cap:
            return th
    return H


# ------------- Pallas kernel: k*k shifted matmuls + folded-BN bias + SiLU -------------
def _make_kernel(k, W, TH, C1, C2P):
    p = k // 2
    THW = TH * W

    def kernel(x_ref, w_ref, b_ref, o_ref):
        # x_ref: (S, C1)        flattened halo row-tile, p dummy zeros front/back
        # w_ref: (k*k, C1, C2P) BN-scale-folded, zero-padded weights (resident)
        # b_ref: (1, C2P)       folded BN bias (resident)
        # o_ref: (THW, C2P)     lane-dense output tile
        col = jax.lax.broadcasted_iota(jnp.int32, (THW, 1), 0) % W
        acc = jnp.zeros((THW, C2P), jnp.float32)
        for dj in range(k):
            lo = p - dj                       # valid output cols: lo <= col <= hi
            hi = W - 1 + p - dj
            need_mask = (lo > 0) or (hi < W - 1)
            if need_mask:
                valid = jnp.logical_and(col >= lo, col <= hi)
            for di in range(k):
                xs = x_ref[pl.ds(di * W + dj, THW), :]          # (THW, C1)
                if need_mask:
                    xs = jnp.where(valid, xs, 0.0)
                acc = acc + jnp.dot(xs, w_ref[di * k + dj],
                                    preferred_element_type=jnp.float32)
        y = acc + b_ref[...]                                     # folded BN bias
        o_ref[...] = (y * jax.nn.sigmoid(y)).astype(o_ref.dtype)  # SiLU

    return kernel


# ------------- wrapper: halo tiling, BN folding, pallas_call -------------
def conv_bn_silu_forward(x_nchw, w_oihw, gamma, beta, run_mean, run_var,
                         k=3, s=1, p=None, eps=1e-5):
    p = autopad(k, p)
    N, C1, H, W = x_nchw.shape
    C2 = w_oihw.shape[0]
    assert s == 1 and k % 2 == 1 and p == k // 2, \
        "kernel specialized to stride-1 'same' odd-k conv"
    C2P = max(128, _round_up(C2, 128))              # lane-dense output channels
    TH = _choose_row_tile(H, W, C1, C2P)
    assert H % TH == 0 and (TH * W) % 8 == 0, \
        "row-tile selection requires (TH*W) % 8 == 0"
    nR = H // TH
    THW = TH * W
    S = (TH + 2 * p) * W + 2 * p                    # flattened halo-tile rows
    T = N * nR                                      # grid size
    M = N * H * W

    # ---- activations: NHWC, H-pad only, overlapping row tiles, flatten (rows, C1)
    x_nhwc = jnp.transpose(x_nchw, (0, 2, 3, 1)).astype(jnp.float32)
    xh = jnp.pad(x_nhwc, ((0, 0), (p, p), (0, 0), (0, 0)))
    if nR == 1:
        tiles = xh[:, None]                                         # (N,1,H+2p,W,C1)
    else:
        tiles = jnp.stack(
            [xh[:, r * TH: r * TH + TH + 2 * p] for r in range(nR)], axis=1)
    flat = tiles.reshape(T, (TH + 2 * p) * W, C1)
    flat = jnp.pad(flat, ((0, 0), (p, p), (0, 0)))   # dummy zero rows front/back

    # ---- weights: fold BN scale, pad C2 -> C2P, layout (k*k, C1, C2P)
    inv_std = 1.0 / jnp.sqrt(run_var + eps)
    scale = gamma * inv_std                                          # (C2,)
    bias = beta - run_mean * scale                                   # (C2,)
    w_kkcc = jnp.transpose(w_oihw, (2, 3, 1, 0)).astype(jnp.float32)  # (k,k,C1,C2)
    w_kkcc = w_kkcc * scale[None, None, None, :]
    w_pad = jnp.zeros((k, k, C1, C2P), jnp.float32).at[..., :C2].set(w_kkcc)
    w_pad = w_pad.reshape(k * k, C1, C2P)
    b_pad = jnp.zeros((1, C2P), jnp.float32).at[:, :C2].set(bias[None, :])

    kernel = _make_kernel(k, W, TH, C1, C2P)
    kkc = k * k * C1
    cost = pl.CostEstimate(
        flops=2 * M * kkc * C2P,
        transcendentals=M * C2P,
        bytes_accessed=int(flat.size + w_pad.size + b_pad.size + M * C2P) * 4)

    out_flat = pl.pallas_call(
        kernel,
        out_shape=jax.ShapeDtypeStruct((M, C2P), jnp.float32),
        grid=(T,),
        in_specs=[
            pl.BlockSpec((None, S, C1), lambda t: (t, 0, 0)),      # halo tile / step
            pl.BlockSpec((k * k, C1, C2P), lambda t: (0, 0, 0)),   # resident weights
            pl.BlockSpec((1, C2P), lambda t: (0, 0)),              # resident bias
        ],
        out_specs=pl.BlockSpec((THW, C2P), lambda t: (t, 0)),
        compiler_params=pltpu.CompilerParams(
            dimension_semantics=("parallel",)),
        cost_estimate=cost,
    )(flat, w_pad, b_pad)

    out_nhwc = out_flat[:, :C2].reshape(N, H, W, C2)
    return jnp.transpose(out_nhwc, (0, 3, 1, 2))    # NCHW to match PyTorch


# ------------- pure-JAX reference for correctness check -------------
def reference_forward(x_nchw, w_oihw, gamma, beta, run_mean, run_var,
                      k, s, p, eps=1e-5):
    y = jax.lax.conv_general_dilated(
        x_nchw, w_oihw, window_strides=(s, s), padding=[(p, p), (p, p)],
        dimension_numbers=("NCHW", "OIHW", "NCHW"))
    sc = (gamma / jnp.sqrt(run_var + eps)).reshape(1, -1, 1, 1)
    bi = (beta - run_mean * gamma / jnp.sqrt(run_var + eps)).reshape(1, -1, 1, 1)
    z = y * sc + bi
    return z * jax.nn.sigmoid(z)


if __name__ == "__main__":
    # Conv(c1=4, c2=8, k=3, s=1) -> autopad p=1, groups=1, act=SiLU
    c1, c2, k, s = 4, 8, 3, 1
    p = autopad(k, None)
    N, H, W = 2, 16, 16

    key = jax.random.PRNGKey(0)
    kx, kw, kg, kb, km, kv = jax.random.split(key, 6)
    x = jax.random.normal(kx, (N, c1, H, W), dtype=jnp.float32)
    w = jax.random.normal(kw, (c2, c1, k, k), dtype=jnp.float32) * 0.1
    gamma = 1.0 + 0.1 * jax.random.normal(kg, (c2,), dtype=jnp.float32)
    beta = 0.1 * jax.random.normal(kb, (c2,), dtype=jnp.float32)
    run_mean = 0.1 * jax.random.normal(km, (c2,), dtype=jnp.float32)
    run_var = 1.0 + 0.1 * jax.random.uniform(kv, (c2,), dtype=jnp.float32)

    out = conv_bn_silu_forward(x, w, gamma, beta, run_mean, run_var, k, s, p)
    out = jax.block_until_ready(out)

    ref = reference_forward(x, w, gamma, beta, run_mean, run_var, k, s, p)
    assert out.shape == (N, c2, H, W)
    assert jnp.allclose(out, ref, atol=1e-4, rtol=1e-4)

    print("KERNEL_OK")
</pallas_src>

<mosaic_0001>
module attributes {stable_mosaic.version = 11 : i64} {
  func.func @kernel(%arg0: i32, %arg1: memref<1x290x4xf32, #tpu.memory_space<vmem>>, %arg2: memref<9x4x128xf32, #tpu.memory_space<vmem>>, %arg3: memref<1x128xf32, #tpu.memory_space<vmem>>, %arg4: memref<256x128xf32, #tpu.memory_space<vmem>>) attributes {dimension_semantics = [#tpu.dimension_semantics<parallel>], iteration_bounds = array<i64: 2>, scalar_prefetch = 0 : i64, scratch_operands = 0 : i64, tpu.core_type = #tpu.core_type<tc>, window_params = [{transform_indices = @transform_0, window_bounds = array<i64: 1, 290, 4>}, {pipeline_mode = #tpu.pipeline_mode<synchronous>, transform_indices = @transform_1, window_bounds = array<i64: 9, 4, 128>}, {pipeline_mode = #tpu.pipeline_mode<synchronous>, transform_indices = @transform_2, window_bounds = array<i64: 1, 128>}, {transform_indices = @transform_3, window_bounds = array<i64: 256, 128>}]} {
    %0 = tpu.iota {dimensions = array<i32: 0>} : vector<256x1xi32>
    %c16_i32 = arith.constant 16 : i32
    %c0_i32 = arith.constant 0 : i32
    %1 = arith.cmpi eq, %c16_i32, %c0_i32 : i32
    %c1_i32 = arith.constant 1 : i32
    %2 = arith.select %1, %c1_i32, %c16_i32 : i32
    %3 = vector.broadcast %2 : i32 to vector<256x1xi32>
    %4 = arith.remsi %0, %3 : vector<256x1xi32>
    %c0_i32_0 = arith.constant 0 : i32
    %5 = vector.broadcast %c0_i32_0 : i32 to vector<256x1xi32>
    %6 = arith.cmpi ne, %4, %5 : vector<256x1xi32>
    %c0_i32_1 = arith.constant 0 : i32
    %7 = vector.broadcast %c0_i32_1 : i32 to vector<256x1xi32>
    %8 = arith.cmpi slt, %4, %7 : vector<256x1xi32>
    %c0_i32_2 = arith.constant 0 : i32
    %9 = arith.cmpi slt, %2, %c0_i32_2 : i32
    %10 = vector.broadcast %9 : i1 to vector<256x1xi1>
    %11 = vector.broadcast %10 : vector<256x1xi1> to vector<256x1xi1>
    %12 = arith.xori %8, %11 : vector<256x1xi1>
    %13 = arith.andi %12, %6 : vector<256x1xi1>
    %14 = vector.broadcast %2 : i32 to vector<256x1xi32>
    %15 = arith.addi %4, %14 : vector<256x1xi32>
    %16 = arith.select %13, %15, %4 : vector<256x1xi1>, vector<256x1xi32>
    %cst = arith.constant 0.000000e+00 : f32
    %17 = vector.broadcast %cst : f32 to vector<256x128xf32>
    %c1_i32_3 = arith.constant 1 : i32
    %18 = vector.broadcast %c1_i32_3 : i32 to vector<256x1xi32>
    %19 = arith.cmpi sge, %16, %18 : vector<256x1xi32>
    %c16_i32_4 = arith.constant 16 : i32
    %20 = vector.broadcast %c16_i32_4 : i32 to vector<256x1xi32>
    %21 = arith.cmpi sle, %16, %20 : vector<256x1xi32>
    %22 = arith.andi %19, %21 : vector<256x1xi1>
    %c0 = arith.constant 0 : index
    %c0_5 = arith.constant 0 : index
    %c0_6 = arith.constant 0 : index
    %23 = vector.load %arg1[%c0, %c0_5, %c0_6] : memref<1x290x4xf32, #tpu.memory_space<vmem>>, vector<1x256x4xf32>
    %24 = vector.shape_cast %23 : vector<1x256x4xf32> to vector<256x4xf32>
    %cst_7 = arith.constant 0.000000e+00 : f32
    %25 = vector.shape_cast %22 : vector<256x1xi1> to vector<256x1xi1>
    %26 = vector.broadcast %25 : vector<256x1xi1> to vector<256x4xi1>
    %27 = vector.broadcast %cst_7 : f32 to vector<256x4xf32>
    %28 = arith.select %26, %24, %27 : vector<256x4xi1>, vector<256x4xf32>
    %c0_8 = arith.constant 0 : index
    %c0_9 = arith.constant 0 : index
    %c0_10 = arith.constant 0 : index
    %29 = vector.load %arg2[%c0_8, %c0_9, %c0_10] : memref<9x4x128xf32, #tpu.memory_space<vmem>>, vector<1x4x128xf32>
    %30 = vector.shape_cast %29 : vector<1x4x128xf32> to vector<4x128xf32>
    %cst_11 = arith.constant dense<0.000000e+00> : vector<256x128xf32>
    %31 = tpu.matmul %28, %30, %cst_11 {dimension_numbers = #tpu.dot_dimension_numbers<[1], [0], [0], [1], [0, 0, 1, 1], [], []>} : vector<256x4xf32>, vector<4x128xf32>, vector<256x128xf32> -> vector<256x128xf32>
    %32 = arith.addf %17, %31 : vector<256x128xf32>
    %c0_12 = arith.constant 0 : index
    %c16 = arith.constant 16 : index
    %c0_13 = arith.constant 0 : index
    %33 = vector.load %arg1[%c0_12, %c16, %c0_13] : memref<1x290x4xf32, #tpu.memory_space<vmem>>, vector<1x256x4xf32>
    %34 = vector.shape_cast %33 : vector<1x256x4xf32> to vector<256x4xf32>
    %cst_14 = arith.constant 0.000000e+00 : f32
    %35 = vector.shape_cast %22 : vector<256x1xi1> to vector<256x1xi1>
    %36 = vector.broadcast %35 : vector<256x1xi1> to vector<256x4xi1>
    %37 = vector.broadcast %cst_14 : f32 to vector<256x4xf32>
    %38 = arith.select %36, %34, %37 : vector<256x4xi1>, vector<256x4xf32>
    %c3 = arith.constant 3 : index
    %c0_15 = arith.constant 0 : index
    %c0_16 = arith.constant 0 : index
    %39 = vector.load %arg2[%c3, %c0_15, %c0_16] : memref<9x4x128xf32, #tpu.memory_space<vmem>>, vector<1x4x128xf32>
    %40 = vector.shape_cast %39 : vector<1x4x128xf32> to vector<4x128xf32>
    %cst_17 = arith.constant dense<0.000000e+00> : vector<256x128xf32>
    %41 = tpu.matmul %38, %40, %cst_17 {dimension_numbers = #tpu.dot_dimension_numbers<[1], [0], [0], [1], [0, 0, 1, 1], [], []>} : vector<256x4xf32>, vector<4x128xf32>, vector<256x128xf32> -> vector<256x128xf32>
    %42 = arith.addf %32, %41 : vector<256x128xf32>
    %c0_18 = arith.constant 0 : index
    %c32 = arith.constant 32 : index
    %c0_19 = arith.constant 0 : index
    %43 = vector.load %arg1[%c0_18, %c32, %c0_19] : memref<1x290x4xf32, #tpu.memory_space<vmem>>, vector<1x256x4xf32>
    %44 = vector.shape_cast %43 : vector<1x256x4xf32> to vector<256x4xf32>
    %cst_20 = arith.constant 0.000000e+00 : f32
    %45 = vector.shape_cast %22 : vector<256x1xi1> to vector<256x1xi1>
    %46 = vector.broadcast %45 : vector<256x1xi1> to vector<256x4xi1>
    %47 = vector.broadcast %cst_20 : f32 to vector<256x4xf32>
    %48 = arith.select %46, %44, %47 : vector<256x4xi1>, vector<256x4xf32>
    %c6 = arith.constant 6 : index
    %c0_21 = arith.constant 0 : index
    %c0_22 = arith.constant 0 : index
    %49 = vector.load %arg2[%c6, %c0_21, %c0_22] : memref<9x4x128xf32, #tpu.memory_space<vmem>>, vector<1x4x128xf32>
    %50 = vector.shape_cast %49 : vector<1x4x128xf32> to vector<4x128xf32>
    %cst_23 = arith.constant dense<0.000000e+00> : vector<256x128xf32>
    %51 = tpu.matmul %48, %50, %cst_23 {dimension_numbers = #tpu.dot_dimension_numbers<[1], [0], [0], [1], [0, 0, 1, 1], [], []>} : vector<256x4xf32>, vector<4x128xf32>, vector<256x128xf32> -> vector<256x128xf32>
    %52 = arith.addf %42, %51 : vector<256x128xf32>
    %c0_24 = arith.constant 0 : index
    %c1 = arith.constant 1 : index
    %c0_25 = arith.constant 0 : index
    %53 = vector.load %arg1[%c0_24, %c1, %c0_25] : memref<1x290x4xf32, #tpu.memory_space<vmem>>, vector<1x256x4xf32>
    %54 = vector.shape_cast %53 : vector<1x256x4xf32> to vector<256x4xf32>
    %c1_26 = arith.constant 1 : index
    %c0_27 = arith.constant 0 : index
    %c0_28 = arith.constant 0 : index
    %55 = vector.load %arg2[%c1_26, %c0_27, %c0_28] : memref<9x4x128xf32, #tpu.memory_space<vmem>>, vector<1x4x128xf32>
    %56 = vector.shape_cast %55 : vector<1x4x128xf32> to vector<4x128xf32>
    %cst_29 = arith.constant dense<0.000000e+00> : vector<256x128xf32>
    %57 = tpu.matmul %54, %56, %cst_29 {dimension_numbers = #tpu.dot_dimension_numbers<[1], [0], [0], [1], [0, 0, 1, 1], [], []>} : vector<256x4xf32>, vector<4x128xf32>, vector<256x128xf32> -> vector<256x128xf32>
    %58 = arith.addf %52, %57 : vector<256x128xf32>
    %c0_30 = arith.constant 0 : index
    %c17 = arith.constant 17 : index
    %c0_31 = arith.constant 0 : index
    %59 = vector.load %arg1[%c0_30, %c17, %c0_31] : memref<1x290x4xf32, #tpu.memory_space<vmem>>, vector<1x256x4xf32>
    %60 = vector.shape_cast %59 : vector<1x256x4xf32> to vector<256x4xf32>
    %c4 = arith.constant 4 : index
    %c0_32 = arith.constant 0 : index
    %c0_33 = arith.constant 0 : index
    %61 = vector.load %arg2[%c4, %c0_32, %c0_33] : memref<9x4x128xf32, #tpu.memory_space<vmem>>, vector<1x4x128xf32>
    %62 = vector.shape_cast %61 : vector<1x4x128xf32> to vector<4x128xf32>
    %cst_34 = arith.constant dense<0.000000e+00> : vector<256x128xf32>
    %63 = tpu.matmul %60, %62, %cst_34 {dimension_numbers = #tpu.dot_dimension_numbers<[1], [0], [0], [1], [0, 0, 1, 1], [], []>} : vector<256x4xf32>, vector<4x128xf32>, vector<256x128xf32> -> vector<256x128xf32>
    %64 = arith.addf %58, %63 : vector<256x128xf32>
    %c0_35 = arith.constant 0 : index
    %c33 = arith.constant 33 : index
    %c0_36 = arith.constant 0 : index
    %65 = vector.load %arg1[%c0_35, %c33, %c0_36] : memref<1x290x4xf32, #tpu.memory_space<vmem>>, vector<1x256x4xf32>
    %66 = vector.shape_cast %65 : vector<1x256x4xf32> to vector<256x4xf32>
    %c7 = arith.constant 7 : index
    %c0_37 = arith.constant 0 : index
    %c0_38 = arith.constant 0 : index
    %67 = vector.load %arg2[%c7, %c0_37, %c0_38] : memref<9x4x128xf32, #tpu.memory_space<vmem>>, vector<1x4x128xf32>
    %68 = vector.shape_cast %67 : vector<1x4x128xf32> to vector<4x128xf32>
    %cst_39 = arith.constant dense<0.000000e+00> : vector<256x128xf32>
    %69 = tpu.matmul %66, %68, %cst_39 {dimension_numbers = #tpu.dot_dimension_numbers<[1], [0], [0], [1], [0, 0, 1, 1], [], []>} : vector<256x4xf32>, vector<4x128xf32>, vector<256x128xf32> -> vector<256x128xf32>
    %70 = arith.addf %64, %69 : vector<256x128xf32>
    %c-1_i32 = arith.constant -1 : i32
    %71 = vector.broadcast %c-1_i32 : i32 to vector<256x1xi32>
    %72 = arith.cmpi sge, %16, %71 : vector<256x1xi32>
    %c14_i32 = arith.constant 14 : i32
    %73 = vector.broadcast %c14_i32 : i32 to vector<256x1xi32>
    %74 = arith.cmpi sle, %16, %73 : vector<256x1xi32>
    %75 = arith.andi %72, %74 : vector<256x1xi1>
    %c0_40 = arith.constant 0 : index
    %c2 = arith.constant 2 : index
    %c0_41 = arith.constant 0 : index
    %76 = vector.load %arg1[%c0_40, %c2, %c0_41] : memref<1x290x4xf32, #tpu.memory_space<vmem>>, vector<1x256x4xf32>
    %77 = vector.shape_cast %76 : vector<1x256x4xf32> to vector<256x4xf32>
    %cst_42 = arith.constant 0.000000e+00 : f32
    %78 = vector.shape_cast %75 : vector<256x1xi1> to vector<256x1xi1>
    %79 = vector.broadcast %78 : vector<256x1xi1> to vector<256x4xi1>
    %80 = vector.broadcast %cst_42 : f32 to vector<256x4xf32>
    %81 = arith.select %79, %77, %80 : vector<256x4xi1>, vector<256x4xf32>
    %c2_43 = arith.constant 2 : index
    %c0_44 = arith.constant 0 : index
    %c0_45 = arith.constant 0 : index
    %82 = vector.load %arg2[%c2_43, %c0_44, %c0_45] : memref<9x4x128xf32, #tpu.memory_space<vmem>>, vector<1x4x128xf32>
    %83 = vector.shape_cast %82 : vector<1x4x128xf32> to vector<4x128xf32>
    %cst_46 = arith.constant dense<0.000000e+00> : vector<256x128xf32>
    %84 = tpu.matmul %81, %83, %cst_46 {dimension_numbers = #tpu.dot_dimension_numbers<[1], [0], [0], [1], [0, 0, 1, 1], [], []>} : vector<256x4xf32>, vector<4x128xf32>, vector<256x128xf32> -> vector<256x128xf32>
    %85 = arith.addf %70, %84 : vector<256x128xf32>
    %c0_47 = arith.constant 0 : index
    %c18 = arith.constant 18 : index
    %c0_48 = arith.constant 0 : index
    %86 = vector.load %arg1[%c0_47, %c18, %c0_48] : memref<1x290x4xf32, #tpu.memory_space<vmem>>, vector<1x256x4xf32>
    %87 = vector.shape_cast %86 : vector<1x256x4xf32> to vector<256x4xf32>
    %cst_49 = arith.constant 0.000000e+00 : f32
    %88 = vector.shape_cast %75 : vector<256x1xi1> to vector<256x1xi1>
    %89 = vector.broadcast %88 : vector<256x1xi1> to vector<256x4xi1>
    %90 = vector.broadcast %cst_49 : f32 to vector<256x4xf32>
    %91 = arith.select %89, %87, %90 : vector<256x4xi1>, vector<256x4xf32>
    %c5 = arith.constant 5 : index
    %c0_50 = arith.constant 0 : index
    %c0_51 = arith.constant 0 : index
    %92 = vector.load %arg2[%c5, %c0_50, %c0_51] : memref<9x4x128xf32, #tpu.memory_space<vmem>>, vector<1x4x128xf32>
    %93 = vector.shape_cast %92 : vector<1x4x128xf32> to vector<4x128xf32>
    %cst_52 = arith.constant dense<0.000000e+00> : vector<256x128xf32>
    %94 = tpu.matmul %91, %93, %cst_52 {dimension_numbers = #tpu.dot_dimension_numbers<[1], [0], [0], [1], [0, 0, 1, 1], [], []>} : vector<256x4xf32>, vector<4x128xf32>, vector<256x128xf32> -> vector<256x128xf32>
    %95 = arith.addf %85, %94 : vector<256x128xf32>
    %c0_53 = arith.constant 0 : index
    %c34 = arith.constant 34 : index
    %c0_54 = arith.constant 0 : index
    %96 = vector.load %arg1[%c0_53, %c34, %c0_54] : memref<1x290x4xf32, #tpu.memory_space<vmem>>, vector<1x256x4xf32>
    %97 = vector.shape_cast %96 : vector<1x256x4xf32> to vector<256x4xf32>
    %cst_55 = arith.constant 0.000000e+00 : f32
    %98 = vector.shape_cast %75 : vector<256x1xi1> to vector<256x1xi1>
    %99 = vector.broadcast %98 : vector<256x1xi1> to vector<256x4xi1>
    %100 = vector.broadcast %cst_55 : f32 to vector<256x4xf32>
    %101 = arith.select %99, %97, %100 : vector<256x4xi1>, vector<256x4xf32>
    %c8 = arith.constant 8 : index
    %c0_56 = arith.constant 0 : index
    %c0_57 = arith.constant 0 : index
    %102 = vector.load %arg2[%c8, %c0_56, %c0_57] : memref<9x4x128xf32, #tpu.memory_space<vmem>>, vector<1x4x128xf32>
    %103 = vector.shape_cast %102 : vector<1x4x128xf32> to vector<4x128xf32>
    %cst_58 = arith.constant dense<0.000000e+00> : vector<256x128xf32>
    %104 = tpu.matmul %101, %103, %cst_58 {dimension_numbers = #tpu.dot_dimension_numbers<[1], [0], [0], [1], [0, 0, 1, 1], [], []>} : vector<256x4xf32>, vector<4x128xf32>, vector<256x128xf32> -> vector<256x128xf32>
    %105 = arith.addf %95, %104 : vector<256x128xf32>
    %c0_59 = arith.constant 0 : index
    %c0_60 = arith.constant 0 : index
    %106 = vector.load %arg3[%c0_59, %c0_60] : memref<1x128xf32, #tpu.memory_space<vmem>>, vector<1x128xf32>
    %107 = vector.broadcast %106 : vector<1x128xf32> to vector<256x128xf32>
    %108 = arith.addf %105, %107 : vector<256x128xf32>
    %109 = arith.negf %108 : vector<256x128xf32>
    %110 = math.exp %109 : vector<256x128xf32>
    %cst_61 = arith.constant 1.000000e+00 : f32
    %111 = vector.broadcast %cst_61 : f32 to vector<256x128xf32>
    %112 = arith.addf %111, %110 : vector<256x128xf32>
    %113 = arith.divf %111, %112 : vector<256x128xf32>
    %114 = arith.mulf %108, %113 : vector<256x128xf32>
    %c0_62 = arith.constant 0 : index
    %c0_63 = arith.constant 0 : index
    %115 = vector.load %arg4[%c0_62, %c0_63] : memref<256x128xf32, #tpu.memory_space<vmem>>, vector<256x128xf32>
    tpu.vector_store %arg4[%c0_62, %c0_63], %114 {strides = array<i32>} : memref<256x128xf32, #tpu.memory_space<vmem>>, vector<256x128xf32>,
    return
  }
  func.func @transform_0(%arg0: i32) -> (i32, i32, i32) {
    %c0_i32 = arith.constant 0 : i32
    %c0_i32_0 = arith.constant 0 : i32
    %c0_i32_1 = arith.constant 0 : i32
    return %arg0, %c0_i32, %c0_i32_0 : i32, i32, i32
  }
  func.func @transform_1(%arg0: i32) -> (i32, i32, i32) {
    %c0_i32 = arith.constant 0 : i32
    %c0_i32_0 = arith.constant 0 : i32
    %c0_i32_1 = arith.constant 0 : i32
    %c0_i32_2 = arith.constant 0 : i32
    return %c0_i32, %c0_i32_0, %c0_i32_1 : i32, i32, i32
  }
  func.func @transform_2(%arg0: i32) -> (i32, i32) {
    %c0_i32 = arith.constant 0 : i32
    %c0_i32_0 = arith.constant 0 : i32
    %c0_i32_1 = arith.constant 0 : i32
    return %c0_i32, %c0_i32_0 : i32, i32
  }
  func.func @transform_3(%arg0: i32) -> (i32, i32) {
    %c0_i32 = arith.constant 0 : i32
    %c0_i32_0 = arith.constant 0 : i32
    return %arg0, %c0_i32 : i32, i32
  }
}

</mosaic_0001>

<llo_original>
// kernel: tpu_custom_call.1
$region0: #{tpu_custom_call.1}
  #allocation0 [shape = 'u32[]', space=smem, size = 0x4, offset = 0x4, fixed_abs, tag = 'smem constant byte address 0x4 - core index']
  #allocation1 [shape = 'u32[72,128]{1,0:T(1,128)}', space=vmem, size = 0x9000, scoped, tag = 'internal scratch']
  %s0 = inlined_call_operand.vmem [shape: f32[2,290,4], index: 0, kind: input, shape index: {}]
  %s1 = inlined_call_operand.vmem [shape: f32[9,4,128], index: 1, kind: input, shape index: {}]
  %s2 = inlined_call_operand.vmem [shape: f32[1,128], index: 2, kind: input, shape index: {}]
  %s3 = inlined_call_operand.hbm [shape: f32[512,128], index: 3, kind: output, shape index: {}]
  %s4 = sld [smem:[#allocation0]]
  $region45: #{tpu_custom_call.1} parent=0
    _
  %s6 = ssub.s32 1, %s4
  %s7 = scalar_select 0, %s6, %s4
  $region1: #{tpu_custom_call.1} parent=0
    #allocation2 [shape = 'u8[262144]{0}', space=vmem, size = 0x40000, scoped, tag = 'output window, operand 0']
    #allocation3 [shape = 's32[2]{0}', space=sflag, size = 0x8, scoped, tag = 'scoped memory for tpu_custom_call.1']
    %8 = vsyncpa [#allocation3], 0
    %s9 = scalar_lea.sflag [#allocation3], 1
    %10 = vsyncpa %s9, 0
    loop: start=0, step=1, limit=4
    $region2: #{tpu_custom_call.1} parent=1 // loop_pre_header
      _
    $region3: #{tpu_custom_call.1} parent=1 // loop_header
      %s12 = sphi 0, %s16
      %p13 = scmp.ge.s32.totalorder %s12, 4
      %s22 = sphi 0, %s24
      %s25 = sphi 0, %s22
      %s26 = sphi 0, %s25
      %s42 = sphi 0, %s26
      %s46 = sphi 0, %s46
      %s48 = sphi 0, %s46
      %s49 = sphi 0, %s48
      %s63 = sphi 0, %s49
      %s67 = sphi 0, %s67
      %s69 = sphi 0, %s67
      %s70 = sphi 0, %s69
      %s84 = sphi 0, %s70
      %s90 = sphi 0, %s92
      %s93 = sphi 0, %s90
      %s94 = sphi 0, %s93
      %s110 = sphi 0, %s94
    $region4: #{tpu_custom_call.1} parent=1 // loop_header_branch
      %15 = sbr.rel (%p13) target = $region8
    $region5: #{tpu_custom_call.1} parent=1 // loop_body
      %s17 = ssub.s32 %s12, 1
      %s18 = ssub.s32 %s12, 2
      %s19 = sadd.s32 %s12, 1
      %s20 = ssub.s32 %s12, %s19
      %p21 = scmp.eq.s32.totalorder %s20, 0
      %s23 = sadd.s32 %s22, 1
      %s24 = scalar_select %p21, %s22, %s23
      %p27 = pneg %p21
      %p28 = scmp.eq.s32.totalorder %s12, 1
      %p29 = por %p27, %p28
      %p30 = scmp.ne.s32.totalorder %s22, %s25
      %p31 = scmp.eq.s32.totalorder %s12, 0
      %p32 = por %p30, %p31
      %p33 = scmp.ne.s32.totalorder %s22, %s25
      %p34 = scmp.eq.s32.totalorder %s17, 1
      %p35 = por %p33, %p34
      %p36 = scmp.ne.s32.totalorder %s25, %s26
      %p37 = scmp.eq.s32.totalorder %s17, 0
      %p38 = por %p36, %p37
      %p39 = scmp.ne.s32.totalorder %s25, %s26
      %p40 = scmp.eq.s32.totalorder %s18, 1
      %p41 = por %p39, %p40
      %p43 = scmp.ne.s32.totalorder %s26, %s42
      %p44 = scmp.eq.s32.totalorder %s18, 0
      %p45 = por %p43, %p44
      %s47 = sadd.s32 %s46, 1
      %p50 = scmp.eq.s32.totalorder %s12, 1
      %p51 = scmp.ne.s32.totalorder %s46, %s48
      %p52 = scmp.eq.s32.totalorder %s12, 0
      %p53 = por %p51, %p52
      %p54 = scmp.ne.s32.totalorder %s46, %s48
      %p55 = scmp.eq.s32.totalorder %s17, 1
      %p56 = por %p54, %p55
      %p57 = scmp.ne.s32.totalorder %s48, %s49
      %p58 = scmp.eq.s32.totalorder %s17, 0
      %p59 = por %p57, %p58
      %p60 = scmp.ne.s32.totalorder %s48, %s49
      %p61 = scmp.eq.s32.totalorder %s18, 1
      %p62 = por %p60, %p61
      %p64 = scmp.ne.s32.totalorder %s49, %s63
      %p65 = scmp.eq.s32.totalorder %s18, 0
      %p66 = por %p64, %p65
      %s68 = sadd.s32 %s67, 1
      %p71 = scmp.eq.s32.totalorder %s12, 1
      %p72 = scmp.ne.s32.totalorder %s67, %s69
      %p73 = scmp.eq.s32.totalorder %s12, 0
      %p74 = por %p72, %p73
      %p75 = scmp.ne.s32.totalorder %s67, %s69
      %p76 = scmp.eq.s32.totalorder %s17, 1
      %p77 = por %p75, %p76
      %p78 = scmp.ne.s32.totalorder %s69, %s70
      %p79 = scmp.eq.s32.totalorder %s17, 0
      %p80 = por %p78, %p79
      %p81 = scmp.ne.s32.totalorder %s69, %s70
      %p82 = scmp.eq.s32.totalorder %s18, 1
      %p83 = por %p81, %p82
      %p85 = scmp.ne.s32.totalorder %s70, %s84
      %p86 = scmp.eq.s32.totalorder %s18, 0
      %p87 = por %p85, %p86
      %s88 = ssub.s32 %s12, %s19
      %p89 = scmp.eq.s32.totalorder %s88, 0
      %s91 = sadd.s32 %s90, 1
      %s92 = scalar_select %p89, %s90, %s91
      %p95 = pneg %p89
      %p96 = scmp.eq.s32.totalorder %s12, 1
      %p97 = por %p95, %p96
      %p98 = scmp.ne.s32.totalorder %s90, %s93
      %p99 = scmp.eq.s32.totalorder %s12, 0
      %p100 = por %p98, %p99
      %p101 = scmp.ne.s32.totalorder %s90, %s93
      %p102 = scmp.eq.s32.totalorder %s17, 1
      %p103 = por %p101, %p102
      %p104 = scmp.ne.s32.totalorder %s93, %s94
      %p105 = scmp.eq.s32.totalorder %s17, 0
      %p106 = por %p104, %p105
      %p107 = scmp.ne.s32.totalorder %s93, %s94
      %p108 = scmp.eq.s32.totalorder %s18, 1
      %p109 = por %p107, %p108
      %p111 = scmp.ne.s32.totalorder %s94, %s110
      %p112 = scmp.eq.s32.totalorder %s18, 0
      %p113 = por %p111, %p112
      %p114 = scmp.le.s32.totalorder 1, %s12
      %p115 = scmp.lt.s32.totalorder %s12, 3
      %p116 = pnand %p114, %p115
      %p117 = pneg %p116
      // Predicated region
      $region9: #{tpu_custom_call.1} parent=5 // pred_check
        _
      $region10: #{tpu_custom_call.1} parent=5 // pred_check_branch
        %119 = sbr.rel (%p116) target = $region12
      $region11: #{tpu_custom_call.1} parent=5 // pred_region
        %s120 = ssub.s32 %s12, 1
        // Predicated region
        $region13: #{tpu_custom_call.1} parent=11 // pred_check
          %p121 = pneg %p59
        $region14: #{tpu_custom_call.1} parent=11 // pred_check_branch
          %123 = sbr.rel (%p121) target = $region16
        $region15: #{tpu_custom_call.1} parent=11 // pred_region
          _
        $region16: #{tpu_custom_call.1} parent=11 // pred_fallthru
          _
        // Predicated region
        $region17: #{tpu_custom_call.1} parent=11 // pred_check
          %p124 = pneg %p80
        $region18: #{tpu_custom_call.1} parent=11 // pred_check_branch
          %126 = sbr.rel (%p124) target = $region20
        $region19: #{tpu_custom_call.1} parent=11 // pred_region
          _
        $region20: #{tpu_custom_call.1} parent=11 // pred_fallthru
          _
      $region12: #{tpu_custom_call.1} parent=5 // pred_fallthru
        _
      %p127 = scmp.lt.s32.totalorder %s12, 2
      // Predicated region
      $region21: #{tpu_custom_call.1} parent=5 // pred_check
        %p128 = pneg %p127
      $region22: #{tpu_custom_call.1} parent=5 // pred_check_branch
        %130 = sbr.rel (%p128) target = $region24
      $region23: #{tpu_custom_call.1} parent=5 // pred_region
        // Predicated region
        $region25: #{tpu_custom_call.1} parent=23 // pred_check
          %p131 = pneg %p32
        $region26: #{tpu_custom_call.1} parent=23 // pred_check_branch
          %133 = sbr.rel (%p131) target = $region28
        $region27: #{tpu_custom_call.1} parent=23 // pred_region
          %p134 = scmp.lt.s32.totalorder %s12, 1
          %s135 = scalar_select %p134, %s12, 1
          %s136 = smul.addr %s135, 37
          %s137 = smul.addr %s136, 8
          %s138 = scalar_lea.vmem %s0, %s137
        $region28: #{tpu_custom_call.1} parent=23 // pred_fallthru
          _
      $region24: #{tpu_custom_call.1} parent=5 // pred_fallthru
        _
      %p139 = scmp.le.s32.totalorder 1, %s12
      %p140 = scmp.lt.s32.totalorder %s12, 3
      %p141 = pnand %p139, %p140
      %p142 = pneg %p141
      // Predicated region
      $region29: #{tpu_custom_call.1} parent=5 // pred_check
        _
      $region30: #{tpu_custom_call.1} parent=5 // pred_check_branch
        %144 = sbr.rel (%p141) target = $region32
      $region31: #{tpu_custom_call.1} parent=5 // pred_region
        %s145 = ssub.s32 %s12, 1
        %p146 = scmp.lt.s32.totalorder %s17, 1
        %s147 = scalar_select %p146, %s17, 1
        %s148 = smul.addr %s147, 37
        %s149 = smul.addr %s148, 8
        %s150 = scalar_lea.vmem %s0, %s149
        %p151 = pneg %p38
        %p152 = pneg %p35
        %p153 = pneg %p59
        %p154 = pneg %p56
        %p155 = pneg %p80
        %p156 = pneg %p77
        %p157 = pneg %p106
        %p158 = pneg %p103
        %s159 = sand.u32 %s93, 1
        %s160 = scalar_lea.sflag [#allocation3], %s159
        %s161 = sand.u32 %s93, 1
        %s162 = smul.addr %s161, 256
        %s163 = scalar_lea.vmem [#allocation2], %s162
        %p164 = scmp.lt.s32.totalorder %s17, 1
        %s165 = scalar_select %p164, %s17, 1
        %s166 = smul.addr %s165, 37
        %s167 = smul.addr %s166, 8
        %s168 = scalar_lea.vmem %s0, %s167
        %s169 = smul.u32 32, %s17
        %v170 = vlaneseq
        %v171 = vshrl.u32 %v170, 7
        %v172 = vadd.s32 %v171, 8
        %v173 = vadd.s32 %v171, 16
        %v174 = vadd.s32 %v171, 24
        %v175 = vadd.s32 %v171, 32
        %v176 = vadd.s32 %v171, 40
        %v177 = vadd.s32 %v171, 48
        %v178 = vadd.s32 %v171, 56
        %v179 = vadd.s32 %v171, 64
        %v180 = vadd.s32 %v171, 72
        %v181 = vadd.s32 %v171, 80
        %v182 = vadd.s32 %v171, 88
        %v183 = vadd.s32 %v171, 96
        %v184 = vadd.s32 %v171, 104
        %v185 = vadd.s32 %v171, 112
        %v186 = vadd.s32 %v171, 120
        %v187 = vadd.s32 %v171, 128
        %v188 = vadd.s32 %v171, 136
        %v189 = vadd.s32 %v171, 144
        %v190 = vadd.s32 %v171, 152
        %v191 = vadd.s32 %v171, 160
        %v192 = vadd.s32 %v171, 168
        %v193 = vadd.s32 %v171, 176
        %v194 = vadd.s32 %v171, 184
        %v195 = vadd.s32 %v171, 192
        %v196 = vadd.s32 %v171, 200
        %v197 = vadd.s32 %v171, 208
        %v198 = vadd.s32 %v171, 216
        %v199 = vadd.s32 %v171, 224
        %v200 = vadd.s32 %v171, 232
        %v201 = vadd.s32 %v171, 240
        %v202 = vadd.s32 %v171, 248
        %vm203 = vcmp.lt.s32.totalorder %v171, 0
        %v204 = vsub.s32 0, %v171
        %v205 = vsel %vm203, %v204, %v171
        %v206 = vshrl.u32 %v205, 4
        %v207 = vand.u32 %v205, 15
        %v208 = vsub.s32 0, %v207
        %v209 = vsel %vm203, %v208, %v207
        %vm210 = vcmp.lt.s32.totalorder %v172, 0
        %v211 = vsub.s32 0, %v172
        %v212 = vsel %vm210, %v211, %v172
        %v213 = vshrl.u32 %v212, 4
        %v214 = vand.u32 %v212, 15
        %v215 = vsub.s32 0, %v214
        %v216 = vsel %vm210, %v215, %v214
        %vm217 = vcmp.lt.s32.totalorder %v173, 0
        %v218 = vsub.s32 0, %v173
        %v219 = vsel %vm217, %v218, %v173
        %v220 = vshrl.u32 %v219, 4
        %v221 = vand.u32 %v219, 15
        %v222 = vsub.s32 0, %v221
        %v223 = vsel %vm217, %v222, %v221
        %vm224 = vcmp.lt.s32.totalorder %v174, 0
        %v225 = vsub.s32 0, %v174
        %v226 = vsel %vm224, %v225, %v174
        %v227 = vshrl.u32 %v226, 4
        %v228 = vand.u32 %v226, 15
        %v229 = vsub.s32 0, %v228
        %v230 = vsel %vm224, %v229, %v228
        %vm231 = vcmp.lt.s32.totalorder %v175, 0
        %v232 = vsub.s32 0, %v175
        %v233 = vsel %vm231, %v232, %v175
        %v234 = vshrl.u32 %v233, 4
        %v235 = vand.u32 %v233, 15
        %v236 = vsub.s32 0, %v235
        %v237 = vsel %vm231, %v236, %v235
        %vm238 = vcmp.lt.s32.totalorder %v176, 0
        %v239 = vsub.s32 0, %v176
        %v240 = vsel %vm238, %v239, %v176
        %v241 = vshrl.u32 %v240, 4
        %v242 = vand.u32 %v240, 15
        %v243 = vsub.s32 0, %v242
        %v244 = vsel %vm238, %v243, %v242
        %vm245 = vcmp.lt.s32.totalorder %v177, 0
        %v246 = vsub.s32 0, %v177
        %v247 = vsel %vm245, %v246, %v177
        %v248 = vshrl.u32 %v247, 4
        %v249 = vand.u32 %v247, 15
        %v250 = vsub.s32 0, %v249
        %v251 = vsel %vm245, %v250, %v249
        %vm252 = vcmp.lt.s32.totalorder %v178, 0
        %v253 = vsub.s32 0, %v178
        %v254 = vsel %vm252, %v253, %v178
        %v255 = vshrl.u32 %v254, 4
        %v256 = vand.u32 %v254, 15
        %v257 = vsub.s32 0, %v256
        %v258 = vsel %vm252, %v257, %v256
        %vm259 = vcmp.lt.s32.totalorder %v179, 0
        %v260 = vsub.s32 0, %v179
        %v261 = vsel %vm259, %v260, %v179
        %v262 = vshrl.u32 %v261, 4
        %v263 = vand.u32 %v261, 15
        %v264 = vsub.s32 0, %v263
        %v265 = vsel %vm259, %v264, %v263
        %vm266 = vcmp.lt.s32.totalorder %v180, 0
        %v267 = vsub.s32 0, %v180
        %v268 = vsel %vm266, %v267, %v180
        %v269 = vshrl.u32 %v268, 4
        %v270 = vand.u32 %v268, 15
        %v271 = vsub.s32 0, %v270
        %v272 = vsel %vm266, %v271, %v270
        %vm273 = vcmp.lt.s32.totalorder %v181, 0
        %v274 = vsub.s32 0, %v181
        %v275 = vsel %vm273, %v274, %v181
        %v276 = vshrl.u32 %v275, 4
        %v277 = vand.u32 %v275, 15
        %v278 = vsub.s32 0, %v277
        %v279 = vsel %vm273, %v278, %v277
        %vm280 = vcmp.lt.s32.totalorder %v182, 0
        %v281 = vsub.s32 0, %v182
        %v282 = vsel %vm280, %v281, %v182
        %v283 = vshrl.u32 %v282, 4
        %v284 = vand.u32 %v282, 15
        %v285 = vsub.s32 0, %v284
        %v286 = vsel %vm280, %v285, %v284
        %vm287 = vcmp.lt.s32.totalorder %v183, 0
        %v288 = vsub.s32 0, %v183
        %v289 = vsel %vm287, %v288, %v183
        %v290 = vshrl.u32 %v289, 4
        %v291 = vand.u32 %v289, 15
        %v292 = vsub.s32 0, %v291
        %v293 = vsel %vm287, %v292, %v291
        %vm294 = vcmp.lt.s32.totalorder %v184, 0
        %v295 = vsub.s32 0, %v184
        %v296 = vsel %vm294, %v295, %v184
        %v297 = vshrl.u32 %v296, 4
        %v298 = vand.u32 %v296, 15
        %v299 = vsub.s32 0, %v298
        %v300 = vsel %vm294, %v299, %v298
        %vm301 = vcmp.lt.s32.totalorder %v185, 0
        %v302 = vsub.s32 0, %v185
        %v303 = vsel %vm301, %v302, %v185
        %v304 = vshrl.u32 %v303, 4
        %v305 = vand.u32 %v303, 15
        %v306 = vsub.s32 0, %v305
        %v307 = vsel %vm301, %v306, %v305
        %vm308 = vcmp.lt.s32.totalorder %v186, 0
        %v309 = vsub.s32 0, %v186
        %v310 = vsel %vm308, %v309, %v186
        %v311 = vshrl.u32 %v310, 4
        %v312 = vand.u32 %v310, 15
        %v313 = vsub.s32 0, %v312
        %v314 = vsel %vm308, %v313, %v312
        %vm315 = vcmp.lt.s32.totalorder %v187, 0
        %v316 = vsub.s32 0, %v187
        %v317 = vsel %vm315, %v316, %v187
        %v318 = vshrl.u32 %v317, 4
        %v319 = vand.u32 %v317, 15
        %v320 = vsub.s32 0, %v319
        %v321 = vsel %vm315, %v320, %v319
        %vm322 = vcmp.lt.s32.totalorder %v188, 0
        %v323 = vsub.s32 0, %v188
        %v324 = vsel %vm322, %v323, %v188
        %v325 = vshrl.u32 %v324, 4
        %v326 = vand.u32 %v324, 15
        %v327 = vsub.s32 0, %v326
        %v328 = vsel %vm322, %v327, %v326
        %vm329 = vcmp.lt.s32.totalorder %v189, 0
        %v330 = vsub.s32 0, %v189
        %v331 = vsel %vm329, %v330, %v189
        %v332 = vshrl.u32 %v331, 4
        %v333 = vand.u32 %v331, 15
        %v334 = vsub.s32 0, %v333
        %v335 = vsel %vm329, %v334, %v333
        %vm336 = vcmp.lt.s32.totalorder %v190, 0
        %v337 = vsub.s32 0, %v190
        %v338 = vsel %vm336, %v337, %v190
        %v339 = vshrl.u32 %v338, 4
        %v340 = vand.u32 %v338, 15
        %v341 = vsub.s32 0, %v340
        %v342 = vsel %vm336, %v341, %v340
        %vm343 = vcmp.lt.s32.totalorder %v191, 0
        %v344 = vsub.s32 0, %v191
        %v345 = vsel %vm343, %v344, %v191
        %v346 = vshrl.u32 %v345, 4
        %v347 = vand.u32 %v345, 15
        %v348 = vsub.s32 0, %v347
        %v349 = vsel %vm343, %v348, %v347
        %vm350 = vcmp.lt.s32.totalorder %v192, 0
        %v351 = vsub.s32 0, %v192
        %v352 = vsel %vm350, %v351, %v192
        %v353 = vshrl.u32 %v352, 4
        %v354 = vand.u32 %v352, 15
        %v355 = vsub.s32 0, %v354
        %v356 = vsel %vm350, %v355, %v354
        %vm357 = vcmp.lt.s32.totalorder %v193, 0
        %v358 = vsub.s32 0, %v193
        %v359 = vsel %vm357, %v358, %v193
        %v360 = vshrl.u32 %v359, 4
        %v361 = vand.u32 %v359, 15
        %v362 = vsub.s32 0, %v361
        %v363 = vsel %vm357, %v362, %v361
        %vm364 = vcmp.lt.s32.totalorder %v194, 0
        %v365 = vsub.s32 0, %v194
        %v366 = vsel %vm364, %v365, %v194
        %v367 = vshrl.u32 %v366, 4
        %v368 = vand.u32 %v366, 15
        %v369 = vsub.s32 0, %v368
        %v370 = vsel %vm364, %v369, %v368
        %vm371 = vcmp.lt.s32.totalorder %v195, 0
        %v372 = vsub.s32 0, %v195
        %v373 = vsel %vm371, %v372, %v195
        %v374 = vshrl.u32 %v373, 4
        %v375 = vand.u32 %v373, 15
        %v376 = vsub.s32 0, %v375
        %v377 = vsel %vm371, %v376, %v375
        %vm378 = vcmp.lt.s32.totalorder %v196, 0
        %v379 = vsub.s32 0, %v196
        %v380 = vsel %vm378, %v379, %v196
        %v381 = vshrl.u32 %v380, 4
        %v382 = vand.u32 %v380, 15
        %v383 = vsub.s32 0, %v382
        %v384 = vsel %vm378, %v383, %v382
        %vm385 = vcmp.lt.s32.totalorder %v197, 0
        %v386 = vsub.s32 0, %v197
        %v387 = vsel %vm385, %v386, %v197
        %v388 = vshrl.u32 %v387, 4
        %v389 = vand.u32 %v387, 15
        %v390 = vsub.s32 0, %v389
        %v391 = vsel %vm385, %v390, %v389
        %vm392 = vcmp.lt.s32.totalorder %v198, 0
        %v393 = vsub.s32 0, %v198
        %v394 = vsel %vm392, %v393, %v198
        %v395 = vshrl.u32 %v394, 4
        %v396 = vand.u32 %v394, 15
        %v397 = vsub.s32 0, %v396
        %v398 = vsel %vm392, %v397, %v396
        %vm399 = vcmp.lt.s32.totalorder %v199, 0
        %v400 = vsub.s32 0, %v199
        %v401 = vsel %vm399, %v400, %v199
        %v402 = vshrl.u32 %v401, 4
        %v403 = vand.u32 %v401, 15
        %v404 = vsub.s32 0, %v403
        %v405 = vsel %vm399, %v404, %v403
        %vm406 = vcmp.lt.s32.totalorder %v200, 0
        %v407 = vsub.s32 0, %v200
        %v408 = vsel %vm406, %v407, %v200
        %v409 = vshrl.u32 %v408, 4
        %v410 = vand.u32 %v408, 15
        %v411 = vsub.s32 0, %v410
        %v412 = vsel %vm406, %v411, %v410
        %vm413 = vcmp.lt.s32.totalorder %v201, 0
        %v414 = vsub.s32 0, %v201
        %v415 = vsel %vm413, %v414, %v201
        %v416 = vshrl.u32 %v415, 4
        %v417 = vand.u32 %v415, 15
        %v418 = vsub.s32 0, %v417
        %v419 = vsel %vm413, %v418, %v417
        %vm420 = vcmp.lt.s32.totalorder %v202, 0
        %v421 = vsub.s32 0, %v202
        %v422 = vsel %vm420, %v421, %v202
        %v423 = vshrl.u32 %v422, 4
        %v424 = vand.u32 %v422, 15
        %v425 = vsub.s32 0, %v424
        %v426 = vsel %vm420, %v425, %v424
        %vm427 = vcmp.ne.s32.totalorder %v209, 0
        %vm428 = vcmp.ne.s32.totalorder %v216, 0
        %vm429 = vcmp.ne.s32.totalorder %v223, 0
        %vm430 = vcmp.ne.s32.totalorder %v230, 0
        %vm431 = vcmp.ne.s32.totalorder %v237, 0
        %vm432 = vcmp.ne.s32.totalorder %v244, 0
        %vm433 = vcmp.ne.s32.totalorder %v251, 0
        %vm434 = vcmp.ne.s32.totalorder %v258, 0
        %vm435 = vcmp.ne.s32.totalorder %v265, 0
        %vm436 = vcmp.ne.s32.totalorder %v272, 0
        %vm437 = vcmp.ne.s32.totalorder %v279, 0
        %vm438 = vcmp.ne.s32.totalorder %v286, 0
        %vm439 = vcmp.ne.s32.totalorder %v293, 0
        %vm440 = vcmp.ne.s32.totalorder %v300, 0
        %vm441 = vcmp.ne.s32.totalorder %v307, 0
        %vm442 = vcmp.ne.s32.totalorder %v314, 0
        %vm443 = vcmp.ne.s32.totalorder %v321, 0
        %vm444 = vcmp.ne.s32.totalorder %v328, 0
        %vm445 = vcmp.ne.s32.totalorder %v335, 0
        %vm446 = vcmp.ne.s32.totalorder %v342, 0
        %vm447 = vcmp.ne.s32.totalorder %v349, 0
        %vm448 = vcmp.ne.s32.totalorder %v356, 0
        %vm449 = vcmp.ne.s32.totalorder %v363, 0
        %vm450 = vcmp.ne.s32.totalorder %v370, 0
        %vm451 = vcmp.ne.s32.totalorder %v377, 0
        %vm452 = vcmp.ne.s32.totalorder %v384, 0
        %vm453 = vcmp.ne.s32.totalorder %v391, 0
        %vm454 = vcmp.ne.s32.totalorder %v398, 0
        %vm455 = vcmp.ne.s32.totalorder %v405, 0
        %vm456 = vcmp.ne.s32.totalorder %v412, 0
        %vm457 = vcmp.ne.s32.totalorder %v419, 0
        %vm458 = vcmp.ne.s32.totalorder %v426, 0
        %vm459 = vcmp.lt.s32.totalorder %v209, 0
        %vm460 = vcmp.lt.s32.totalorder %v216, 0
        %vm461 = vcmp.lt.s32.totalorder %v223, 0
        %vm462 = vcmp.lt.s32.totalorder %v230, 0
        %vm463 = vcmp.lt.s32.totalorder %v237, 0
        %vm464 = vcmp.lt.s32.totalorder %v244, 0
        %vm465 = vcmp.lt.s32.totalorder %v251, 0
        %vm466 = vcmp.lt.s32.totalorder %v258, 0
        %vm467 = vcmp.lt.s32.totalorder %v265, 0
        %vm468 = vcmp.lt.s32.totalorder %v272, 0
        %vm469 = vcmp.lt.s32.totalorder %v279, 0
        %vm470 = vcmp.lt.s32.totalorder %v286, 0
        %vm471 = vcmp.lt.s32.totalorder %v293, 0
        %vm472 = vcmp.lt.s32.totalorder %v300, 0
        %vm473 = vcmp.lt.s32.totalorder %v307, 0
        %vm474 = vcmp.lt.s32.totalorder %v314, 0
        %vm475 = vcmp.lt.s32.totalorder %v321, 0
        %vm476 = vcmp.lt.s32.totalorder %v328, 0
        %vm477 = vcmp.lt.s32.totalorder %v335, 0
        %vm478 = vcmp.lt.s32.totalorder %v342, 0
        %vm479 = vcmp.lt.s32.totalorder %v349, 0
        %vm480 = vcmp.lt.s32.totalorder %v356, 0
        %vm481 = vcmp.lt.s32.totalorder %v363, 0
        %vm482 = vcmp.lt.s32.totalorder %v370, 0
        %vm483 = vcmp.lt.s32.totalorder %v377, 0
        %vm484 = vcmp.lt.s32.totalorder %v384, 0
        %vm485 = vcmp.lt.s32.totalorder %v391, 0
        %vm486 = vcmp.lt.s32.totalorder %v398, 0
        %vm487 = vcmp.lt.s32.totalorder %v405, 0
        %vm488 = vcmp.lt.s32.totalorder %v412, 0
        %vm489 = vcmp.lt.s32.totalorder %v419, 0
        %vm490 = vcmp.lt.s32.totalorder %v426, 0
        %vm491 = vmand %vm459, %vm427
        %vm492 = vmand %vm460, %vm428
        %vm493 = vmand %vm461, %vm429
        %vm494 = vmand %vm462, %vm430
        %vm495 = vmand %vm463, %vm431
        %vm496 = vmand %vm464, %vm432
        %vm497 = vmand %vm465, %vm433
        %vm498 = vmand %vm466, %vm434
        %vm499 = vmand %vm467, %vm435
        %vm500 = vmand %vm468, %vm436
        %vm501 = vmand %vm469, %vm437
        %vm502 = vmand %vm470, %vm438
        %vm503 = vmand %vm471, %vm439
        %vm504 = vmand %vm472, %vm440
        %vm505 = vmand %vm473, %vm441
        %vm506 = vmand %vm474, %vm442
        %vm507 = vmand %vm475, %vm443
        %vm508 = vmand %vm476, %vm444
        %vm509 = vmand %vm477, %vm445
        %vm510 = vmand %vm478, %vm446
        %vm511 = vmand %vm479, %vm447
        %vm512 = vmand %vm480, %vm448
        %vm513 = vmand %vm481, %vm449
        %vm514 = vmand %vm482, %vm450
        %vm515 = vmand %vm483, %vm451
        %vm516 = vmand %vm484, %vm452
        %vm517 = vmand %vm485, %vm453
        %vm518 = vmand %vm486, %vm454
        %vm519 = vmand %vm487, %vm455
        %vm520 = vmand %vm488, %vm456
        %vm521 = vmand %vm489, %vm457
        %vm522 = vmand %vm490, %vm458
        %v523 = vadd.s32 %v209, 16
        %v524 = vadd.s32 %v216, 16
        %v525 = vadd.s32 %v223, 16
        %v526 = vadd.s32 %v230, 16
        %v527 = vadd.s32 %v237, 16
        %v528 = vadd.s32 %v244, 16
        %v529 = vadd.s32 %v251, 16
        %v530 = vadd.s32 %v258, 16
        %v531 = vadd.s32 %v265, 16
        %v532 = vadd.s32 %v272, 16
        %v533 = vadd.s32 %v279, 16
        %v534 = vadd.s32 %v286, 16
        %v535 = vadd.s32 %v293, 16
        %v536 = vadd.s32 %v300, 16
        %v537 = vadd.s32 %v307, 16
        %v538 = vadd.s32 %v314, 16
        %v539 = vadd.s32 %v321, 16
        %v540 = vadd.s32 %v328, 16
        %v541 = vadd.s32 %v335, 16
        %v542 = vadd.s32 %v342, 16
        %v543 = vadd.s32 %v349, 16
        %v544 = vadd.s32 %v356, 16
        %v545 = vadd.s32 %v363, 16
        %v546 = vadd.s32 %v370, 16
        %v547 = vadd.s32 %v377, 16
        %v548 = vadd.s32 %v384, 16
        %v549 = vadd.s32 %v391, 16
        %v550 = vadd.s32 %v398, 16
        %v551 = vadd.s32 %v405, 16
        %v552 = vadd.s32 %v412, 16
        %v553 = vadd.s32 %v419, 16
        %v554 = vadd.s32 %v426, 16
        %v555 = vsel %vm491, %v523, %v209
        %v556 = vsel %vm492, %v524, %v216
        %v557 = vsel %vm493, %v525, %v223
        %v558 = vsel %vm494, %v526, %v230
        %v559 = vsel %vm495, %v527, %v237
        %v560 = vsel %vm496, %v528, %v244
        %v561 = vsel %vm497, %v529, %v251
        %v562 = vsel %vm498, %v530, %v258
        %v563 = vsel %vm499, %v531, %v265
        %v564 = vsel %vm500, %v532, %v272
        %v565 = vsel %vm501, %v533, %v279
        %v566 = vsel %vm502, %v534, %v286
        %v567 = vsel %vm503, %v535, %v293
        %v568 = vsel %vm504, %v536, %v300
        %v569 = vsel %vm505, %v537, %v307
        %v570 = vsel %vm506, %v538, %v314
        %v571 = vsel %vm507, %v539, %v321
        %v572 = vsel %vm508, %v540, %v328
        %v573 = vsel %vm509, %v541, %v335
        %v574 = vsel %vm510, %v542, %v342
        %v575 = vsel %vm511, %v543, %v349
        %v576 = vsel %vm512, %v544, %v356
        %v577 = vsel %vm513, %v545, %v363
        %v578 = vsel %vm514, %v546, %v370
        %v579 = vsel %vm515, %v547, %v377
        %v580 = vsel %vm516, %v548, %v384
        %v581 = vsel %vm517, %v549, %v391
        %v582 = vsel %vm518, %v550, %v398
        %v583 = vsel %vm519, %v551, %v405
        %v584 = vsel %vm520, %v552, %v412
        %v585 = vsel %vm521, %v553, %v419
        %v586 = vsel %vm522, %v554, %v426
        %vm587 = vcmp.ge.s32.totalorder %v555, 1
        %vm588 = vcmp.ge.s32.totalorder %v556, 1
        %vm589 = vcmp.ge.s32.totalorder %v557, 1
        %vm590 = vcmp.ge.s32.totalorder %v558, 1
        %vm591 = vcmp.ge.s32.totalorder %v559, 1
        %vm592 = vcmp.ge.s32.totalorder %v560, 1
        %vm593 = vcmp.ge.s32.totalorder %v561, 1
        %vm594 = vcmp.ge.s32.totalorder %v562, 1
        %vm595 = vcmp.ge.s32.totalorder %v563, 1
        %vm596 = vcmp.ge.s32.totalorder %v564, 1
        %vm597 = vcmp.ge.s32.totalorder %v565, 1
        %vm598 = vcmp.ge.s32.totalorder %v566, 1
        %vm599 = vcmp.ge.s32.totalorder %v567, 1
        %vm600 = vcmp.ge.s32.totalorder %v568, 1
        %vm601 = vcmp.ge.s32.totalorder %v569, 1
        %vm602 = vcmp.ge.s32.totalorder %v570, 1
        %vm603 = vcmp.ge.s32.totalorder %v571, 1
        %vm604 = vcmp.ge.s32.totalorder %v572, 1
        %vm605 = vcmp.ge.s32.totalorder %v573, 1
        %vm606 = vcmp.ge.s32.totalorder %v574, 1
        %vm607 = vcmp.ge.s32.totalorder %v575, 1
        %vm608 = vcmp.ge.s32.totalorder %v576, 1
        %vm609 = vcmp.ge.s32.totalorder %v577, 1
        %vm610 = vcmp.ge.s32.totalorder %v578, 1
        %vm611 = vcmp.ge.s32.totalorder %v579, 1
        %vm612 = vcmp.ge.s32.totalorder %v580, 1
        %vm613 = vcmp.ge.s32.totalorder %v581, 1
        %vm614 = vcmp.ge.s32.totalorder %v582, 1
        %vm615 = vcmp.ge.s32.totalorder %v583, 1
        %vm616 = vcmp.ge.s32.totalorder %v584, 1
        %vm617 = vcmp.ge.s32.totalorder %v585, 1
        %vm618 = vcmp.ge.s32.totalorder %v586, 1
        %vm619 = vcmp.le.s32.totalorder %v555, 16
        %vm620 = vcmp.le.s32.totalorder %v556, 16
        %vm621 = vcmp.le.s32.totalorder %v557, 16
        %vm622 = vcmp.le.s32.totalorder %v558, 16
        %vm623 = vcmp.le.s32.totalorder %v559, 16
        %vm624 = vcmp.le.s32.totalorder %v560, 16
        %vm625 = vcmp.le.s32.totalorder %v561, 16
        %vm626 = vcmp.le.s32.totalorder %v562, 16
        %vm627 = vcmp.le.s32.totalorder %v563, 16
        %vm628 = vcmp.le.s32.totalorder %v564, 16
        %vm629 = vcmp.le.s32.totalorder %v565, 16
        %vm630 = vcmp.le.s32.totalorder %v566, 16
        %vm631 = vcmp.le.s32.totalorder %v567, 16
        %vm632 = vcmp.le.s32.totalorder %v568, 16
        %vm633 = vcmp.le.s32.totalorder %v569, 16
        %vm634 = vcmp.le.s32.totalorder %v570, 16
        %vm635 = vcmp.le.s32.totalorder %v571, 16
        %vm636 = vcmp.le.s32.totalorder %v572, 16
        %vm637 = vcmp.le.s32.totalorder %v573, 16
        %vm638 = vcmp.le.s32.totalorder %v574, 16
        %vm639 = vcmp.le.s32.totalorder %v575, 16
        %vm640 = vcmp.le.s32.totalorder %v576, 16
        %vm641 = vcmp.le.s32.totalorder %v577, 16
        %vm642 = vcmp.le.s32.totalorder %v578, 16
        %vm643 = vcmp.le.s32.totalorder %v579, 16
        %vm644 = vcmp.le.s32.totalorder %v580, 16
        %vm645 = vcmp.le.s32.totalorder %v581, 16
        %vm646 = vcmp.le.s32.totalorder %v582, 16
        %vm647 = vcmp.le.s32.totalorder %v583, 16
        %vm648 = vcmp.le.s32.totalorder %v584, 16
        %vm649 = vcmp.le.s32.totalorder %v585, 16
        %vm650 = vcmp.le.s32.totalorder %v586, 16
        %vm651 = vmand %vm587, %vm619
        %vm652 = vmand %vm588, %vm620
        %vm653 = vmand %vm589, %vm621
        %vm654 = vmand %vm590, %vm622
        %vm655 = vmand %vm591, %vm623
        %vm656 = vmand %vm592, %vm624
        %vm657 = vmand %vm593, %vm625
        %vm658 = vmand %vm594, %vm626
        %vm659 = vmand %vm595, %vm627
        %vm660 = vmand %vm596, %vm628
        %vm661 = vmand %vm597, %vm629
        %vm662 = vmand %vm598, %vm630
        %vm663 = vmand %vm599, %vm631
        %vm664 = vmand %vm600, %vm632
        %vm665 = vmand %vm601, %vm633
        %vm666 = vmand %vm602, %vm634
        %vm667 = vmand %vm603, %vm635
        %vm668 = vmand %vm604, %vm636
        %vm669 = vmand %vm605, %vm637
        %vm670 = vmand %vm606, %vm638
        %vm671 = vmand %vm607, %vm639
        %vm672 = vmand %vm608, %vm640
        %vm673 = vmand %vm609, %vm641
        %vm674 = vmand %vm610, %vm642
        %vm675 = vmand %vm611, %vm643
        %vm676 = vmand %vm612, %vm644
        %vm677 = vmand %vm613, %vm645
        %vm678 = vmand %vm614, %vm646
        %vm679 = vmand %vm615, %vm647
        %vm680 = vmand %vm616, %vm648
        %vm681 = vmand %vm617, %vm649
        %vm682 = vmand %vm618, %vm650
        %v683 = vld [vmem:[%s168] sm:$0xff]
        %v684 = vld [vmem:[%s168 + $0x8] sm:$0xff]
        %v685 = vld [vmem:[%s168 + $0x10] sm:$0xff]
        %v686 = vld [vmem:[%s168 + $0x18] sm:$0xff]
        %v687 = vld [vmem:[%s168 + $0x20] sm:$0xff]
        %v688 = vld [vmem:[%s168 + $0x28] sm:$0xff]
        %v689 = vld [vmem:[%s168 + $0x30] sm:$0xff]
        %v690 = vld [vmem:[%s168 + $0x38] sm:$0xff]
        %v691 = vld [vmem:[%s168 + $0x40] sm:$0xff]
        %v692 = vld [vmem:[%s168 + $0x48] sm:$0xff]
        %v693 = vld [vmem:[%s168 + $0x50] sm:$0xff]
        %v694 = vld [vmem:[%s168 + $0x58] sm:$0xff]
        %v695 = vld [vmem:[%s168 + $0x60] sm:$0xff]
        %v696 = vld [vmem:[%s168 + $0x68] sm:$0xff]
        %v697 = vld [vmem:[%s168 + $0x70] sm:$0xff]
        %v698 = vld [vmem:[%s168 + $0x78] sm:$0xff]
        %v699 = vld [vmem:[%s168 + $0x80] sm:$0xff]
        %v700 = vld [vmem:[%s168 + $0x88] sm:$0xff]
        %v701 = vld [vmem:[%s168 + $0x90] sm:$0xff]
        %v702 = vld [vmem:[%s168 + $0x98] sm:$0xff]
        %v703 = vld [vmem:[%s168 + $0xa0] sm:$0xff]
        %v704 = vld [vmem:[%s168 + $0xa8] sm:$0xff]
        %v705 = vld [vmem:[%s168 + $0xb0] sm:$0xff]
        %v706 = vld [vmem:[%s168 + $0xb8] sm:$0xff]
        %v707 = vld [vmem:[%s168 + $0xc0] sm:$0xff]
        %v708 = vld [vmem:[%s168 + $0xc8] sm:$0xff]
        %v709 = vld [vmem:[%s168 + $0xd0] sm:$0xff]
        %v710 = vld [vmem:[%s168 + $0xd8] sm:$0xff]
        %v711 = vld [vmem:[%s168 + $0xe0] sm:$0xff]
        %v712 = vld [vmem:[%s168 + $0xe8] sm:$0xff]
        %v713 = vld [vmem:[%s168 + $0xf0] sm:$0xff]
        %v714 = vld [vmem:[%s168 + $0xf8] sm:$0xff]
        %v715 = vsel %vm651, 1, 0
        %v716 = vsel %vm652, 1, 0
        %v717 = vsel %vm653, 1, 0
        %v718 = vsel %vm654, 1, 0
        %v719 = vsel %vm655, 1, 0
        %v720 = vsel %vm656, 1, 0
        %v721 = vsel %vm657, 1, 0
        %v722 = vsel %vm658, 1, 0
        %v723 = vsel %vm659, 1, 0
        %v724 = vsel %vm660, 1, 0
        %v725 = vsel %vm661, 1, 0
        %v726 = vsel %vm662, 1, 0
        %v727 = vsel %vm663, 1, 0
        %v728 = vsel %vm664, 1, 0
        %v729 = vsel %vm665, 1, 0
        %v730 = vsel %vm666, 1, 0
        %v731 = vsel %vm667, 1, 0
        %v732 = vsel %vm668, 1, 0
        %v733 = vsel %vm669, 1, 0
        %v734 = vsel %vm670, 1, 0
        %v735 = vsel %vm671, 1, 0
        %v736 = vsel %vm672, 1, 0
        %v737 = vsel %vm673, 1, 0
        %v738 = vsel %vm674, 1, 0
        %v739 = vsel %vm675, 1, 0
        %v740 = vsel %vm676, 1, 0
        %v741 = vsel %vm677, 1, 0
        %v742 = vsel %vm678, 1, 0
        %v743 = vsel %vm679, 1, 0
        %v744 = vsel %vm680, 1, 0
        %v745 = vsel %vm681, 1, 0
        %v746 = vsel %vm682, 1, 0
        %vm747 = vcmp.eq.s32.totalorder %v715, 1
        %vm748 = vcmp.eq.s32.totalorder %v716, 1
        %vm749 = vcmp.eq.s32.totalorder %v717, 1
        %vm750 = vcmp.eq.s32.totalorder %v718, 1
        %vm751 = vcmp.eq.s32.totalorder %v719, 1
        %vm752 = vcmp.eq.s32.totalorder %v720, 1
        %vm753 = vcmp.eq.s32.totalorder %v721, 1
        %vm754 = vcmp.eq.s32.totalorder %v722, 1
        %vm755 = vcmp.eq.s32.totalorder %v723, 1
        %vm756 = vcmp.eq.s32.totalorder %v724, 1
        %vm757 = vcmp.eq.s32.totalorder %v725, 1
        %vm758 = vcmp.eq.s32.totalorder %v726, 1
        %vm759 = vcmp.eq.s32.totalorder %v727, 1
        %vm760 = vcmp.eq.s32.totalorder %v728, 1
        %vm761 = vcmp.eq.s32.totalorder %v729, 1
        %vm762 = vcmp.eq.s32.totalorder %v730, 1
        %vm763 = vcmp.eq.s32.totalorder %v731, 1
        %vm764 = vcmp.eq.s32.totalorder %v732, 1
        %vm765 = vcmp.eq.s32.totalorder %v733, 1
        %vm766 = vcmp.eq.s32.totalorder %v734, 1
        %vm767 = vcmp.eq.s32.totalorder %v735, 1
        %vm768 = vcmp.eq.s32.totalorder %v736, 1
        %vm769 = vcmp.eq.s32.totalorder %v737, 1
        %vm770 = vcmp.eq.s32.totalorder %v738, 1
        %vm771 = vcmp.eq.s32.totalorder %v739, 1
        %vm772 = vcmp.eq.s32.totalorder %v740, 1
        %vm773 = vcmp.eq.s32.totalorder %v741, 1
        %vm774 = vcmp.eq.s32.totalorder %v742, 1
        %vm775 = vcmp.eq.s32.totalorder %v743, 1
        %vm776 = vcmp.eq.s32.totalorder %v744, 1
        %vm777 = vcmp.eq.s32.totalorder %v745, 1
        %vm778 = vcmp.eq.s32.totalorder %v746, 1
        %v779 = vsel %vm747, %v683, 0.0
        %v780 = vsel %vm748, %v684, 0.0
        %v781 = vsel %vm749, %v685, 0.0
        %v782 = vsel %vm750, %v686, 0.0
        %v783 = vsel %vm751, %v687, 0.0
        %v784 = vsel %vm752, %v688, 0.0
        %v785 = vsel %vm753, %v689, 0.0
        %v786 = vsel %vm754, %v690, 0.0
        %v787 = vsel %vm755, %v691, 0.0
        %v788 = vsel %vm756, %v692, 0.0
        %v789 = vsel %vm757, %v693, 0.0
        %v790 = vsel %vm758, %v694, 0.0
        %v791 = vsel %vm759, %v695, 0.0
        %v792 = vsel %vm760, %v696, 0.0
        %v793 = vsel %vm761, %v697, 0.0
        %v794 = vsel %vm762, %v698, 0.0
        %v795 = vsel %vm763, %v699, 0.0
        %v796 = vsel %vm764, %v700, 0.0
        %v797 = vsel %vm765, %v701, 0.0
        %v798 = vsel %vm766, %v702, 0.0
        %v799 = vsel %vm767, %v703, 0.0
        %v800 = vsel %vm768, %v704, 0.0
        %v801 = vsel %vm769, %v705, 0.0
        %v802 = vsel %vm770, %v706, 0.0
        %v803 = vsel %vm771, %v707, 0.0
        %v804 = vsel %vm772, %v708, 0.0
        %v805 = vsel %vm773, %v709, 0.0
        %v806 = vsel %vm774, %v710, 0.0
        %v807 = vsel %vm775, %v711, 0.0
        %v808 = vsel %vm776, %v712, 0.0
        %v809 = vsel %vm777, %v713, 0.0
        %v810 = vsel %vm778, %v714, 0.0
        %v811 = vld [vmem:[%s1] sm:$0xf]
        %v812 = vld [vmem:[%s168 + $0x100] sm:$0xff]
        %v813 = vld [vmem:[%s168 + $0x108] sm:$0xff]
        %v814 = vsel %vm747, %v685, 0.0
        %v815 = vsel %vm748, %v686, 0.0
        %v816 = vsel %vm749, %v687, 0.0
        %v817 = vsel %vm750, %v688, 0.0
        %v818 = vsel %vm751, %v689, 0.0
        %v819 = vsel %vm752, %v690, 0.0
        %v820 = vsel %vm753, %v691, 0.0
        %v821 = vsel %vm754, %v692, 0.0
        %v822 = vsel %vm755, %v693, 0.0
        %v823 = vsel %vm756, %v694, 0.0
        %v824 = vsel %vm757, %v695, 0.0
        %v825 = vsel %vm758, %v696, 0.0
        %v826 = vsel %vm759, %v697, 0.0
        %v827 = vsel %vm760, %v698, 0.0
        %v828 = vsel %vm761, %v699, 0.0
        %v829 = vsel %vm762, %v700, 0.0
        %v830 = vsel %vm763, %v701, 0.0
        %v831 = vsel %vm764, %v702, 0.0
        %v832 = vsel %vm765, %v703, 0.0
        %v833 = vsel %vm766, %v704, 0.0
        %v834 = vsel %vm767, %v705, 0.0
        %v835 = vsel %vm768, %v706, 0.0
        %v836 = vsel %vm769, %v707, 0.0
        %v837 = vsel %vm770, %v708, 0.0
        %v838 = vsel %vm771, %v709, 0.0
        %v839 = vsel %vm772, %v710, 0.0
        %v840 = vsel %vm773, %v711, 0.0
        %v841 = vsel %vm774, %v712, 0.0
        %v842 = vsel %vm775, %v713, 0.0
        %v843 = vsel %vm776, %v714, 0.0
        %v844 = vsel %vm777, %v812, 0.0
        %v845 = vsel %vm778, %v813, 0.0
        %s846 = scalar_lea.vmem %s1, 12
        %v847 = vld [vmem:[%s846] sm:$0xf]
        %vm848 = vcmask 31744
        %v850 = vsel %vm848, %v814, 0
        %v853 = vsel %vm848, %v815, 0
        %v856 = vsel %vm848, %v816, 0
        %v859 = vsel %vm848, %v817, 0
        %v862 = vsel %vm848, %v818, 0
        %v865 = vsel %vm848, %v819, 0
        %v868 = vsel %vm848, %v820, 0
        %v871 = vsel %vm848, %v821, 0
        %v874 = vsel %vm848, %v822, 0
        %v877 = vsel %vm848, %v823, 0
        %v880 = vsel %vm848, %v824, 0
        %v883 = vsel %vm848, %v825, 0
        %v886 = vsel %vm848, %v826, 0
        %v889 = vsel %vm848, %v827, 0
        %v892 = vsel %vm848, %v828, 0
        %v895 = vsel %vm848, %v829, 0
        %v898 = vsel %vm848, %v830, 0
        %v901 = vsel %vm848, %v831, 0
        %v904 = vsel %vm848, %v832, 0
        %v907 = vsel %vm848, %v833, 0
        %v910 = vsel %vm848, %v834, 0
        %v913 = vsel %vm848, %v835, 0
        %v916 = vsel %vm848, %v836, 0
        %v919 = vsel %vm848, %v837, 0
        %v922 = vsel %vm848, %v838, 0
        %v925 = vsel %vm848, %v839, 0
        %v928 = vsel %vm848, %v840, 0
        %v931 = vsel %vm848, %v841, 0
        %v934 = vsel %vm848, %v842, 0
        %v937 = vsel %vm848, %v843, 0
        %v940 = vsel %vm848, %v844, 0
        %v943 = vsel %vm848, %v845, 0
        %vm945 = vcmask 1043456
        %v947 = vsel %vm945, %v847, 0
        %949 = vmatpush.msra.mxu0 0.0
        %950 = vmatpush.msra.mxu0 0.0
        %951 = vmatpush.msra.mxu0 0.0
        %952 = vmatpush.msra.mxu0 0.0
        %953 = vmatpush.msra.mxu0 0.0
        %954 = vmatpush.msra.mxu0 0.0
        %955 = vmatpush.msra.mxu0 0.0
        %956 = vmatpush.msra.mxu0 0.0
        %957 = vmatpush.msra.mxu0 0.0
        %958 = vmatpush.msra.mxu0 0.0
        %959 = vmatpush.msra.mxu0 0.0
        %960 = vmatpush.msra.mxu0 0.0
        %961 = vmatpush.msra.mxu0 0.0
        %962 = vmatpush.msra.mxu0 0.0
        %963 = vmatpush.msra.mxu0 0.0
        %964 = vmatpush.msra.mxu0 %v947
        %965 = vmatmul.f32.gmra.mxu0 %v850
        %v966 = vpop.f32.mrf.mxu0
        %v967 = vadd.f32 0.0, %v966
        %968 = vmatmul.f32.gmra.mxu0 %v853
        %v969 = vpop.f32.mrf.mxu0
        %v970 = vadd.f32 0.0, %v969
        %971 = vmatmul.f32.gmra.mxu0 %v856
        %v972 = vpop.f32.mrf.mxu0
        %v973 = vadd.f32 0.0, %v972
        %974 = vmatmul.f32.gmra.mxu0 %v859
        %v975 = vpop.f32.mrf.mxu0
        %v976 = vadd.f32 0.0, %v975
        %977 = vmatmul.f32.gmra.mxu0 %v862
        %v978 = vpop.f32.mrf.mxu0
        %v979 = vadd.f32 0.0, %v978
        %980 = vmatmul.f32.gmra.mxu0 %v865
        %v981 = vpop.f32.mrf.mxu0
        %v982 = vadd.f32 0.0, %v981
        %983 = vmatmul.f32.gmra.mxu0 %v868
        %v984 = vpop.f32.mrf.mxu0
        %v985 = vadd.f32 0.0, %v984
        %986 = vmatmul.f32.gmra.mxu0 %v871
        %v987 = vpop.f32.mrf.mxu0
        %v988 = vadd.f32 0.0, %v987
        %989 = vmatmul.f32.gmra.mxu0 %v874
        %v990 = vpop.f32.mrf.mxu0
        %v991 = vadd.f32 0.0, %v990
        %992 = vmatmul.f32.gmra.mxu0 %v877
        %v993 = vpop.f32.mrf.mxu0
        %v994 = vadd.f32 0.0, %v993
        %995 = vmatmul.f32.gmra.mxu0 %v880
        %v996 = vpop.f32.mrf.mxu0
        %v997 = vadd.f32 0.0, %v996
        %998 = vmatmul.f32.gmra.mxu0 %v883
        %v999 = vpop.f32.mrf.mxu0
        %v1000 = vadd.f32 0.0, %v999
        %1001 = vmatmul.f32.gmra.mxu0 %v886
        %v1002 = vpop.f32.mrf.mxu0
        %v1003 = vadd.f32 0.0, %v1002
        %1004 = vmatmul.f32.gmra.mxu0 %v889
        %v1005 = vpop.f32.mrf.mxu0
        %v1006 = vadd.f32 0.0, %v1005
        %1007 = vmatmul.f32.gmra.mxu0 %v892
        %v1008 = vpop.f32.mrf.mxu0
        %v1009 = vadd.f32 0.0, %v1008
        %1010 = vmatmul.f32.gmra.mxu0 %v895
        %v1011 = vpop.f32.mrf.mxu0
        %v1012 = vadd.f32 0.0, %v1011
        %1013 = vmatmul.f32.gmra.mxu0 %v898
        %v1014 = vpop.f32.mrf.mxu0
        %v1015 = vadd.f32 0.0, %v1014
        %1016 = vmatmul.f32.gmra.mxu0 %v901
        %v1017 = vpop.f32.mrf.mxu0
        %v1018 = vadd.f32 0.0, %v1017
        %1019 = vmatmul.f32.gmra.mxu0 %v904
        %v1020 = vpop.f32.mrf.mxu0
        %v1021 = vadd.f32 0.0, %v1020
        %1022 = vmatmul.f32.gmra.mxu0 %v907
        %v1023 = vpop.f32.mrf.mxu0
        %v1024 = vadd.f32 0.0, %v1023
        %1025 = vmatmul.f32.gmra.mxu0 %v910
        %v1026 = vpop.f32.mrf.mxu0
        %v1027 = vadd.f32 0.0, %v1026
        %1028 = vmatmul.f32.gmra.mxu0 %v913
        %v1029 = vpop.f32.mrf.mxu0
        %v1030 = vadd.f32 0.0, %v1029
        %1031 = vmatmul.f32.gmra.mxu0 %v916
        %v1032 = vpop.f32.mrf.mxu0
        %v1033 = vadd.f32 0.0, %v1032
        %1034 = vmatmul.f32.gmra.mxu0 %v919
        %v1035 = vpop.f32.mrf.mxu0
        %v1036 = vadd.f32 0.0, %v1035
        %1037 = vmatmul.f32.gmra.mxu0 %v922
        %v1038 = vpop.f32.mrf.mxu0
        %v1039 = vadd.f32 0.0, %v1038
        %1040 = vmatmul.f32.gmra.mxu0 %v925
        %v1041 = vpop.f32.mrf.mxu0
        %v1042 = vadd.f32 0.0, %v1041
        %1043 = vmatmul.f32.gmra.mxu0 %v928
        %v1044 = vpop.f32.mrf.mxu0
        %v1045 = vadd.f32 0.0, %v1044
        %1046 = vmatmul.f32.gmra.mxu0 %v931
        %v1047 = vpop.f32.mrf.mxu0
        %v1048 = vadd.f32 0.0, %v1047
        %1049 = vmatmul.f32.gmra.mxu0 %v934
        %v1050 = vpop.f32.mrf.mxu0
        %v1051 = vadd.f32 0.0, %v1050
        %1052 = vmatmul.f32.gmra.mxu0 %v937
        %v1053 = vpop.f32.mrf.mxu0
        %v1054 = vadd.f32 0.0, %v1053
        %1055 = vmatmul.f32.gmra.mxu0 %v940
        %v1056 = vpop.f32.mrf.mxu0
        %v1057 = vadd.f32 0.0, %v1056
        %1058 = vmatmul.f32.gmra.mxu0 %v943
        %v1059 = vpop.f32.mrf.mxu0
        %v1060 = vadd.f32 0.0, %v1059
        %1061 = vdwg.mxu0
        %v1063 = vsel %vm848, %v779, 0
        %v1066 = vsel %vm848, %v780, 0
        %v1069 = vsel %vm848, %v781, 0
        %v1072 = vsel %vm848, %v782, 0
        %v1075 = vsel %vm848, %v783, 0
        %v1078 = vsel %vm848, %v784, 0
        %v1081 = vsel %vm848, %v785, 0
        %v1084 = vsel %vm848, %v786, 0
        %v1087 = vsel %vm848, %v787, 0
        %v1090 = vsel %vm848, %v788, 0
        %v1093 = vsel %vm848, %v789, 0
        %v1096 = vsel %vm848, %v790, 0
        %v1099 = vsel %vm848, %v791, 0
        %v1102 = vsel %vm848, %v792, 0
        %v1105 = vsel %vm848, %v793, 0
        %v1108 = vsel %vm848, %v794, 0
        %v1111 = vsel %vm848, %v795, 0
        %v1114 = vsel %vm848, %v796, 0
        %v1117 = vsel %vm848, %v797, 0
        %v1120 = vsel %vm848, %v798, 0
        %v1123 = vsel %vm848, %v799, 0
        %v1126 = vsel %vm848, %v800, 0
        %v1129 = vsel %vm848, %v801, 0
        %v1132 = vsel %vm848, %v802, 0
        %v1135 = vsel %vm848, %v803, 0
        %v1138 = vsel %vm848, %v804, 0
        %v1141 = vsel %vm848, %v805, 0
        %v1144 = vsel %vm848, %v806, 0
        %v1147 = vsel %vm848, %v807, 0
        %v1150 = vsel %vm848, %v808, 0
        %v1153 = vsel %vm848, %v809, 0
        %v1156 = vsel %vm848, %v810, 0
        %v1159 = vsel %vm945, %v811, 0
        %1161 = vmatpush.msra.mxu0 0.0
        %1162 = vmatpush.msra.mxu0 0.0
        %1163 = vmatpush.msra.mxu0 0.0
        %1164 = vmatpush.msra.mxu0 0.0
        %1165 = vmatpush.msra.mxu0 0.0
        %1166 = vmatpush.msra.mxu0 0.0
        %1167 = vmatpush.msra.mxu0 0.0
        %1168 = vmatpush.msra.mxu0 0.0
        %1169 = vmatpush.msra.mxu0 0.0
        %1170 = vmatpush.msra.mxu0 0.0
        %1171 = vmatpush.msra.mxu0 0.0
        %1172 = vmatpush.msra.mxu0 0.0
        %1173 = vmatpush.msra.mxu0 0.0
        %1174 = vmatpush.msra.mxu0 0.0
        %1175 = vmatpush.msra.mxu0 0.0
        %1176 = vmatpush.msra.mxu0 %v1159
        %1177 = vmatmul.f32.gmra.mxu0 %v1063
        %v1178 = vpop.f32.mrf.mxu0
        %v1179 = vadd.f32 %v967, %v1178
        %1180 = vmatmul.f32.gmra.mxu0 %v1066
        %v1181 = vpop.f32.mrf.mxu0
        %v1182 = vadd.f32 %v970, %v1181
        %1183 = vmatmul.f32.gmra.mxu0 %v1069
        %v1184 = vpop.f32.mrf.mxu0
        %v1185 = vadd.f32 %v973, %v1184
        %1186 = vmatmul.f32.gmra.mxu0 %v1072
        %v1187 = vpop.f32.mrf.mxu0
        %v1188 = vadd.f32 %v976, %v1187
        %1189 = vmatmul.f32.gmra.mxu0 %v1075
        %v1190 = vpop.f32.mrf.mxu0
        %v1191 = vadd.f32 %v979, %v1190
        %1192 = vmatmul.f32.gmra.mxu0 %v1078
        %v1193 = vpop.f32.mrf.mxu0
        %v1194 = vadd.f32 %v982, %v1193
        %1195 = vmatmul.f32.gmra.mxu0 %v1081
        %v1196 = vpop.f32.mrf.mxu0
        %v1197 = vadd.f32 %v985, %v1196
        %1198 = vmatmul.f32.gmra.mxu0 %v1084
        %v1199 = vpop.f32.mrf.mxu0
        %v1200 = vadd.f32 %v988, %v1199
        %1201 = vmatmul.f32.gmra.mxu0 %v1087
        %v1202 = vpop.f32.mrf.mxu0
        %v1203 = vadd.f32 %v991, %v1202
        %1204 = vmatmul.f32.gmra.mxu0 %v1090
        %v1205 = vpop.f32.mrf.mxu0
        %v1206 = vadd.f32 %v994, %v1205
        %1207 = vmatmul.f32.gmra.mxu0 %v1093
        %v1208 = vpop.f32.mrf.mxu0
        %v1209 = vadd.f32 %v997, %v1208
        %1210 = vmatmul.f32.gmra.mxu0 %v1096
        %v1211 = vpop.f32.mrf.mxu0
        %v1212 = vadd.f32 %v1000, %v1211
        %1213 = vmatmul.f32.gmra.mxu0 %v1099
        %v1214 = vpop.f32.mrf.mxu0
        %v1215 = vadd.f32 %v1003, %v1214
        %1216 = vmatmul.f32.gmra.mxu0 %v1102
        %v1217 = vpop.f32.mrf.mxu0
        %v1218 = vadd.f32 %v1006, %v1217
        %1219 = vmatmul.f32.gmra.mxu0 %v1105
        %v1220 = vpop.f32.mrf.mxu0
        %v1221 = vadd.f32 %v1009, %v1220
        %1222 = vmatmul.f32.gmra.mxu0 %v1108
        %v1223 = vpop.f32.mrf.mxu0
        %v1224 = vadd.f32 %v1012, %v1223
        %1225 = vmatmul.f32.gmra.mxu0 %v1111
        %v1226 = vpop.f32.mrf.mxu0
        %v1227 = vadd.f32 %v1015, %v1226
        %1228 = vmatmul.f32.gmra.mxu0 %v1114
        %v1229 = vpop.f32.mrf.mxu0
        %v1230 = vadd.f32 %v1018, %v1229
        %1231 = vmatmul.f32.gmra.mxu0 %v1117
        %v1232 = vpop.f32.mrf.mxu0
        %v1233 = vadd.f32 %v1021, %v1232
        %1234 = vmatmul.f32.gmra.mxu0 %v1120
        %v1235 = vpop.f32.mrf.mxu0
        %v1236 = vadd.f32 %v1024, %v1235
        %1237 = vmatmul.f32.gmra.mxu0 %v1123
        %v1238 = vpop.f32.mrf.mxu0
        %v1239 = vadd.f32 %v1027, %v1238
        %1240 = vmatmul.f32.gmra.mxu0 %v1126
        %v1241 = vpop.f32.mrf.mxu0
        %v1242 = vadd.f32 %v1030, %v1241
        %1243 = vmatmul.f32.gmra.mxu0 %v1129
        %v1244 = vpop.f32.mrf.mxu0
        %v1245 = vadd.f32 %v1033, %v1244
        %1246 = vmatmul.f32.gmra.mxu0 %v1132
        %v1247 = vpop.f32.mrf.mxu0
        %v1248 = vadd.f32 %v1036, %v1247
        %1249 = vmatmul.f32.gmra.mxu0 %v1135
        %v1250 = vpop.f32.mrf.mxu0
        %v1251 = vadd.f32 %v1039, %v1250
        %1252 = vmatmul.f32.gmra.mxu0 %v1138
        %v1253 = vpop.f32.mrf.mxu0
        %v1254 = vadd.f32 %v1042, %v1253
        %1255 = vmatmul.f32.gmra.mxu0 %v1141
        %v1256 = vpop.f32.mrf.mxu0
        %v1257 = vadd.f32 %v1045, %v1256
        %1258 = vmatmul.f32.gmra.mxu0 %v1144
        %v1259 = vpop.f32.mrf.mxu0
        %v1260 = vadd.f32 %v1048, %v1259
        %1261 = vmatmul.f32.gmra.mxu0 %v1147
        %v1262 = vpop.f32.mrf.mxu0
        %v1263 = vadd.f32 %v1051, %v1262
        %1264 = vmatmul.f32.gmra.mxu0 %v1150
        %v1265 = vpop.f32.mrf.mxu0
        %v1266 = vadd.f32 %v1054, %v1265
        %1267 = vmatmul.f32.gmra.mxu0 %v1153
        %v1268 = vpop.f32.mrf.mxu0
        %v1269 = vadd.f32 %v1057, %v1268
        %1270 = vmatmul.f32.gmra.mxu0 %v1156
        %v1271 = vpop.f32.mrf.mxu0
        %v1272 = vadd.f32 %v1060, %v1271
        %1273 = vdwg.mxu0
        %v1274 = vld [vmem:[%s168 + $0x20] sm:$0xff]
        %v1275 = vld [vmem:[%s168 + $0x28] sm:$0xff]
        %v1276 = vld [vmem:[%s168 + $0x30] sm:$0xff]
        %v1277 = vld [vmem:[%s168 + $0x38] sm:$0xff]
        %v1278 = vld [vmem:[%s168 + $0x40] sm:$0xff]
        %v1279 = vld [vmem:[%s168 + $0x48] sm:$0xff]
        %v1280 = vld [vmem:[%s168 + $0x50] sm:$0xff]
        %v1281 = vld [vmem:[%s168 + $0x58] sm:$0xff]
        %v1282 = vld [vmem:[%s168 + $0x60] sm:$0xff]
        %v1283 = vld [vmem:[%s168 + $0x68] sm:$0xff]
        %v1284 = vld [vmem:[%s168 + $0x70] sm:$0xff]
        %v1285 = vld [vmem:[%s168 + $0x78] sm:$0xff]
        %v1286 = vld [vmem:[%s168 + $0x80] sm:$0xff]
        %v1287 = vld [vmem:[%s168 + $0x88] sm:$0xff]
        %v1288 = vld [vmem:[%s168 + $0x90] sm:$0xff]
        %v1289 = vld [vmem:[%s168 + $0x98] sm:$0xff]
        %v1290 = vld [vmem:[%s168 + $0xa0] sm:$0xff]
        %v1291 = vld [vmem:[%s168 + $0xa8] sm:$0xff]
        %v1292 = vld [vmem:[%s168 + $0xb0] sm:$0xff]
        %v1293 = vld [vmem:[%s168 + $0xb8] sm:$0xff]
        %v1294 = vld [vmem:[%s168 + $0xc0] sm:$0xff]
        %v1295 = vld [vmem:[%s168 + $0xc8] sm:$0xff]
        %v1296 = vld [vmem:[%s168 + $0xd0] sm:$0xff]
        %v1297 = vld [vmem:[%s168 + $0xd8] sm:$0xff]
        %v1298 = vld [vmem:[%s168 + $0xe0] sm:$0xff]
        %v1299 = vld [vmem:[%s168 + $0xe8] sm:$0xff]
        %v1300 = vld [vmem:[%s168 + $0xf0] sm:$0xff]
        %v1301 = vld [vmem:[%s168 + $0xf8] sm:$0xff]
        %v1302 = vld [vmem:[%s168 + $0x100] sm:$0xff]
        %v1303 = vld [vmem:[%s168 + $0x108] sm:$0xff]
        %v1304 = vld [vmem:[%s168 + $0x110] sm:$0xff]
        %v1305 = vld [vmem:[%s168 + $0x118] sm:$0xff]
        %v1306 = vsel %vm747, %v1274, 0.0
        %v1307 = vsel %vm748, %v1275, 0.0
        %v1308 = vsel %vm749, %v1276, 0.0
        %v1309 = vsel %vm750, %v1277, 0.0
        %v1310 = vsel %vm751, %v1278, 0.0
        %v1311 = vsel %vm752, %v1279, 0.0
        %v1312 = vsel %vm753, %v1280, 0.0
        %v1313 = vsel %vm754, %v1281, 0.0
        %v1314 = vsel %vm755, %v1282, 0.0
        %v1315 = vsel %vm756, %v1283, 0.0
        %v1316 = vsel %vm757, %v1284, 0.0
        %v1317 = vsel %vm758, %v1285, 0.0
        %v1318 = vsel %vm759, %v1286, 0.0
        %v1319 = vsel %vm760, %v1287, 0.0
        %v1320 = vsel %vm761, %v1288, 0.0
        %v1321 = vsel %vm762, %v1289, 0.0
        %v1322 = vsel %vm763, %v1290, 0.0
        %v1323 = vsel %vm764, %v1291, 0.0
        %v1324 = vsel %vm765, %v1292, 0.0
        %v1325 = vsel %vm766, %v1293, 0.0
        %v1326 = vsel %vm767, %v1294, 0.0
        %v1327 = vsel %vm768, %v1295, 0.0
        %v1328 = vsel %vm769, %v1296, 0.0
        %v1329 = vsel %vm770, %v1297, 0.0
        %v1330 = vsel %vm771, %v1298, 0.0
        %v1331 = vsel %vm772, %v1299, 0.0
        %v1332 = vsel %vm773, %v1300, 0.0
        %v1333 = vsel %vm774, %v1301, 0.0
        %v1334 = vsel %vm775, %v1302, 0.0
        %v1335 = vsel %vm776, %v1303, 0.0
        %v1336 = vsel %vm777, %v1304, 0.0
        %v1337 = vsel %vm778, %v1305, 0.0
        %s1338 = scalar_lea.vmem %s1, 24
        %v1339 = vld [vmem:[%s1338] sm:$0xf]
        %v1341 = vsel %vm848, %v1306, 0
        %v1344 = vsel %vm848, %v1307, 0
        %v1347 = vsel %vm848, %v1308, 0
        %v1350 = vsel %vm848, %v1309, 0
        %v1353 = vsel %vm848, %v1310, 0
        %v1356 = vsel %vm848, %v1311, 0
        %v1359 = vsel %vm848, %v1312, 0
        %v1362 = vsel %vm848, %v1313, 0
        %v1365 = vsel %vm848, %v1314, 0
        %v1368 = vsel %vm848, %v1315, 0
        %v1371 = vsel %vm848, %v1316, 0
        %v1374 = vsel %vm848, %v1317, 0
        %v1377 = vsel %vm848, %v1318, 0
        %v1380 = vsel %vm848, %v1319, 0
        %v1383 = vsel %vm848, %v1320, 0
        %v1386 = vsel %vm848, %v1321, 0
        %v1389 = vsel %vm848, %v1322, 0
        %v1392 = vsel %vm848, %v1323, 0
        %v1395 = vsel %vm848, %v1324, 0
        %v1398 = vsel %vm848, %v1325, 0
        %v1401 = vsel %vm848, %v1326, 0
        %v1404 = vsel %vm848, %v1327, 0
        %v1407 = vsel %vm848, %v1328, 0
        %v1410 = vsel %vm848, %v1329, 0
        %v1413 = vsel %vm848, %v1330, 0
        %v1416 = vsel %vm848, %v1331, 0
        %v1419 = vsel %vm848, %v1332, 0
        %v1422 = vsel %vm848, %v1333, 0
        %v1425 = vsel %vm848, %v1334, 0
        %v1428 = vsel %vm848, %v1335, 0
        %v1431 = vsel %vm848, %v1336, 0
        %v1434 = vsel %vm848, %v1337, 0
        %v1437 = vsel %vm945, %v1339, 0
        %1439 = vmatpush.msra.mxu0 0.0
        %1440 = vmatpush.msra.mxu0 0.0
        %1441 = vmatpush.msra.mxu0 0.0
        %1442 = vmatpush.msra.mxu0 0.0
        %1443 = vmatpush.msra.mxu0 0.0
        %1444 = vmatpush.msra.mxu0 0.0
        %1445 = vmatpush.msra.mxu0 0.0
        %1446 = vmatpush.msra.mxu0 0.0
        %1447 = vmatpush.msra.mxu0 0.0
        %1448 = vmatpush.msra.mxu0 0.0
        %1449 = vmatpush.msra.mxu0 0.0
        %1450 = vmatpush.msra.mxu0 0.0
        %1451 = vmatpush.msra.mxu0 0.0
        %1452 = vmatpush.msra.mxu0 0.0
        %1453 = vmatpush.msra.mxu0 0.0
        %1454 = vmatpush.msra.mxu0 %v1437
        %1455 = vmatmul.f32.gmra.mxu0 %v1341
        %v1456 = vpop.f32.mrf.mxu0
        %v1457 = vadd.f32 0.0, %v1456
        %1458 = vmatmul.f32.gmra.mxu0 %v1344
        %v1459 = vpop.f32.mrf.mxu0
        %v1460 = vadd.f32 0.0, %v1459
        %1461 = vmatmul.f32.gmra.mxu0 %v1347
        %v1462 = vpop.f32.mrf.mxu0
        %v1463 = vadd.f32 0.0, %v1462
        %1464 = vmatmul.f32.gmra.mxu0 %v1350
        %v1465 = vpop.f32.mrf.mxu0
        %v1466 = vadd.f32 0.0, %v1465
        %1467 = vmatmul.f32.gmra.mxu0 %v1353
        %v1468 = vpop.f32.mrf.mxu0
        %v1469 = vadd.f32 0.0, %v1468
        %1470 = vmatmul.f32.gmra.mxu0 %v1356
        %v1471 = vpop.f32.mrf.mxu0
        %v1472 = vadd.f32 0.0, %v1471
        %1473 = vmatmul.f32.gmra.mxu0 %v1359
        %v1474 = vpop.f32.mrf.mxu0
        %v1475 = vadd.f32 0.0, %v1474
        %1476 = vmatmul.f32.gmra.mxu0 %v1362
        %v1477 = vpop.f32.mrf.mxu0
        %v1478 = vadd.f32 0.0, %v1477
        %1479 = vmatmul.f32.gmra.mxu0 %v1365
        %v1480 = vpop.f32.mrf.mxu0
        %v1481 = vadd.f32 0.0, %v1480
        %1482 = vmatmul.f32.gmra.mxu0 %v1368
        %v1483 = vpop.f32.mrf.mxu0
        %v1484 = vadd.f32 0.0, %v1483
        %1485 = vmatmul.f32.gmra.mxu0 %v1371
        %v1486 = vpop.f32.mrf.mxu0
        %v1487 = vadd.f32 0.0, %v1486
        %1488 = vmatmul.f32.gmra.mxu0 %v1374
        %v1489 = vpop.f32.mrf.mxu0
        %v1490 = vadd.f32 0.0, %v1489
        %1491 = vmatmul.f32.gmra.mxu0 %v1377
        %v1492 = vpop.f32.mrf.mxu0
        %v1493 = vadd.f32 0.0, %v1492
        %1494 = vmatmul.f32.gmra.mxu0 %v1380
        %v1495 = vpop.f32.mrf.mxu0
        %v1496 = vadd.f32 0.0, %v1495
        %1497 = vmatmul.f32.gmra.mxu0 %v1383
        %v1498 = vpop.f32.mrf.mxu0
        %v1499 = vadd.f32 0.0, %v1498
        %1500 = vmatmul.f32.gmra.mxu0 %v1386
        %v1501 = vpop.f32.mrf.mxu0
        %v1502 = vadd.f32 0.0, %v1501
        %1503 = vmatmul.f32.gmra.mxu0 %v1389
        %v1504 = vpop.f32.mrf.mxu0
        %v1505 = vadd.f32 0.0, %v1504
        %1506 = vmatmul.f32.gmra.mxu0 %v1392
        %v1507 = vpop.f32.mrf.mxu0
        %v1508 = vadd.f32 0.0, %v1507
        %1509 = vmatmul.f32.gmra.mxu0 %v1395
        %v1510 = vpop.f32.mrf.mxu0
        %v1511 = vadd.f32 0.0, %v1510
        %1512 = vmatmul.f32.gmra.mxu0 %v1398
        %v1513 = vpop.f32.mrf.mxu0
        %v1514 = vadd.f32 0.0, %v1513
        %1515 = vmatmul.f32.gmra.mxu0 %v1401
        %v1516 = vpop.f32.mrf.mxu0
        %v1517 = vadd.f32 0.0, %v1516
        %1518 = vmatmul.f32.gmra.mxu0 %v1404
        %v1519 = vpop.f32.mrf.mxu0
        %v1520 = vadd.f32 0.0, %v1519
        %1521 = vmatmul.f32.gmra.mxu0 %v1407
        %v1522 = vpop.f32.mrf.mxu0
        %v1523 = vadd.f32 0.0, %v1522
        %1524 = vmatmul.f32.gmra.mxu0 %v1410
        %v1525 = vpop.f32.mrf.mxu0
        %v1526 = vadd.f32 0.0, %v1525
        %1527 = vmatmul.f32.gmra.mxu0 %v1413
        %v1528 = vpop.f32.mrf.mxu0
        %v1529 = vadd.f32 0.0, %v1528
        %1530 = vmatmul.f32.gmra.mxu0 %v1416
        %v1531 = vpop.f32.mrf.mxu0
        %v1532 = vadd.f32 0.0, %v1531
        %1533 = vmatmul.f32.gmra.mxu0 %v1419
        %v1534 = vpop.f32.mrf.mxu0
        %v1535 = vadd.f32 0.0, %v1534
        %1536 = vmatmul.f32.gmra.mxu0 %v1422
        %v1537 = vpop.f32.mrf.mxu0
        %v1538 = vadd.f32 0.0, %v1537
        %1539 = vmatmul.f32.gmra.mxu0 %v1425
        %v1540 = vpop.f32.mrf.mxu0
        %v1541 = vadd.f32 0.0, %v1540
        %1542 = vmatmul.f32.gmra.mxu0 %v1428
        %v1543 = vpop.f32.mrf.mxu0
        %v1544 = vadd.f32 0.0, %v1543
        %1545 = vmatmul.f32.gmra.mxu0 %v1431
        %v1546 = vpop.f32.mrf.mxu0
        %v1547 = vadd.f32 0.0, %v1546
        %1548 = vmatmul.f32.gmra.mxu0 %v1434
        %v1549 = vpop.f32.mrf.mxu0
        %v1550 = vadd.f32 0.0, %v1549
        %1551 = vdwg.mxu0
        %v1552 = vadd.f32 %v1179, %v1457
        %v1553 = vadd.f32 %v1182, %v1460
        %v1554 = vadd.f32 %v1185, %v1463
        %v1555 = vadd.f32 %v1188, %v1466
        %v1556 = vadd.f32 %v1191, %v1469
        %v1557 = vadd.f32 %v1194, %v1472
        %v1558 = vadd.f32 %v1197, %v1475
        %v1559 = vadd.f32 %v1200, %v1478
        %v1560 = vadd.f32 %v1203, %v1481
        %v1561 = vadd.f32 %v1206, %v1484
        %v1562 = vadd.f32 %v1209, %v1487
        %v1563 = vadd.f32 %v1212, %v1490
        %v1564 = vadd.f32 %v1215, %v1493
        %v1565 = vadd.f32 %v1218, %v1496
        %v1566 = vadd.f32 %v1221, %v1499
        %v1567 = vadd.f32 %v1224, %v1502
        %v1568 = vadd.f32 %v1227, %v1505
        %v1569 = vadd.f32 %v1230, %v1508
        %v1570 = vadd.f32 %v1233, %v1511
        %v1571 = vadd.f32 %v1236, %v1514
        %v1572 = vadd.f32 %v1239, %v1517
        %v1573 = vadd.f32 %v1242, %v1520
        %v1574 = vadd.f32 %v1245, %v1523
        %v1575 = vadd.f32 %v1248, %v1526
        %v1576 = vadd.f32 %v1251, %v1529
        %v1577 = vadd.f32 %v1254, %v1532
        %v1578 = vadd.f32 %v1257, %v1535
        %v1579 = vadd.f32 %v1260, %v1538
        %v1580 = vadd.f32 %v1263, %v1541
        %v1581 = vadd.f32 %v1266, %v1544
        %v1582 = vadd.f32 %v1269, %v1547
        %v1583 = vadd.f32 %v1272, %v1550
        %v1584 = vld [vmem:[%s168 + $0x1] sm:$0xff]
        %v1585 = vld [vmem:[%s168 + $0x9] sm:$0xff]
        %v1586 = vld [vmem:[%s168 + $0x11] sm:$0xff]
        %v1587 = vld [vmem:[%s168 + $0x19] sm:$0xff]
        %v1588 = vld [vmem:[%s168 + $0x21] sm:$0xff]
        %v1589 = vld [vmem:[%s168 + $0x29] sm:$0xff]
        %v1590 = vld [vmem:[%s168 + $0x31] sm:$0xff]
        %v1591 = vld [vmem:[%s168 + $0x39] sm:$0xff]
        %v1592 = vld [vmem:[%s168 + $0x41] sm:$0xff]
        %v1593 = vld [vmem:[%s168 + $0x49] sm:$0xff]
        %v1594 = vld [vmem:[%s168 + $0x51] sm:$0xff]
        %v1595 = vld [vmem:[%s168 + $0x59] sm:$0xff]
        %v1596 = vld [vmem:[%s168 + $0x61] sm:$0xff]
        %v1597 = vld [vmem:[%s168 + $0x69] sm:$0xff]
        %v1598 = vld [vmem:[%s168 + $0x71] sm:$0xff]
        %v1599 = vld [vmem:[%s168 + $0x79] sm:$0xff]
        %v1600 = vld [vmem:[%s168 + $0x81] sm:$0xff]
        %v1601 = vld [vmem:[%s168 + $0x89] sm:$0xff]
        %v1602 = vld [vmem:[%s168 + $0x91] sm:$0xff]
        %v1603 = vld [vmem:[%s168 + $0x99] sm:$0xff]
        %v1604 = vld [vmem:[%s168 + $0xa1] sm:$0xff]
        %v1605 = vld [vmem:[%s168 + $0xa9] sm:$0xff]
        %v1606 = vld [vmem:[%s168 + $0xb1] sm:$0xff]
        %v1607 = vld [vmem:[%s168 + $0xb9] sm:$0xff]
        %v1608 = vld [vmem:[%s168 + $0xc1] sm:$0xff]
        %v1609 = vld [vmem:[%s168 + $0xc9] sm:$0xff]
        %v1610 = vld [vmem:[%s168 + $0xd1] sm:$0xff]
        %v1611 = vld [vmem:[%s168 + $0xd9] sm:$0xff]
        %v1612 = vld [vmem:[%s168 + $0xe1] sm:$0xff]
        %v1613 = vld [vmem:[%s168 + $0xe9] sm:$0xff]
        %v1614 = vld [vmem:[%s168 + $0xf1] sm:$0xff]
        %v1615 = vld [vmem:[%s168 + $0xf9] sm:$0xff]
        %s1616 = scalar_lea.vmem %s1, 4
        %v1617 = vld [vmem:[%s1616] sm:$0xf]
        %v1619 = vsel %vm848, %v1584, 0
        %v1622 = vsel %vm848, %v1585, 0
        %v1625 = vsel %vm848, %v1586, 0
        %v1628 = vsel %vm848, %v1587, 0
        %v1631 = vsel %vm848, %v1588, 0
        %v1634 = vsel %vm848, %v1589, 0
        %v1637 = vsel %vm848, %v1590, 0
        %v1640 = vsel %vm848, %v1591, 0
        %v1643 = vsel %vm848, %v1592, 0
        %v1646 = vsel %vm848, %v1593, 0
        %v1649 = vsel %vm848, %v1594, 0
        %v1652 = vsel %vm848, %v1595, 0
        %v1655 = vsel %vm848, %v1596, 0
        %v1658 = vsel %vm848, %v1597, 0
        %v1661 = vsel %vm848, %v1598, 0
        %v1664 = vsel %vm848, %v1599, 0
        %v1667 = vsel %vm848, %v1600, 0
        %v1670 = vsel %vm848, %v1601, 0
        %v1673 = vsel %vm848, %v1602, 0
        %v1676 = vsel %vm848, %v1603, 0
        %v1679 = vsel %vm848, %v1604, 0
        %v1682 = vsel %vm848, %v1605, 0
        %v1685 = vsel %vm848, %v1606, 0
        %v1688 = vsel %vm848, %v1607, 0
        %v1691 = vsel %vm848, %v1608, 0
        %v1694 = vsel %vm848, %v1609, 0
        %v1697 = vsel %vm848, %v1610, 0
        %v1700 = vsel %vm848, %v1611, 0
        %v1703 = vsel %vm848, %v1612, 0
        %v1706 = vsel %vm848, %v1613, 0
        %v1709 = vsel %vm848, %v1614, 0
        %v1712 = vsel %vm848, %v1615, 0
        %v1715 = vsel %vm945, %v1617, 0
        %1717 = vmatpush.msra.mxu0 0.0
        %1718 = vmatpush.msra.mxu0 0.0
        %1719 = vmatpush.msra.mxu0 0.0
        %1720 = vmatpush.msra.mxu0 0.0
        %1721 = vmatpush.msra.mxu0 0.0
        %1722 = vmatpush.msra.mxu0 0.0
        %1723 = vmatpush.msra.mxu0 0.0
        %1724 = vmatpush.msra.mxu0 0.0
        %1725 = vmatpush.msra.mxu0 0.0
        %1726 = vmatpush.msra.mxu0 0.0
        %1727 = vmatpush.msra.mxu0 0.0
        %1728 = vmatpush.msra.mxu0 0.0
        %1729 = vmatpush.msra.mxu0 0.0
        %1730 = vmatpush.msra.mxu0 0.0
        %1731 = vmatpush.msra.mxu0 0.0
        %1732 = vmatpush.msra.mxu0 %v1715
        %1733 = vmatmul.f32.gmra.mxu0 %v1619
        %v1734 = vpop.f32.mrf.mxu0
        %v1735 = vadd.f32 0.0, %v1734
        %1736 = vmatmul.f32.gmra.mxu0 %v1622
        %v1737 = vpop.f32.mrf.mxu0
        %v1738 = vadd.f32 0.0, %v1737
        %1739 = vmatmul.f32.gmra.mxu0 %v1625
        %v1740 = vpop.f32.mrf.mxu0
        %v1741 = vadd.f32 0.0, %v1740
        %1742 = vmatmul.f32.gmra.mxu0 %v1628
        %v1743 = vpop.f32.mrf.mxu0
        %v1744 = vadd.f32 0.0, %v1743
        %1745 = vmatmul.f32.gmra.mxu0 %v1631
        %v1746 = vpop.f32.mrf.mxu0
        %v1747 = vadd.f32 0.0, %v1746
        %1748 = vmatmul.f32.gmra.mxu0 %v1634
        %v1749 = vpop.f32.mrf.mxu0
        %v1750 = vadd.f32 0.0, %v1749
        %1751 = vmatmul.f32.gmra.mxu0 %v1637
        %v1752 = vpop.f32.mrf.mxu0
        %v1753 = vadd.f32 0.0, %v1752
        %1754 = vmatmul.f32.gmra.mxu0 %v1640
        %v1755 = vpop.f32.mrf.mxu0
        %v1756 = vadd.f32 0.0, %v1755
        %1757 = vmatmul.f32.gmra.mxu0 %v1643
        %v1758 = vpop.f32.mrf.mxu0
        %v1759 = vadd.f32 0.0, %v1758
        %1760 = vmatmul.f32.gmra.mxu0 %v1646
        %v1761 = vpop.f32.mrf.mxu0
        %v1762 = vadd.f32 0.0, %v1761
        %1763 = vmatmul.f32.gmra.mxu0 %v1649
        %v1764 = vpop.f32.mrf.mxu0
        %v1765 = vadd.f32 0.0, %v1764
        %1766 = vmatmul.f32.gmra.mxu0 %v1652
        %v1767 = vpop.f32.mrf.mxu0
        %v1768 = vadd.f32 0.0, %v1767
        %1769 = vmatmul.f32.gmra.mxu0 %v1655
        %v1770 = vpop.f32.mrf.mxu0
        %v1771 = vadd.f32 0.0, %v1770
        %1772 = vmatmul.f32.gmra.mxu0 %v1658
        %v1773 = vpop.f32.mrf.mxu0
        %v1774 = vadd.f32 0.0, %v1773
        %1775 = vmatmul.f32.gmra.mxu0 %v1661
        %v1776 = vpop.f32.mrf.mxu0
        %v1777 = vadd.f32 0.0, %v1776
        %1778 = vmatmul.f32.gmra.mxu0 %v1664
        %v1779 = vpop.f32.mrf.mxu0
        %v1780 = vadd.f32 0.0, %v1779
        %1781 = vmatmul.f32.gmra.mxu0 %v1667
        %v1782 = vpop.f32.mrf.mxu0
        %v1783 = vadd.f32 0.0, %v1782
        %1784 = vmatmul.f32.gmra.mxu0 %v1670
        %v1785 = vpop.f32.mrf.mxu0
        %v1786 = vadd.f32 0.0, %v1785
        %1787 = vmatmul.f32.gmra.mxu0 %v1673
        %v1788 = vpop.f32.mrf.mxu0
        %v1789 = vadd.f32 0.0, %v1788
        %1790 = vmatmul.f32.gmra.mxu0 %v1676
        %v1791 = vpop.f32.mrf.mxu0
        %v1792 = vadd.f32 0.0, %v1791
        %1793 = vmatmul.f32.gmra.mxu0 %v1679
        %v1794 = vpop.f32.mrf.mxu0
        %v1795 = vadd.f32 0.0, %v1794
        %1796 = vmatmul.f32.gmra.mxu0 %v1682
        %v1797 = vpop.f32.mrf.mxu0
        %v1798 = vadd.f32 0.0, %v1797
        %1799 = vmatmul.f32.gmra.mxu0 %v1685
        %v1800 = vpop.f32.mrf.mxu0
        %v1801 = vadd.f32 0.0, %v1800
        %1802 = vmatmul.f32.gmra.mxu0 %v1688
        %v1803 = vpop.f32.mrf.mxu0
        %v1804 = vadd.f32 0.0, %v1803
        %1805 = vmatmul.f32.gmra.mxu0 %v1691
        %v1806 = vpop.f32.mrf.mxu0
        %v1807 = vadd.f32 0.0, %v1806
        %1808 = vmatmul.f32.gmra.mxu0 %v1694
        %v1809 = vpop.f32.mrf.mxu0
        %v1810 = vadd.f32 0.0, %v1809
        %1811 = vmatmul.f32.gmra.mxu0 %v1697
        %v1812 = vpop.f32.mrf.mxu0
        %v1813 = vadd.f32 0.0, %v1812
        %1814 = vmatmul.f32.gmra.mxu0 %v1700
        %v1815 = vpop.f32.mrf.mxu0
        %v1816 = vadd.f32 0.0, %v1815
        %1817 = vmatmul.f32.gmra.mxu0 %v1703
        %v1818 = vpop.f32.mrf.mxu0
        %v1819 = vadd.f32 0.0, %v1818
        %1820 = vmatmul.f32.gmra.mxu0 %v1706
        %v1821 = vpop.f32.mrf.mxu0
        %v1822 = vadd.f32 0.0, %v1821
        %1823 = vmatmul.f32.gmra.mxu0 %v1709
        %v1824 = vpop.f32.mrf.mxu0
        %v1825 = vadd.f32 0.0, %v1824
        %1826 = vmatmul.f32.gmra.mxu0 %v1712
        %v1827 = vpop.f32.mrf.mxu0
        %v1828 = vadd.f32 0.0, %v1827
        %1829 = vdwg.mxu0
        %v1830 = vadd.f32 %v1552, %v1735
        %v1831 = vadd.f32 %v1553, %v1738
        %v1832 = vadd.f32 %v1554, %v1741
        %v1833 = vadd.f32 %v1555, %v1744
        %v1834 = vadd.f32 %v1556, %v1747
        %v1835 = vadd.f32 %v1557, %v1750
        %v1836 = vadd.f32 %v1558, %v1753
        %v1837 = vadd.f32 %v1559, %v1756
        %v1838 = vadd.f32 %v1560, %v1759
        %v1839 = vadd.f32 %v1561, %v1762
        %v1840 = vadd.f32 %v1562, %v1765
        %v1841 = vadd.f32 %v1563, %v1768
        %v1842 = vadd.f32 %v1564, %v1771
        %v1843 = vadd.f32 %v1565, %v1774
        %v1844 = vadd.f32 %v1566, %v1777
        %v1845 = vadd.f32 %v1567, %v1780
        %v1846 = vadd.f32 %v1568, %v1783
        %v1847 = vadd.f32 %v1569, %v1786
        %v1848 = vadd.f32 %v1570, %v1789
        %v1849 = vadd.f32 %v1571, %v1792
        %v1850 = vadd.f32 %v1572, %v1795
        %v1851 = vadd.f32 %v1573, %v1798
        %v1852 = vadd.f32 %v1574, %v1801
        %v1853 = vadd.f32 %v1575, %v1804
        %v1854 = vadd.f32 %v1576, %v1807
        %v1855 = vadd.f32 %v1577, %v1810
        %v1856 = vadd.f32 %v1578, %v1813
        %v1857 = vadd.f32 %v1579, %v1816
        %v1858 = vadd.f32 %v1580, %v1819
        %v1859 = vadd.f32 %v1581, %v1822
        %v1860 = vadd.f32 %v1582, %v1825
        %v1861 = vadd.f32 %v1583, %v1828
        %v1862 = vld [vmem:[%s168 + $0x11] sm:$0xff]
        %v1863 = vld [vmem:[%s168 + $0x19] sm:$0xff]
        %v1864 = vld [vmem:[%s168 + $0x21] sm:$0xff]
        %v1865 = vld [vmem:[%s168 + $0x29] sm:$0xff]
        %v1866 = vld [vmem:[%s168 + $0x31] sm:$0xff]
        %v1867 = vld [vmem:[%s168 + $0x39] sm:$0xff]
        %v1868 = vld [vmem:[%s168 + $0x41] sm:$0xff]
        %v1869 = vld [vmem:[%s168 + $0x49] sm:$0xff]
        %v1870 = vld [vmem:[%s168 + $0x51] sm:$0xff]
        %v1871 = vld [vmem:[%s168 + $0x59] sm:$0xff]
        %v1872 = vld [vmem:[%s168 + $0x61] sm:$0xff]
        %v1873 = vld [vmem:[%s168 + $0x69] sm:$0xff]
        %v1874 = vld [vmem:[%s168 + $0x71] sm:$0xff]
        %v1875 = vld [vmem:[%s168 + $0x79] sm:$0xff]
        %v1876 = vld [vmem:[%s168 + $0x81] sm:$0xff]
        %v1877 = vld [vmem:[%s168 + $0x89] sm:$0xff]
        %v1878 = vld [vmem:[%s168 + $0x91] sm:$0xff]
        %v1879 = vld [vmem:[%s168 + $0x99] sm:$0xff]
        %v1880 = vld [vmem:[%s168 + $0xa1] sm:$0xff]
        %v1881 = vld [vmem:[%s168 + $0xa9] sm:$0xff]
        %v1882 = vld [vmem:[%s168 + $0xb1] sm:$0xff]
        %v1883 = vld [vmem:[%s168 + $0xb9] sm:$0xff]
        %v1884 = vld [vmem:[%s168 + $0xc1] sm:$0xff]
        %v1885 = vld [vmem:[%s168 + $0xc9] sm:$0xff]
        %v1886 = vld [vmem:[%s168 + $0xd1] sm:$0xff]
        %v1887 = vld [vmem:[%s168 + $0xd9] sm:$0xff]
        %v1888 = vld [vmem:[%s168 + $0xe1] sm:$0xff]
        %v1889 = vld [vmem:[%s168 + $0xe9] sm:$0xff]
        %v1890 = vld [vmem:[%s168 + $0xf1] sm:$0xff]
        %v1891 = vld [vmem:[%s168 + $0xf9] sm:$0xff]
        %v1892 = vld [vmem:[%s168 + $0x101] sm:$0xff]
        %v1893 = vld [vmem:[%s168 + $0x109] sm:$0xff]
        %s1894 = scalar_lea.vmem %s1, 16
        %v1895 = vld [vmem:[%s1894] sm:$0xf]
        %v1897 = vsel %vm848, %v1862, 0
        %v1900 = vsel %vm848, %v1863, 0
        %v1903 = vsel %vm848, %v1864, 0
        %v1906 = vsel %vm848, %v1865, 0
        %v1909 = vsel %vm848, %v1866, 0
        %v1912 = vsel %vm848, %v1867, 0
        %v1915 = vsel %vm848, %v1868, 0
        %v1918 = vsel %vm848, %v1869, 0
        %v1921 = vsel %vm848, %v1870, 0
        %v1924 = vsel %vm848, %v1871, 0
        %v1927 = vsel %vm848, %v1872, 0
        %v1930 = vsel %vm848, %v1873, 0
        %v1933 = vsel %vm848, %v1874, 0
        %v1936 = vsel %vm848, %v1875, 0
        %v1939 = vsel %vm848, %v1876, 0
        %v1942 = vsel %vm848, %v1877, 0
        %v1945 = vsel %vm848, %v1878, 0
        %v1948 = vsel %vm848, %v1879, 0
        %v1951 = vsel %vm848, %v1880, 0
        %v1954 = vsel %vm848, %v1881, 0
        %v1957 = vsel %vm848, %v1882, 0
        %v1960 = vsel %vm848, %v1883, 0
        %v1963 = vsel %vm848, %v1884, 0
        %v1966 = vsel %vm848, %v1885, 0
        %v1969 = vsel %vm848, %v1886, 0
        %v1972 = vsel %vm848, %v1887, 0
        %v1975 = vsel %vm848, %v1888, 0
        %v1978 = vsel %vm848, %v1889, 0
        %v1981 = vsel %vm848, %v1890, 0
        %v1984 = vsel %vm848, %v1891, 0
        %v1987 = vsel %vm848, %v1892, 0
        %v1990 = vsel %vm848, %v1893, 0
        %v1993 = vsel %vm945, %v1895, 0
        %1995 = vmatpush.msra.mxu0 0.0
        %1996 = vmatpush.msra.mxu0 0.0
        %1997 = vmatpush.msra.mxu0 0.0
        %1998 = vmatpush.msra.mxu0 0.0
        %1999 = vmatpush.msra.mxu0 0.0
        %2000 = vmatpush.msra.mxu0 0.0
        %2001 = vmatpush.msra.mxu0 0.0
        %2002 = vmatpush.msra.mxu0 0.0
        %2003 = vmatpush.msra.mxu0 0.0
        %2004 = vmatpush.msra.mxu0 0.0
        %2005 = vmatpush.msra.mxu0 0.0
        %2006 = vmatpush.msra.mxu0 0.0
        %2007 = vmatpush.msra.mxu0 0.0
        %2008 = vmatpush.msra.mxu0 0.0
        %2009 = vmatpush.msra.mxu0 0.0
        %2010 = vmatpush.msra.mxu0 %v1993
        %2011 = vmatmul.f32.gmra.mxu0 %v1897
        %v2012 = vpop.f32.mrf.mxu0
        %v2013 = vadd.f32 0.0, %v2012
        %2014 = vmatmul.f32.gmra.mxu0 %v1900
        %v2015 = vpop.f32.mrf.mxu0
        %v2016 = vadd.f32 0.0, %v2015
        %2017 = vmatmul.f32.gmra.mxu0 %v1903
        %v2018 = vpop.f32.mrf.mxu0
        %v2019 = vadd.f32 0.0, %v2018
        %2020 = vmatmul.f32.gmra.mxu0 %v1906
        %v2021 = vpop.f32.mrf.mxu0
        %v2022 = vadd.f32 0.0, %v2021
        %2023 = vmatmul.f32.gmra.mxu0 %v1909
        %v2024 = vpop.f32.mrf.mxu0
        %v2025 = vadd.f32 0.0, %v2024
        %2026 = vmatmul.f32.gmra.mxu0 %v1912
        %v2027 = vpop.f32.mrf.mxu0
        %v2028 = vadd.f32 0.0, %v2027
        %2029 = vmatmul.f32.gmra.mxu0 %v1915
        %v2030 = vpop.f32.mrf.mxu0
        %v2031 = vadd.f32 0.0, %v2030
        %2032 = vmatmul.f32.gmra.mxu0 %v1918
        %v2033 = vpop.f32.mrf.mxu0
        %v2034 = vadd.f32 0.0, %v2033
        %2035 = vmatmul.f32.gmra.mxu0 %v1921
        %v2036 = vpop.f32.mrf.mxu0
        %v2037 = vadd.f32 0.0, %v2036
        %2038 = vmatmul.f32.gmra.mxu0 %v1924
        %v2039 = vpop.f32.mrf.mxu0
        %v2040 = vadd.f32 0.0, %v2039
        %2041 = vmatmul.f32.gmra.mxu0 %v1927
        %v2042 = vpop.f32.mrf.mxu0
        %v2043 = vadd.f32 0.0, %v2042
        %2044 = vmatmul.f32.gmra.mxu0 %v1930
        %v2045 = vpop.f32.mrf.mxu0
        %v2046 = vadd.f32 0.0, %v2045
        %2047 = vmatmul.f32.gmra.mxu0 %v1933
        %v2048 = vpop.f32.mrf.mxu0
        %v2049 = vadd.f32 0.0, %v2048
        %2050 = vmatmul.f32.gmra.mxu0 %v1936
        %v2051 = vpop.f32.mrf.mxu0
        %v2052 = vadd.f32 0.0, %v2051
        %2053 = vmatmul.f32.gmra.mxu0 %v1939
        %v2054 = vpop.f32.mrf.mxu0
        %v2055 = vadd.f32 0.0, %v2054
        %2056 = vmatmul.f32.gmra.mxu0 %v1942
        %v2057 = vpop.f32.mrf.mxu0
        %v2058 = vadd.f32 0.0, %v2057
        %2059 = vmatmul.f32.gmra.mxu0 %v1945
        %v2060 = vpop.f32.mrf.mxu0
        %v2061 = vadd.f32 0.0, %v2060
        %2062 = vmatmul.f32.gmra.mxu0 %v1948
        %v2063 = vpop.f32.mrf.mxu0
        %v2064 = vadd.f32 0.0, %v2063
        %2065 = vmatmul.f32.gmra.mxu0 %v1951
        %v2066 = vpop.f32.mrf.mxu0
        %v2067 = vadd.f32 0.0, %v2066
        %2068 = vmatmul.f32.gmra.mxu0 %v1954
        %v2069 = vpop.f32.mrf.mxu0
        %v2070 = vadd.f32 0.0, %v2069
        %2071 = vmatmul.f32.gmra.mxu0 %v1957
        %v2072 = vpop.f32.mrf.mxu0
        %v2073 = vadd.f32 0.0, %v2072
        %2074 = vmatmul.f32.gmra.mxu0 %v1960
        %v2075 = vpop.f32.mrf.mxu0
        %v2076 = vadd.f32 0.0, %v2075
        %2077 = vmatmul.f32.gmra.mxu0 %v1963
        %v2078 = vpop.f32.mrf.mxu0
        %v2079 = vadd.f32 0.0, %v2078
        %2080 = vmatmul.f32.gmra.mxu0 %v1966
        %v2081 = vpop.f32.mrf.mxu0
        %v2082 = vadd.f32 0.0, %v2081
        %2083 = vmatmul.f32.gmra.mxu0 %v1969
        %v2084 = vpop.f32.mrf.mxu0
        %v2085 = vadd.f32 0.0, %v2084
        %2086 = vmatmul.f32.gmra.mxu0 %v1972
        %v2087 = vpop.f32.mrf.mxu0
        %v2088 = vadd.f32 0.0, %v2087
        %2089 = vmatmul.f32.gmra.mxu0 %v1975
        %v2090 = vpop.f32.mrf.mxu0
        %v2091 = vadd.f32 0.0, %v2090
        %2092 = vmatmul.f32.gmra.mxu0 %v1978
        %v2093 = vpop.f32.mrf.mxu0
        %v2094 = vadd.f32 0.0, %v2093
        %2095 = vmatmul.f32.gmra.mxu0 %v1981
        %v2096 = vpop.f32.mrf.mxu0
        %v2097 = vadd.f32 0.0, %v2096
        %2098 = vmatmul.f32.gmra.mxu0 %v1984
        %v2099 = vpop.f32.mrf.mxu0
        %v2100 = vadd.f32 0.0, %v2099
        %2101 = vmatmul.f32.gmra.mxu0 %v1987
        %v2102 = vpop.f32.mrf.mxu0
        %v2103 = vadd.f32 0.0, %v2102
        %2104 = vmatmul.f32.gmra.mxu0 %v1990
        %v2105 = vpop.f32.mrf.mxu0
        %v2106 = vadd.f32 0.0, %v2105
        %2107 = vdwg.mxu0
        %v2108 = vadd.f32 %v1830, %v2013
        %v2109 = vadd.f32 %v1831, %v2016
        %v2110 = vadd.f32 %v1832, %v2019
        %v2111 = vadd.f32 %v1833, %v2022
        %v2112 = vadd.f32 %v1834, %v2025
        %v2113 = vadd.f32 %v1835, %v2028
        %v2114 = vadd.f32 %v1836, %v2031
        %v2115 = vadd.f32 %v1837, %v2034
        %v2116 = vadd.f32 %v1838, %v2037
        %v2117 = vadd.f32 %v1839, %v2040
        %v2118 = vadd.f32 %v1840, %v2043
        %v2119 = vadd.f32 %v1841, %v2046
        %v2120 = vadd.f32 %v1842, %v2049
        %v2121 = vadd.f32 %v1843, %v2052
        %v2122 = vadd.f32 %v1844, %v2055
        %v2123 = vadd.f32 %v1845, %v2058
        %v2124 = vadd.f32 %v1846, %v2061
        %v2125 = vadd.f32 %v1847, %v2064
        %v2126 = vadd.f32 %v1848, %v2067
        %v2127 = vadd.f32 %v1849, %v2070
        %v2128 = vadd.f32 %v1850, %v2073
        %v2129 = vadd.f32 %v1851, %v2076
        %v2130 = vadd.f32 %v1852, %v2079
        %v2131 = vadd.f32 %v1853, %v2082
        %v2132 = vadd.f32 %v1854, %v2085
        %v2133 = vadd.f32 %v1855, %v2088
        %v2134 = vadd.f32 %v1856, %v2091
        %v2135 = vadd.f32 %v1857, %v2094
        %v2136 = vadd.f32 %v1858, %v2097
        %v2137 = vadd.f32 %v1859, %v2100
        %v2138 = vadd.f32 %v1860, %v2103
        %v2139 = vadd.f32 %v1861, %v2106
        %v2140 = vld [vmem:[%s168 + $0x21] sm:$0xff]
        %v2141 = vld [vmem:[%s168 + $0x29] sm:$0xff]
        %v2142 = vld [vmem:[%s168 + $0x31] sm:$0xff]
        %v2143 = vld [vmem:[%s168 + $0x39] sm:$0xff]
        %v2144 = vld [vmem:[%s168 + $0x41] sm:$0xff]
        %v2145 = vld [vmem:[%s168 + $0x49] sm:$0xff]
        %v2146 = vld [vmem:[%s168 + $0x51] sm:$0xff]
        %v2147 = vld [vmem:[%s168 + $0x59] sm:$0xff]
        %v2148 = vld [vmem:[%s168 + $0x61] sm:$0xff]
        %v2149 = vld [vmem:[%s168 + $0x69] sm:$0xff]
        %v2150 = vld [vmem:[%s168 + $0x71] sm:$0xff]
        %v2151 = vld [vmem:[%s168 + $0x79] sm:$0xff]
        %v2152 = vld [vmem:[%s168 + $0x81] sm:$0xff]
        %v2153 = vld [vmem:[%s168 + $0x89] sm:$0xff]
        %v2154 = vld [vmem:[%s168 + $0x91] sm:$0xff]
        %v2155 = vld [vmem:[%s168 + $0x99] sm:$0xff]
        %v2156 = vld [vmem:[%s168 + $0xa1] sm:$0xff]
        %v2157 = vld [vmem:[%s168 + $0xa9] sm:$0xff]
        %v2158 = vld [vmem:[%s168 + $0xb1] sm:$0xff]
        %v2159 = vld [vmem:[%s168 + $0xb9] sm:$0xff]
        %v2160 = vld [vmem:[%s168 + $0xc1] sm:$0xff]
        %v2161 = vld [vmem:[%s168 + $0xc9] sm:$0xff]
        %v2162 = vld [vmem:[%s168 + $0xd1] sm:$0xff]
        %v2163 = vld [vmem:[%s168 + $0xd9] sm:$0xff]
        %v2164 = vld [vmem:[%s168 + $0xe1] sm:$0xff]
        %v2165 = vld [vmem:[%s168 + $0xe9] sm:$0xff]
        %v2166 = vld [vmem:[%s168 + $0xf1] sm:$0xff]
        %v2167 = vld [vmem:[%s168 + $0xf9] sm:$0xff]
        %v2168 = vld [vmem:[%s168 + $0x101] sm:$0xff]
        %v2169 = vld [vmem:[%s168 + $0x109] sm:$0xff]
        %v2170 = vld [vmem:[%s168 + $0x111] sm:$0xff]
        %v2171 = vld [vmem:[%s168 + $0x119] sm:$0xff]
        %s2172 = scalar_lea.vmem %s1, 28
        %v2173 = vld [vmem:[%s2172] sm:$0xf]
        %v2175 = vsel %vm848, %v2140, 0
        %v2178 = vsel %vm848, %v2141, 0
        %v2181 = vsel %vm848, %v2142, 0
        %v2184 = vsel %vm848, %v2143, 0
        %v2187 = vsel %vm848, %v2144, 0
        %v2190 = vsel %vm848, %v2145, 0
        %v2193 = vsel %vm848, %v2146, 0
        %v2196 = vsel %vm848, %v2147, 0
        %v2199 = vsel %vm848, %v2148, 0
        %v2202 = vsel %vm848, %v2149, 0
        %v2205 = vsel %vm848, %v2150, 0
        %v2208 = vsel %vm848, %v2151, 0
        %v2211 = vsel %vm848, %v2152, 0
        %v2214 = vsel %vm848, %v2153, 0
        %v2217 = vsel %vm848, %v2154, 0
        %v2220 = vsel %vm848, %v2155, 0
        %v2223 = vsel %vm848, %v2156, 0
        %v2226 = vsel %vm848, %v2157, 0
        %v2229 = vsel %vm848, %v2158, 0
        %v2232 = vsel %vm848, %v2159, 0
        %v2235 = vsel %vm848, %v2160, 0
        %v2238 = vsel %vm848, %v2161, 0
        %v2241 = vsel %vm848, %v2162, 0
        %v2244 = vsel %vm848, %v2163, 0
        %v2247 = vsel %vm848, %v2164, 0
        %v2250 = vsel %vm848, %v2165, 0
        %v2253 = vsel %vm848, %v2166, 0
        %v2256 = vsel %vm848, %v2167, 0
        %v2259 = vsel %vm848, %v2168, 0
        %v2262 = vsel %vm848, %v2169, 0
        %v2265 = vsel %vm848, %v2170, 0
        %v2268 = vsel %vm848, %v2171, 0
        %v2271 = vsel %vm945, %v2173, 0
        %2273 = vmatpush.msra.mxu0 0.0
        %2274 = vmatpush.msra.mxu0 0.0
        %2275 = vmatpush.msra.mxu0 0.0
        %2276 = vmatpush.msra.mxu0 0.0
        %2277 = vmatpush.msra.mxu0 0.0
        %2278 = vmatpush.msra.mxu0 0.0
        %2279 = vmatpush.msra.mxu0 0.0
        %2280 = vmatpush.msra.mxu0 0.0
        %2281 = vmatpush.msra.mxu0 0.0
        %2282 = vmatpush.msra.mxu0 0.0
        %2283 = vmatpush.msra.mxu0 0.0
        %2284 = vmatpush.msra.mxu0 0.0
        %2285 = vmatpush.msra.mxu0 0.0
        %2286 = vmatpush.msra.mxu0 0.0
        %2287 = vmatpush.msra.mxu0 0.0
        %2288 = vmatpush.msra.mxu0 %v2271
        %2289 = vmatmul.f32.gmra.mxu0 %v2175
        %v2290 = vpop.f32.mrf.mxu0
        %v2291 = vadd.f32 0.0, %v2290
        %2292 = vmatmul.f32.gmra.mxu0 %v2178
        %v2293 = vpop.f32.mrf.mxu0
        %v2294 = vadd.f32 0.0, %v2293
        %2295 = vmatmul.f32.gmra.mxu0 %v2181
        %v2296 = vpop.f32.mrf.mxu0
        %v2297 = vadd.f32 0.0, %v2296
        %2298 = vmatmul.f32.gmra.mxu0 %v2184
        %v2299 = vpop.f32.mrf.mxu0
        %v2300 = vadd.f32 0.0, %v2299
        %2301 = vmatmul.f32.gmra.mxu0 %v2187
        %v2302 = vpop.f32.mrf.mxu0
        %v2303 = vadd.f32 0.0, %v2302
        %2304 = vmatmul.f32.gmra.mxu0 %v2190
        %v2305 = vpop.f32.mrf.mxu0
        %v2306 = vadd.f32 0.0, %v2305
        %2307 = vmatmul.f32.gmra.mxu0 %v2193
        %v2308 = vpop.f32.mrf.mxu0
        %v2309 = vadd.f32 0.0, %v2308
        %2310 = vmatmul.f32.gmra.mxu0 %v2196
        %v2311 = vpop.f32.mrf.mxu0
        %v2312 = vadd.f32 0.0, %v2311
        %2313 = vmatmul.f32.gmra.mxu0 %v2199
        %v2314 = vpop.f32.mrf.mxu0
        %v2315 = vadd.f32 0.0, %v2314
        %2316 = vmatmul.f32.gmra.mxu0 %v2202
        %v2317 = vpop.f32.mrf.mxu0
        %v2318 = vadd.f32 0.0, %v2317
        %2319 = vmatmul.f32.gmra.mxu0 %v2205
        %v2320 = vpop.f32.mrf.mxu0
        %v2321 = vadd.f32 0.0, %v2320
        %2322 = vmatmul.f32.gmra.mxu0 %v2208
        %v2323 = vpop.f32.mrf.mxu0
        %v2324 = vadd.f32 0.0, %v2323
        %2325 = vmatmul.f32.gmra.mxu0 %v2211
        %v2326 = vpop.f32.mrf.mxu0
        %v2327 = vadd.f32 0.0, %v2326
        %2328 = vmatmul.f32.gmra.mxu0 %v2214
        %v2329 = vpop.f32.mrf.mxu0
        %v2330 = vadd.f32 0.0, %v2329
        %2331 = vmatmul.f32.gmra.mxu0 %v2217
        %v2332 = vpop.f32.mrf.mxu0
        %v2333 = vadd.f32 0.0, %v2332
        %2334 = vmatmul.f32.gmra.mxu0 %v2220
        %v2335 = vpop.f32.mrf.mxu0
        %v2336 = vadd.f32 0.0, %v2335
        %2337 = vmatmul.f32.gmra.mxu0 %v2223
        %v2338 = vpop.f32.mrf.mxu0
        %v2339 = vadd.f32 0.0, %v2338
        %2340 = vmatmul.f32.gmra.mxu0 %v2226
        %v2341 = vpop.f32.mrf.mxu0
        %v2342 = vadd.f32 0.0, %v2341
        %2343 = vmatmul.f32.gmra.mxu0 %v2229
        %v2344 = vpop.f32.mrf.mxu0
        %v2345 = vadd.f32 0.0, %v2344
        %2346 = vmatmul.f32.gmra.mxu0 %v2232
        %v2347 = vpop.f32.mrf.mxu0
        %v2348 = vadd.f32 0.0, %v2347
        %2349 = vmatmul.f32.gmra.mxu0 %v2235
        %v2350 = vpop.f32.mrf.mxu0
        %v2351 = vadd.f32 0.0, %v2350
        %2352 = vmatmul.f32.gmra.mxu0 %v2238
        %v2353 = vpop.f32.mrf.mxu0
        %v2354 = vadd.f32 0.0, %v2353
        %2355 = vmatmul.f32.gmra.mxu0 %v2241
        %v2356 = vpop.f32.mrf.mxu0
        %v2357 = vadd.f32 0.0, %v2356
        %2358 = vmatmul.f32.gmra.mxu0 %v2244
        %v2359 = vpop.f32.mrf.mxu0
        %v2360 = vadd.f32 0.0, %v2359
        %2361 = vmatmul.f32.gmra.mxu0 %v2247
        %v2362 = vpop.f32.mrf.mxu0
        %v2363 = vadd.f32 0.0, %v2362
        %2364 = vmatmul.f32.gmra.mxu0 %v2250
        %v2365 = vpop.f32.mrf.mxu0
        %v2366 = vadd.f32 0.0, %v2365
        %2367 = vmatmul.f32.gmra.mxu0 %v2253
        %v2368 = vpop.f32.mrf.mxu0
        %v2369 = vadd.f32 0.0, %v2368
        %2370 = vmatmul.f32.gmra.mxu0 %v2256
        %v2371 = vpop.f32.mrf.mxu0
        %v2372 = vadd.f32 0.0, %v2371
        %2373 = vmatmul.f32.gmra.mxu0 %v2259
        %v2374 = vpop.f32.mrf.mxu0
        %v2375 = vadd.f32 0.0, %v2374
        %2376 = vmatmul.f32.gmra.mxu0 %v2262
        %v2377 = vpop.f32.mrf.mxu0
        %v2378 = vadd.f32 0.0, %v2377
        %2379 = vmatmul.f32.gmra.mxu0 %v2265
        %v2380 = vpop.f32.mrf.mxu0
        %v2381 = vadd.f32 0.0, %v2380
        %2382 = vmatmul.f32.gmra.mxu0 %v2268
        %v2383 = vpop.f32.mrf.mxu0
        %v2384 = vadd.f32 0.0, %v2383
        %2385 = vdwg.mxu0
        %v2386 = vadd.f32 %v2108, %v2291
        %v2387 = vadd.f32 %v2109, %v2294
        %v2388 = vadd.f32 %v2110, %v2297
        %v2389 = vadd.f32 %v2111, %v2300
        %v2390 = vadd.f32 %v2112, %v2303
        %v2391 = vadd.f32 %v2113, %v2306
        %v2392 = vadd.f32 %v2114, %v2309
        %v2393 = vadd.f32 %v2115, %v2312
        %v2394 = vadd.f32 %v2116, %v2315
        %v2395 = vadd.f32 %v2117, %v2318
        %v2396 = vadd.f32 %v2118, %v2321
        %v2397 = vadd.f32 %v2119, %v2324
        %v2398 = vadd.f32 %v2120, %v2327
        %v2399 = vadd.f32 %v2121, %v2330
        %v2400 = vadd.f32 %v2122, %v2333
        %v2401 = vadd.f32 %v2123, %v2336
        %v2402 = vadd.f32 %v2124, %v2339
        %v2403 = vadd.f32 %v2125, %v2342
        %v2404 = vadd.f32 %v2126, %v2345
        %v2405 = vadd.f32 %v2127, %v2348
        %v2406 = vadd.f32 %v2128, %v2351
        %v2407 = vadd.f32 %v2129, %v2354
        %v2408 = vadd.f32 %v2130, %v2357
        %v2409 = vadd.f32 %v2131, %v2360
        %v2410 = vadd.f32 %v2132, %v2363
        %v2411 = vadd.f32 %v2133, %v2366
        %v2412 = vadd.f32 %v2134, %v2369
        %v2413 = vadd.f32 %v2135, %v2372
        %v2414 = vadd.f32 %v2136, %v2375
        %v2415 = vadd.f32 %v2137, %v2378
        %v2416 = vadd.f32 %v2138, %v2381
        %v2417 = vadd.f32 %v2139, %v2384
        %vm2418 = vcmp.ge.s32.totalorder %v555, 4294967295
        %vm2419 = vcmp.ge.s32.totalorder %v556, 4294967295
        %vm2420 = vcmp.ge.s32.totalorder %v557, 4294967295
        %vm2421 = vcmp.ge.s32.totalorder %v558, 4294967295
        %vm2422 = vcmp.ge.s32.totalorder %v559, 4294967295
        %vm2423 = vcmp.ge.s32.totalorder %v560, 4294967295
        %vm2424 = vcmp.ge.s32.totalorder %v561, 4294967295
        %vm2425 = vcmp.ge.s32.totalorder %v562, 4294967295
        %vm2426 = vcmp.ge.s32.totalorder %v563, 4294967295
        %vm2427 = vcmp.ge.s32.totalorder %v564, 4294967295
        %vm2428 = vcmp.ge.s32.totalorder %v565, 4294967295
        %vm2429 = vcmp.ge.s32.totalorder %v566, 4294967295
        %vm2430 = vcmp.ge.s32.totalorder %v567, 4294967295
        %vm2431 = vcmp.ge.s32.totalorder %v568, 4294967295
        %vm2432 = vcmp.ge.s32.totalorder %v569, 4294967295
        %vm2433 = vcmp.ge.s32.totalorder %v570, 4294967295
        %vm2434 = vcmp.ge.s32.totalorder %v571, 4294967295
        %vm2435 = vcmp.ge.s32.totalorder %v572, 4294967295
        %vm2436 = vcmp.ge.s32.totalorder %v573, 4294967295
        %vm2437 = vcmp.ge.s32.totalorder %v574, 4294967295
        %vm2438 = vcmp.ge.s32.totalorder %v575, 4294967295
        %vm2439 = vcmp.ge.s32.totalorder %v576, 4294967295
        %vm2440 = vcmp.ge.s32.totalorder %v577, 4294967295
        %vm2441 = vcmp.ge.s32.totalorder %v578, 4294967295
        %vm2442 = vcmp.ge.s32.totalorder %v579, 4294967295
        %vm2443 = vcmp.ge.s32.totalorder %v580, 4294967295
        %vm2444 = vcmp.ge.s32.totalorder %v581, 4294967295
        %vm2445 = vcmp.ge.s32.totalorder %v582, 4294967295
        %vm2446 = vcmp.ge.s32.totalorder %v583, 4294967295
        %vm2447 = vcmp.ge.s32.totalorder %v584, 4294967295
        %vm2448 = vcmp.ge.s32.totalorder %v585, 4294967295
        %vm2449 = vcmp.ge.s32.totalorder %v586, 4294967295
        %vm2450 = vcmp.le.s32.totalorder %v555, 14
        %vm2451 = vcmp.le.s32.totalorder %v556, 14
        %vm2452 = vcmp.le.s32.totalorder %v557, 14
        %vm2453 = vcmp.le.s32.totalorder %v558, 14
        %vm2454 = vcmp.le.s32.totalorder %v559, 14
        %vm2455 = vcmp.le.s32.totalorder %v560, 14
        %vm2456 = vcmp.le.s32.totalorder %v561, 14
        %vm2457 = vcmp.le.s32.totalorder %v562, 14
        %vm2458 = vcmp.le.s32.totalorder %v563, 14
        %vm2459 = vcmp.le.s32.totalorder %v564, 14
        %vm2460 = vcmp.le.s32.totalorder %v565, 14
        %vm2461 = vcmp.le.s32.totalorder %v566, 14
        %vm2462 = vcmp.le.s32.totalorder %v567, 14
        %vm2463 = vcmp.le.s32.totalorder %v568, 14
        %vm2464 = vcmp.le.s32.totalorder %v569, 14
        %vm2465 = vcmp.le.s32.totalorder %v570, 14
        %vm2466 = vcmp.le.s32.totalorder %v571, 14
        %vm2467 = vcmp.le.s32.totalorder %v572, 14
        %vm2468 = vcmp.le.s32.totalorder %v573, 14
        %vm2469 = vcmp.le.s32.totalorder %v574, 14
        %vm2470 = vcmp.le.s32.totalorder %v575, 14
        %vm2471 = vcmp.le.s32.totalorder %v576, 14
        %vm2472 = vcmp.le.s32.totalorder %v577, 14
        %vm2473 = vcmp.le.s32.totalorder %v578, 14
        %vm2474 = vcmp.le.s32.totalorder %v579, 14
        %vm2475 = vcmp.le.s32.totalorder %v580, 14
        %vm2476 = vcmp.le.s32.totalorder %v581, 14
        %vm2477 = vcmp.le.s32.totalorder %v582, 14
        %vm2478 = vcmp.le.s32.totalorder %v583, 14
        %vm2479 = vcmp.le.s32.totalorder %v584, 14
        %vm2480 = vcmp.le.s32.totalorder %v585, 14
        %vm2481 = vcmp.le.s32.totalorder %v586, 14
        %vm2482 = vmand %vm2418, %vm2450
        %vm2483 = vmand %vm2419, %vm2451
        %vm2484 = vmand %vm2420, %vm2452
        %vm2485 = vmand %vm2421, %vm2453
        %vm2486 = vmand %vm2422, %vm2454
        %vm2487 = vmand %vm2423, %vm2455
        %vm2488 = vmand %vm2424, %vm2456
        %vm2489 = vmand %vm2425, %vm2457
        %vm2490 = vmand %vm2426, %vm2458
        %vm2491 = vmand %vm2427, %vm2459
        %vm2492 = vmand %vm2428, %vm2460
        %vm2493 = vmand %vm2429, %vm2461
        %vm2494 = vmand %vm2430, %vm2462
        %vm2495 = vmand %vm2431, %vm2463
        %vm2496 = vmand %vm2432, %vm2464
        %vm2497 = vmand %vm2433, %vm2465
        %vm2498 = vmand %vm2434, %vm2466
        %vm2499 = vmand %vm2435, %vm2467
        %vm2500 = vmand %vm2436, %vm2468
        %vm2501 = vmand %vm2437, %vm2469
        %vm2502 = vmand %vm2438, %vm2470
        %vm2503 = vmand %vm2439, %vm2471
        %vm2504 = vmand %vm2440, %vm2472
        %vm2505 = vmand %vm2441, %vm2473
        %vm2506 = vmand %vm2442, %vm2474
        %vm2507 = vmand %vm2443, %vm2475
        %vm2508 = vmand %vm2444, %vm2476
        %vm2509 = vmand %vm2445, %vm2477
        %vm2510 = vmand %vm2446, %vm2478
        %vm2511 = vmand %vm2447, %vm2479
        %vm2512 = vmand %vm2448, %vm2480
        %vm2513 = vmand %vm2449, %vm2481
        %v2514 = vld [vmem:[%s168 + $0x2] sm:$0xff]
        %v2515 = vld [vmem:[%s168 + $0xa] sm:$0xff]
        %v2516 = vld [vmem:[%s168 + $0x12] sm:$0xff]
        %v2517 = vld [vmem:[%s168 + $0x1a] sm:$0xff]
        %v2518 = vld [vmem:[%s168 + $0x22] sm:$0xff]
        %v2519 = vld [vmem:[%s168 + $0x2a] sm:$0xff]
        %v2520 = vld [vmem:[%s168 + $0x32] sm:$0xff]
        %v2521 = vld [vmem:[%s168 + $0x3a] sm:$0xff]
        %v2522 = vld [vmem:[%s168 + $0x42] sm:$0xff]
        %v2523 = vld [vmem:[%s168 + $0x4a] sm:$0xff]
        %v2524 = vld [vmem:[%s168 + $0x52] sm:$0xff]
        %v2525 = vld [vmem:[%s168 + $0x5a] sm:$0xff]
        %v2526 = vld [vmem:[%s168 + $0x62] sm:$0xff]
        %v2527 = vld [vmem:[%s168 + $0x6a] sm:$0xff]
        %v2528 = vld [vmem:[%s168 + $0x72] sm:$0xff]
        %v2529 = vld [vmem:[%s168 + $0x7a] sm:$0xff]
        %v2530 = vld [vmem:[%s168 + $0x82] sm:$0xff]
        %v2531 = vld [vmem:[%s168 + $0x8a] sm:$0xff]
        %v2532 = vld [vmem:[%s168 + $0x92] sm:$0xff]
        %v2533 = vld [vmem:[%s168 + $0x9a] sm:$0xff]
        %v2534 = vld [vmem:[%s168 + $0xa2] sm:$0xff]
        %v2535 = vld [vmem:[%s168 + $0xaa] sm:$0xff]
        %v2536 = vld [vmem:[%s168 + $0xb2] sm:$0xff]
        %v2537 = vld [vmem:[%s168 + $0xba] sm:$0xff]
        %v2538 = vld [vmem:[%s168 + $0xc2] sm:$0xff]
        %v2539 = vld [vmem:[%s168 + $0xca] sm:$0xff]
        %v2540 = vld [vmem:[%s168 + $0xd2] sm:$0xff]
        %v2541 = vld [vmem:[%s168 + $0xda] sm:$0xff]
        %v2542 = vld [vmem:[%s168 + $0xe2] sm:$0xff]
        %v2543 = vld [vmem:[%s168 + $0xea] sm:$0xff]
        %v2544 = vld [vmem:[%s168 + $0xf2] sm:$0xff]
        %v2545 = vld [vmem:[%s168 + $0xfa] sm:$0xff]
        %v2546 = vsel %vm2482, 1, 0
        %v2547 = vsel %vm2483, 1, 0
        %v2548 = vsel %vm2484, 1, 0
        %v2549 = vsel %vm2485, 1, 0
        %v2550 = vsel %vm2486, 1, 0
        %v2551 = vsel %vm2487, 1, 0
        %v2552 = vsel %vm2488, 1, 0
        %v2553 = vsel %vm2489, 1, 0
        %v2554 = vsel %vm2490, 1, 0
        %v2555 = vsel %vm2491, 1, 0
        %v2556 = vsel %vm2492, 1, 0
        %v2557 = vsel %vm2493, 1, 0
        %v2558 = vsel %vm2494, 1, 0
        %v2559 = vsel %vm2495, 1, 0
        %v2560 = vsel %vm2496, 1, 0
        %v2561 = vsel %vm2497, 1, 0
        %v2562 = vsel %vm2498, 1, 0
        %v2563 = vsel %vm2499, 1, 0
        %v2564 = vsel %vm2500, 1, 0
        %v2565 = vsel %vm2501, 1, 0
        %v2566 = vsel %vm2502, 1, 0
        %v2567 = vsel %vm2503, 1, 0
        %v2568 = vsel %vm2504, 1, 0
        %v2569 = vsel %vm2505, 1, 0
        %v2570 = vsel %vm2506, 1, 0
        %v2571 = vsel %vm2507, 1, 0
        %v2572 = vsel %vm2508, 1, 0
        %v2573 = vsel %vm2509, 1, 0
        %v2574 = vsel %vm2510, 1, 0
        %v2575 = vsel %vm2511, 1, 0
        %v2576 = vsel %vm2512, 1, 0
        %v2577 = vsel %vm2513, 1, 0
        %vm2578 = vcmp.eq.s32.totalorder %v2546, 1
        %vm2579 = vcmp.eq.s32.totalorder %v2547, 1
        %vm2580 = vcmp.eq.s32.totalorder %v2548, 1
        %vm2581 = vcmp.eq.s32.totalorder %v2549, 1
        %vm2582 = vcmp.eq.s32.totalorder %v2550, 1
        %vm2583 = vcmp.eq.s32.totalorder %v2551, 1
        %vm2584 = vcmp.eq.s32.totalorder %v2552, 1
        %vm2585 = vcmp.eq.s32.totalorder %v2553, 1
        %vm2586 = vcmp.eq.s32.totalorder %v2554, 1
        %vm2587 = vcmp.eq.s32.totalorder %v2555, 1
        %vm2588 = vcmp.eq.s32.totalorder %v2556, 1
        %vm2589 = vcmp.eq.s32.totalorder %v2557, 1
        %vm2590 = vcmp.eq.s32.totalorder %v2558, 1
        %vm2591 = vcmp.eq.s32.totalorder %v2559, 1
        %vm2592 = vcmp.eq.s32.totalorder %v2560, 1
        %vm2593 = vcmp.eq.s32.totalorder %v2561, 1
        %vm2594 = vcmp.eq.s32.totalorder %v2562, 1
        %vm2595 = vcmp.eq.s32.totalorder %v2563, 1
        %vm2596 = vcmp.eq.s32.totalorder %v2564, 1
        %vm2597 = vcmp.eq.s32.totalorder %v2565, 1
        %vm2598 = vcmp.eq.s32.totalorder %v2566, 1
        %vm2599 = vcmp.eq.s32.totalorder %v2567, 1
        %vm2600 = vcmp.eq.s32.totalorder %v2568, 1
        %vm2601 = vcmp.eq.s32.totalorder %v2569, 1
        %vm2602 = vcmp.eq.s32.totalorder %v2570, 1
        %vm2603 = vcmp.eq.s32.totalorder %v2571, 1
        %vm2604 = vcmp.eq.s32.totalorder %v2572, 1
        %vm2605 = vcmp.eq.s32.totalorder %v2573, 1
        %vm2606 = vcmp.eq.s32.totalorder %v2574, 1
        %vm2607 = vcmp.eq.s32.totalorder %v2575, 1
        %vm2608 = vcmp.eq.s32.totalorder %v2576, 1
        %vm2609 = vcmp.eq.s32.totalorder %v2577, 1
        %v2610 = vsel %vm2578, %v2514, 0.0
        %v2611 = vsel %vm2579, %v2515, 0.0
        %v2612 = vsel %vm2580, %v2516, 0.0
        %v2613 = vsel %vm2581, %v2517, 0.0
        %v2614 = vsel %vm2582, %v2518, 0.0
        %v2615 = vsel %vm2583, %v2519, 0.0
        %v2616 = vsel %vm2584, %v2520, 0.0
        %v2617 = vsel %vm2585, %v2521, 0.0
        %v2618 = vsel %vm2586, %v2522, 0.0
        %v2619 = vsel %vm2587, %v2523, 0.0
        %v2620 = vsel %vm2588, %v2524, 0.0
        %v2621 = vsel %vm2589, %v2525, 0.0
        %v2622 = vsel %vm2590, %v2526, 0.0
        %v2623 = vsel %vm2591, %v2527, 0.0
        %v2624 = vsel %vm2592, %v2528, 0.0
        %v2625 = vsel %vm2593, %v2529, 0.0
        %v2626 = vsel %vm2594, %v2530, 0.0
        %v2627 = vsel %vm2595, %v2531, 0.0
        %v2628 = vsel %vm2596, %v2532, 0.0
        %v2629 = vsel %vm2597, %v2533, 0.0
        %v2630 = vsel %vm2598, %v2534, 0.0
        %v2631 = vsel %vm2599, %v2535, 0.0
        %v2632 = vsel %vm2600, %v2536, 0.0
        %v2633 = vsel %vm2601, %v2537, 0.0
        %v2634 = vsel %vm2602, %v2538, 0.0
        %v2635 = vsel %vm2603, %v2539, 0.0
        %v2636 = vsel %vm2604, %v2540, 0.0
        %v2637 = vsel %vm2605, %v2541, 0.0
        %v2638 = vsel %vm2606, %v2542, 0.0
        %v2639 = vsel %vm2607, %v2543, 0.0
        %v2640 = vsel %vm2608, %v2544, 0.0
        %v2641 = vsel %vm2609, %v2545, 0.0
        %s2642 = scalar_lea.vmem %s1, 8
        %v2643 = vld [vmem:[%s2642] sm:$0xf]
        %v2645 = vsel %vm848, %v2610, 0
        %v2648 = vsel %vm848, %v2611, 0
        %v2651 = vsel %vm848, %v2612, 0
        %v2654 = vsel %vm848, %v2613, 0
        %v2657 = vsel %vm848, %v2614, 0
        %v2660 = vsel %vm848, %v2615, 0
        %v2663 = vsel %vm848, %v2616, 0
        %v2666 = vsel %vm848, %v2617, 0
        %v2669 = vsel %vm848, %v2618, 0
        %v2672 = vsel %vm848, %v2619, 0
        %v2675 = vsel %vm848, %v2620, 0
        %v2678 = vsel %vm848, %v2621, 0
        %v2681 = vsel %vm848, %v2622, 0
        %v2684 = vsel %vm848, %v2623, 0
        %v2687 = vsel %vm848, %v2624, 0
        %v2690 = vsel %vm848, %v2625, 0
        %v2693 = vsel %vm848, %v2626, 0
        %v2696 = vsel %vm848, %v2627, 0
        %v2699 = vsel %vm848, %v2628, 0
        %v2702 = vsel %vm848, %v2629, 0
        %v2705 = vsel %vm848, %v2630, 0
        %v2708 = vsel %vm848, %v2631, 0
        %v2711 = vsel %vm848, %v2632, 0
        %v2714 = vsel %vm848, %v2633, 0
        %v2717 = vsel %vm848, %v2634, 0
        %v2720 = vsel %vm848, %v2635, 0
        %v2723 = vsel %vm848, %v2636, 0
        %v2726 = vsel %vm848, %v2637, 0
        %v2729 = vsel %vm848, %v2638, 0
        %v2732 = vsel %vm848, %v2639, 0
        %v2735 = vsel %vm848, %v2640, 0
        %v2738 = vsel %vm848, %v2641, 0
        %v2741 = vsel %vm945, %v2643, 0
        %2743 = vmatpush.msra.mxu0 0.0
        %2744 = vmatpush.msra.mxu0 0.0
        %2745 = vmatpush.msra.mxu0 0.0
        %2746 = vmatpush.msra.mxu0 0.0
        %2747 = vmatpush.msra.mxu0 0.0
        %2748 = vmatpush.msra.mxu0 0.0
        %2749 = vmatpush.msra.mxu0 0.0
        %2750 = vmatpush.msra.mxu0 0.0
        %2751 = vmatpush.msra.mxu0 0.0
        %2752 = vmatpush.msra.mxu0 0.0
        %2753 = vmatpush.msra.mxu0 0.0
        %2754 = vmatpush.msra.mxu0 0.0
        %2755 = vmatpush.msra.mxu0 0.0
        %2756 = vmatpush.msra.mxu0 0.0
        %2757 = vmatpush.msra.mxu0 0.0
        %2758 = vmatpush.msra.mxu0 %v2741
        %2759 = vmatmul.f32.gmra.mxu0 %v2645
        %v2760 = vpop.f32.mrf.mxu0
        %v2761 = vadd.f32 0.0, %v2760
        %2762 = vmatmul.f32.gmra.mxu0 %v2648
        %v2763 = vpop.f32.mrf.mxu0
        %v2764 = vadd.f32 0.0, %v2763
        %2765 = vmatmul.f32.gmra.mxu0 %v2651
        %v2766 = vpop.f32.mrf.mxu0
        %v2767 = vadd.f32 0.0, %v2766
        %2768 = vmatmul.f32.gmra.mxu0 %v2654
        %v2769 = vpop.f32.mrf.mxu0
        %v2770 = vadd.f32 0.0, %v2769
        %2771 = vmatmul.f32.gmra.mxu0 %v2657
        %v2772 = vpop.f32.mrf.mxu0
        %v2773 = vadd.f32 0.0, %v2772
        %2774 = vmatmul.f32.gmra.mxu0 %v2660
        %v2775 = vpop.f32.mrf.mxu0
        %v2776 = vadd.f32 0.0, %v2775
        %2777 = vmatmul.f32.gmra.mxu0 %v2663
        %v2778 = vpop.f32.mrf.mxu0
        %v2779 = vadd.f32 0.0, %v2778
        %2780 = vmatmul.f32.gmra.mxu0 %v2666
        %v2781 = vpop.f32.mrf.mxu0
        %v2782 = vadd.f32 0.0, %v2781
        %2783 = vmatmul.f32.gmra.mxu0 %v2669
        %v2784 = vpop.f32.mrf.mxu0
        %v2785 = vadd.f32 0.0, %v2784
        %2786 = vmatmul.f32.gmra.mxu0 %v2672
        %v2787 = vpop.f32.mrf.mxu0
        %v2788 = vadd.f32 0.0, %v2787
        %2789 = vmatmul.f32.gmra.mxu0 %v2675
        %v2790 = vpop.f32.mrf.mxu0
        %v2791 = vadd.f32 0.0, %v2790
        %2792 = vmatmul.f32.gmra.mxu0 %v2678
        %v2793 = vpop.f32.mrf.mxu0
        %v2794 = vadd.f32 0.0, %v2793
        %2795 = vmatmul.f32.gmra.mxu0 %v2681
        %v2796 = vpop.f32.mrf.mxu0
        %v2797 = vadd.f32 0.0, %v2796
        %2798 = vmatmul.f32.gmra.mxu0 %v2684
        %v2799 = vpop.f32.mrf.mxu0
        %v2800 = vadd.f32 0.0, %v2799
        %2801 = vmatmul.f32.gmra.mxu0 %v2687
        %v2802 = vpop.f32.mrf.mxu0
        %v2803 = vadd.f32 0.0, %v2802
        %2804 = vmatmul.f32.gmra.mxu0 %v2690
        %v2805 = vpop.f32.mrf.mxu0
        %v2806 = vadd.f32 0.0, %v2805
        %2807 = vmatmul.f32.gmra.mxu0 %v2693
        %v2808 = vpop.f32.mrf.mxu0
        %v2809 = vadd.f32 0.0, %v2808
        %2810 = vmatmul.f32.gmra.mxu0 %v2696
        %v2811 = vpop.f32.mrf.mxu0
        %v2812 = vadd.f32 0.0, %v2811
        %2813 = vmatmul.f32.gmra.mxu0 %v2699
        %v2814 = vpop.f32.mrf.mxu0
        %v2815 = vadd.f32 0.0, %v2814
        %2816 = vmatmul.f32.gmra.mxu0 %v2702
        %v2817 = vpop.f32.mrf.mxu0
        %v2818 = vadd.f32 0.0, %v2817
        %2819 = vmatmul.f32.gmra.mxu0 %v2705
        %v2820 = vpop.f32.mrf.mxu0
        %v2821 = vadd.f32 0.0, %v2820
        %2822 = vmatmul.f32.gmra.mxu0 %v2708
        %v2823 = vpop.f32.mrf.mxu0
        %v2824 = vadd.f32 0.0, %v2823
        %2825 = vmatmul.f32.gmra.mxu0 %v2711
        %v2826 = vpop.f32.mrf.mxu0
        %v2827 = vadd.f32 0.0, %v2826
        %2828 = vmatmul.f32.gmra.mxu0 %v2714
        %v2829 = vpop.f32.mrf.mxu0
        %v2830 = vadd.f32 0.0, %v2829
        %2831 = vmatmul.f32.gmra.mxu0 %v2717
        %v2832 = vpop.f32.mrf.mxu0
        %v2833 = vadd.f32 0.0, %v2832
        %2834 = vmatmul.f32.gmra.mxu0 %v2720
        %v2835 = vpop.f32.mrf.mxu0
        %v2836 = vadd.f32 0.0, %v2835
        %2837 = vmatmul.f32.gmra.mxu0 %v2723
        %v2838 = vpop.f32.mrf.mxu0
        %v2839 = vadd.f32 0.0, %v2838
        %2840 = vmatmul.f32.gmra.mxu0 %v2726
        %v2841 = vpop.f32.mrf.mxu0
        %v2842 = vadd.f32 0.0, %v2841
        %2843 = vmatmul.f32.gmra.mxu0 %v2729
        %v2844 = vpop.f32.mrf.mxu0
        %v2845 = vadd.f32 0.0, %v2844
        %2846 = vmatmul.f32.gmra.mxu0 %v2732
        %v2847 = vpop.f32.mrf.mxu0
        %v2848 = vadd.f32 0.0, %v2847
        %2849 = vmatmul.f32.gmra.mxu0 %v2735
        %v2850 = vpop.f32.mrf.mxu0
        %v2851 = vadd.f32 0.0, %v2850
        %2852 = vmatmul.f32.gmra.mxu0 %v2738
        %v2853 = vpop.f32.mrf.mxu0
        %v2854 = vadd.f32 0.0, %v2853
        %2855 = vdwg.mxu0
        %v2856 = vadd.f32 %v2386, %v2761
        %v2857 = vadd.f32 %v2387, %v2764
        %v2858 = vadd.f32 %v2388, %v2767
        %v2859 = vadd.f32 %v2389, %v2770
        %v2860 = vadd.f32 %v2390, %v2773
        %v2861 = vadd.f32 %v2391, %v2776
        %v2862 = vadd.f32 %v2392, %v2779
        %v2863 = vadd.f32 %v2393, %v2782
        %v2864 = vadd.f32 %v2394, %v2785
        %v2865 = vadd.f32 %v2395, %v2788
        %v2866 = vadd.f32 %v2396, %v2791
        %v2867 = vadd.f32 %v2397, %v2794
        %v2868 = vadd.f32 %v2398, %v2797
        %v2869 = vadd.f32 %v2399, %v2800
        %v2870 = vadd.f32 %v2400, %v2803
        %v2871 = vadd.f32 %v2401, %v2806
        %v2872 = vadd.f32 %v2402, %v2809
        %v2873 = vadd.f32 %v2403, %v2812
        %v2874 = vadd.f32 %v2404, %v2815
        %v2875 = vadd.f32 %v2405, %v2818
        %v2876 = vadd.f32 %v2406, %v2821
        %v2877 = vadd.f32 %v2407, %v2824
        %v2878 = vadd.f32 %v2408, %v2827
        %v2879 = vadd.f32 %v2409, %v2830
        %v2880 = vadd.f32 %v2410, %v2833
        %v2881 = vadd.f32 %v2411, %v2836
        %v2882 = vadd.f32 %v2412, %v2839
        %v2883 = vadd.f32 %v2413, %v2842
        %v2884 = vadd.f32 %v2414, %v2845
        %v2885 = vadd.f32 %v2415, %v2848
        %v2886 = vadd.f32 %v2416, %v2851
        %v2887 = vadd.f32 %v2417, %v2854
        %v2888 = vld [vmem:[%s168 + $0x12] sm:$0xff]
        %v2889 = vld [vmem:[%s168 + $0x1a] sm:$0xff]
        %v2890 = vld [vmem:[%s168 + $0x22] sm:$0xff]
        %v2891 = vld [vmem:[%s168 + $0x2a] sm:$0xff]
        %v2892 = vld [vmem:[%s168 + $0x32] sm:$0xff]
        %v2893 = vld [vmem:[%s168 + $0x3a] sm:$0xff]
        %v2894 = vld [vmem:[%s168 + $0x42] sm:$0xff]
        %v2895 = vld [vmem:[%s168 + $0x4a] sm:$0xff]
        %v2896 = vld [vmem:[%s168 + $0x52] sm:$0xff]
        %v2897 = vld [vmem:[%s168 + $0x5a] sm:$0xff]
        %v2898 = vld [vmem:[%s168 + $0x62] sm:$0xff]
        %v2899 = vld [vmem:[%s168 + $0x6a] sm:$0xff]
        %v2900 = vld [vmem:[%s168 + $0x72] sm:$0xff]
        %v2901 = vld [vmem:[%s168 + $0x7a] sm:$0xff]
        %v2902 = vld [vmem:[%s168 + $0x82] sm:$0xff]
        %v2903 = vld [vmem:[%s168 + $0x8a] sm:$0xff]
        %v2904 = vld [vmem:[%s168 + $0x92] sm:$0xff]
        %v2905 = vld [vmem:[%s168 + $0x9a] sm:$0xff]
        %v2906 = vld [vmem:[%s168 + $0xa2] sm:$0xff]
        %v2907 = vld [vmem:[%s168 + $0xaa] sm:$0xff]
        %v2908 = vld [vmem:[%s168 + $0xb2] sm:$0xff]
        %v2909 = vld [vmem:[%s168 + $0xba] sm:$0xff]
        %v2910 = vld [vmem:[%s168 + $0xc2] sm:$0xff]
        %v2911 = vld [vmem:[%s168 + $0xca] sm:$0xff]
        %v2912 = vld [vmem:[%s168 + $0xd2] sm:$0xff]
        %v2913 = vld [vmem:[%s168 + $0xda] sm:$0xff]
        %v2914 = vld [vmem:[%s168 + $0xe2] sm:$0xff]
        %v2915 = vld [vmem:[%s168 + $0xea] sm:$0xff]
        %v2916 = vld [vmem:[%s168 + $0xf2] sm:$0xff]
        %v2917 = vld [vmem:[%s168 + $0xfa] sm:$0xff]
        %v2918 = vld [vmem:[%s168 + $0x102] sm:$0xff]
        %v2919 = vld [vmem:[%s168 + $0x10a] sm:$0xff]
        %v2920 = vsel %vm2578, %v2888, 0.0
        %v2921 = vsel %vm2579, %v2889, 0.0
        %v2922 = vsel %vm2580, %v2890, 0.0
        %v2923 = vsel %vm2581, %v2891, 0.0
        %v2924 = vsel %vm2582, %v2892, 0.0
        %v2925 = vsel %vm2583, %v2893, 0.0
        %v2926 = vsel %vm2584, %v2894, 0.0
        %v2927 = vsel %vm2585, %v2895, 0.0
        %v2928 = vsel %vm2586, %v2896, 0.0
        %v2929 = vsel %vm2587, %v2897, 0.0
        %v2930 = vsel %vm2588, %v2898, 0.0
        %v2931 = vsel %vm2589, %v2899, 0.0
        %v2932 = vsel %vm2590, %v2900, 0.0
        %v2933 = vsel %vm2591, %v2901, 0.0
        %v2934 = vsel %vm2592, %v2902, 0.0
        %v2935 = vsel %vm2593, %v2903, 0.0
        %v2936 = vsel %vm2594, %v2904, 0.0
        %v2937 = vsel %vm2595, %v2905, 0.0
        %v2938 = vsel %vm2596, %v2906, 0.0
        %v2939 = vsel %vm2597, %v2907, 0.0
        %v2940 = vsel %vm2598, %v2908, 0.0
        %v2941 = vsel %vm2599, %v2909, 0.0
        %v2942 = vsel %vm2600, %v2910, 0.0
        %v2943 = vsel %vm2601, %v2911, 0.0
        %v2944 = vsel %vm2602, %v2912, 0.0
        %v2945 = vsel %vm2603, %v2913, 0.0
        %v2946 = vsel %vm2604, %v2914, 0.0
        %v2947 = vsel %vm2605, %v2915, 0.0
        %v2948 = vsel %vm2606, %v2916, 0.0
        %v2949 = vsel %vm2607, %v2917, 0.0
        %v2950 = vsel %vm2608, %v2918, 0.0
        %v2951 = vsel %vm2609, %v2919, 0.0
        %s2952 = scalar_lea.vmem %s1, 20
        %v2953 = vld [vmem:[%s2952] sm:$0xf]
        %v2955 = vsel %vm848, %v2920, 0
        %v2958 = vsel %vm848, %v2921, 0
        %v2961 = vsel %vm848, %v2922, 0
        %v2964 = vsel %vm848, %v2923, 0
        %v2967 = vsel %vm848, %v2924, 0
        %v2970 = vsel %vm848, %v2925, 0
        %v2973 = vsel %vm848, %v2926, 0
        %v2976 = vsel %vm848, %v2927, 0
        %v2979 = vsel %vm848, %v2928, 0
        %v2982 = vsel %vm848, %v2929, 0
        %v2985 = vsel %vm848, %v2930, 0
        %v2988 = vsel %vm848, %v2931, 0
        %v2991 = vsel %vm848, %v2932, 0
        %v2994 = vsel %vm848, %v2933, 0
        %v2997 = vsel %vm848, %v2934, 0
        %v3000 = vsel %vm848, %v2935, 0
        %v3003 = vsel %vm848, %v2936, 0
        %v3006 = vsel %vm848, %v2937, 0
        %v3009 = vsel %vm848, %v2938, 0
        %v3012 = vsel %vm848, %v2939, 0
        %v3015 = vsel %vm848, %v2940, 0
        %v3018 = vsel %vm848, %v2941, 0
        %v3021 = vsel %vm848, %v2942, 0
        %v3024 = vsel %vm848, %v2943, 0
        %v3027 = vsel %vm848, %v2944, 0
        %v3030 = vsel %vm848, %v2945, 0
        %v3033 = vsel %vm848, %v2946, 0
        %v3036 = vsel %vm848, %v2947, 0
        %v3039 = vsel %vm848, %v2948, 0
        %v3042 = vsel %vm848, %v2949, 0
        %v3045 = vsel %vm848, %v2950, 0
        %v3048 = vsel %vm848, %v2951, 0
        %v3051 = vsel %vm945, %v2953, 0
        %3053 = vmatpush.msra.mxu0 0.0
        %3054 = vmatpush.msra.mxu0 0.0
        %3055 = vmatpush.msra.mxu0 0.0
        %3056 = vmatpush.msra.mxu0 0.0
        %3057 = vmatpush.msra.mxu0 0.0
        %3058 = vmatpush.msra.mxu0 0.0
        %3059 = vmatpush.msra.mxu0 0.0
        %3060 = vmatpush.msra.mxu0 0.0
        %3061 = vmatpush.msra.mxu0 0.0
        %3062 = vmatpush.msra.mxu0 0.0
        %3063 = vmatpush.msra.mxu0 0.0
        %3064 = vmatpush.msra.mxu0 0.0
        %3065 = vmatpush.msra.mxu0 0.0
        %3066 = vmatpush.msra.mxu0 0.0
        %3067 = vmatpush.msra.mxu0 0.0
        %3068 = vmatpush.msra.mxu0 %v3051
        %3069 = vmatmul.f32.gmra.mxu0 %v2955
        %v3070 = vpop.f32.mrf.mxu0
        %v3071 = vadd.f32 0.0, %v3070
        %3072 = vmatmul.f32.gmra.mxu0 %v2958
        %v3073 = vpop.f32.mrf.mxu0
        %v3074 = vadd.f32 0.0, %v3073
        %3075 = vmatmul.f32.gmra.mxu0 %v2961
        %v3076 = vpop.f32.mrf.mxu0
        %v3077 = vadd.f32 0.0, %v3076
        %3078 = vmatmul.f32.gmra.mxu0 %v2964
        %v3079 = vpop.f32.mrf.mxu0
        %v3080 = vadd.f32 0.0, %v3079
        %3081 = vmatmul.f32.gmra.mxu0 %v2967
        %v3082 = vpop.f32.mrf.mxu0
        %v3083 = vadd.f32 0.0, %v3082
        %3084 = vmatmul.f32.gmra.mxu0 %v2970
        %v3085 = vpop.f32.mrf.mxu0
        %v3086 = vadd.f32 0.0, %v3085
        %3087 = vmatmul.f32.gmra.mxu0 %v2973
        %v3088 = vpop.f32.mrf.mxu0
        %v3089 = vadd.f32 0.0, %v3088
        %3090 = vmatmul.f32.gmra.mxu0 %v2976
        %v3091 = vpop.f32.mrf.mxu0
        %v3092 = vadd.f32 0.0, %v3091
        %3093 = vmatmul.f32.gmra.mxu0 %v2979
        %v3094 = vpop.f32.mrf.mxu0
        %v3095 = vadd.f32 0.0, %v3094
        %3096 = vmatmul.f32.gmra.mxu0 %v2982
        %v3097 = vpop.f32.mrf.mxu0
        %v3098 = vadd.f32 0.0, %v3097
        %3099 = vmatmul.f32.gmra.mxu0 %v2985
        %v3100 = vpop.f32.mrf.mxu0
        %v3101 = vadd.f32 0.0, %v3100
        %3102 = vmatmul.f32.gmra.mxu0 %v2988
        %v3103 = vpop.f32.mrf.mxu0
        %v3104 = vadd.f32 0.0, %v3103
        %3105 = vmatmul.f32.gmra.mxu0 %v2991
        %v3106 = vpop.f32.mrf.mxu0
        %v3107 = vadd.f32 0.0, %v3106
        %3108 = vmatmul.f32.gmra.mxu0 %v2994
        %v3109 = vpop.f32.mrf.mxu0
        %v3110 = vadd.f32 0.0, %v3109
        %3111 = vmatmul.f32.gmra.mxu0 %v2997
        %v3112 = vpop.f32.mrf.mxu0
        %v3113 = vadd.f32 0.0, %v3112
        %3114 = vmatmul.f32.gmra.mxu0 %v3000
        %v3115 = vpop.f32.mrf.mxu0
        %v3116 = vadd.f32 0.0, %v3115
        %3117 = vmatmul.f32.gmra.mxu0 %v3003
        %v3118 = vpop.f32.mrf.mxu0
        %v3119 = vadd.f32 0.0, %v3118
        %3120 = vmatmul.f32.gmra.mxu0 %v3006
        %v3121 = vpop.f32.mrf.mxu0
        %v3122 = vadd.f32 0.0, %v3121
        %3123 = vmatmul.f32.gmra.mxu0 %v3009
        %v3124 = vpop.f32.mrf.mxu0
        %v3125 = vadd.f32 0.0, %v3124
        %3126 = vmatmul.f32.gmra.mxu0 %v3012
        %v3127 = vpop.f32.mrf.mxu0
        %v3128 = vadd.f32 0.0, %v3127
        %3129 = vmatmul.f32.gmra.mxu0 %v3015
        %v3130 = vpop.f32.mrf.mxu0
        %v3131 = vadd.f32 0.0, %v3130
        %3132 = vmatmul.f32.gmra.mxu0 %v3018
        %v3133 = vpop.f32.mrf.mxu0
        %v3134 = vadd.f32 0.0, %v3133
        %3135 = vmatmul.f32.gmra.mxu0 %v3021
        %v3136 = vpop.f32.mrf.mxu0
        %v3137 = vadd.f32 0.0, %v3136
        %3138 = vmatmul.f32.gmra.mxu0 %v3024
        %v3139 = vpop.f32.mrf.mxu0
        %v3140 = vadd.f32 0.0, %v3139
        %3141 = vmatmul.f32.gmra.mxu0 %v3027
        %v3142 = vpop.f32.mrf.mxu0
        %v3143 = vadd.f32 0.0, %v3142
        %3144 = vmatmul.f32.gmra.mxu0 %v3030
        %v3145 = vpop.f32.mrf.mxu0
        %v3146 = vadd.f32 0.0, %v3145
        %3147 = vmatmul.f32.gmra.mxu0 %v3033
        %v3148 = vpop.f32.mrf.mxu0
        %v3149 = vadd.f32 0.0, %v3148
        %3150 = vmatmul.f32.gmra.mxu0 %v3036
        %v3151 = vpop.f32.mrf.mxu0
        %v3152 = vadd.f32 0.0, %v3151
        %3153 = vmatmul.f32.gmra.mxu0 %v3039
        %v3154 = vpop.f32.mrf.mxu0
        %v3155 = vadd.f32 0.0, %v3154
        %3156 = vmatmul.f32.gmra.mxu0 %v3042
        %v3157 = vpop.f32.mrf.mxu0
        %v3158 = vadd.f32 0.0, %v3157
        %3159 = vmatmul.f32.gmra.mxu0 %v3045
        %v3160 = vpop.f32.mrf.mxu0
        %v3161 = vadd.f32 0.0, %v3160
        %3162 = vmatmul.f32.gmra.mxu0 %v3048
        %v3163 = vpop.f32.mrf.mxu0
        %v3164 = vadd.f32 0.0, %v3163
        %3165 = vdwg.mxu0
        %v3166 = vadd.f32 %v2856, %v3071
        %v3167 = vadd.f32 %v2857, %v3074
        %v3168 = vadd.f32 %v2858, %v3077
        %v3169 = vadd.f32 %v2859, %v3080
        %v3170 = vadd.f32 %v2860, %v3083
        %v3171 = vadd.f32 %v2861, %v3086
        %v3172 = vadd.f32 %v2862, %v3089
        %v3173 = vadd.f32 %v2863, %v3092
        %v3174 = vadd.f32 %v2864, %v3095
        %v3175 = vadd.f32 %v2865, %v3098
        %v3176 = vadd.f32 %v2866, %v3101
        %v3177 = vadd.f32 %v2867, %v3104
        %v3178 = vadd.f32 %v2868, %v3107
        %v3179 = vadd.f32 %v2869, %v3110
        %v3180 = vadd.f32 %v2870, %v3113
        %v3181 = vadd.f32 %v2871, %v3116
        %v3182 = vadd.f32 %v2872, %v3119
        %v3183 = vadd.f32 %v2873, %v3122
        %v3184 = vadd.f32 %v2874, %v3125
        %v3185 = vadd.f32 %v2875, %v3128
        %v3186 = vadd.f32 %v2876, %v3131
        %v3187 = vadd.f32 %v2877, %v3134
        %v3188 = vadd.f32 %v2878, %v3137
        %v3189 = vadd.f32 %v2879, %v3140
        %v3190 = vadd.f32 %v2880, %v3143
        %v3191 = vadd.f32 %v2881, %v3146
        %v3192 = vadd.f32 %v2882, %v3149
        %v3193 = vadd.f32 %v2883, %v3152
        %v3194 = vadd.f32 %v2884, %v3155
        %v3195 = vadd.f32 %v2885, %v3158
        %v3196 = vadd.f32 %v2886, %v3161
        %v3197 = vadd.f32 %v2887, %v3164
        %v3198 = vld [vmem:[%s168 + $0x22] sm:$0xff]
        %v3199 = vld [vmem:[%s168 + $0x2a] sm:$0xff]
        %v3200 = vld [vmem:[%s168 + $0x32] sm:$0xff]
        %v3201 = vld [vmem:[%s168 + $0x3a] sm:$0xff]
        %v3202 = vld [vmem:[%s168 + $0x42] sm:$0xff]
        %v3203 = vld [vmem:[%s168 + $0x4a] sm:$0xff]
        %v3204 = vld [vmem:[%s168 + $0x52] sm:$0xff]
        %v3205 = vld [vmem:[%s168 + $0x5a] sm:$0xff]
        %v3206 = vld [vmem:[%s168 + $0x62] sm:$0xff]
        %v3207 = vld [vmem:[%s168 + $0x6a] sm:$0xff]
        %v3208 = vld [vmem:[%s168 + $0x72] sm:$0xff]
        %v3209 = vld [vmem:[%s168 + $0x7a] sm:$0xff]
        %v3210 = vld [vmem:[%s168 + $0x82] sm:$0xff]
        %v3211 = vld [vmem:[%s168 + $0x8a] sm:$0xff]
        %v3212 = vld [vmem:[%s168 + $0x92] sm:$0xff]
        %v3213 = vld [vmem:[%s168 + $0x9a] sm:$0xff]
        %v3214 = vld [vmem:[%s168 + $0xa2] sm:$0xff]
        %v3215 = vld [vmem:[%s168 + $0xaa] sm:$0xff]
        %v3216 = vld [vmem:[%s168 + $0xb2] sm:$0xff]
        %v3217 = vld [vmem:[%s168 + $0xba] sm:$0xff]
        %v3218 = vld [vmem:[%s168 + $0xc2] sm:$0xff]
        %v3219 = vld [vmem:[%s168 + $0xca] sm:$0xff]
        %v3220 = vld [vmem:[%s168 + $0xd2] sm:$0xff]
        %v3221 = vld [vmem:[%s168 + $0xda] sm:$0xff]
        %v3222 = vld [vmem:[%s168 + $0xe2] sm:$0xff]
        %v3223 = vld [vmem:[%s168 + $0xea] sm:$0xff]
        %v3224 = vld [vmem:[%s168 + $0xf2] sm:$0xff]
        %v3225 = vld [vmem:[%s168 + $0xfa] sm:$0xff]
        %v3226 = vld [vmem:[%s168 + $0x102] sm:$0xff]
        %v3227 = vld [vmem:[%s168 + $0x10a] sm:$0xff]
        %v3228 = vld [vmem:[%s168 + $0x112] sm:$0xff]
        %v3229 = vld [vmem:[%s168 + $0x11a] sm:$0xff]
        %v3230 = vsel %vm2578, %v3198, 0.0
        %v3231 = vsel %vm2579, %v3199, 0.0
        %v3232 = vsel %vm2580, %v3200, 0.0
        %v3233 = vsel %vm2581, %v3201, 0.0
        %v3234 = vsel %vm2582, %v3202, 0.0
        %v3235 = vsel %vm2583, %v3203, 0.0
        %v3236 = vsel %vm2584, %v3204, 0.0
        %v3237 = vsel %vm2585, %v3205, 0.0
        %v3238 = vsel %vm2586, %v3206, 0.0
        %v3239 = vsel %vm2587, %v3207, 0.0
        %v3240 = vsel %vm2588, %v3208, 0.0
        %v3241 = vsel %vm2589, %v3209, 0.0
        %v3242 = vsel %vm2590, %v3210, 0.0
        %v3243 = vsel %vm2591, %v3211, 0.0
        %v3244 = vsel %vm2592, %v3212, 0.0
        %v3245 = vsel %vm2593, %v3213, 0.0
        %v3246 = vsel %vm2594, %v3214, 0.0
        %v3247 = vsel %vm2595, %v3215, 0.0
        %v3248 = vsel %vm2596, %v3216, 0.0
        %v3249 = vsel %vm2597, %v3217, 0.0
        %v3250 = vsel %vm2598, %v3218, 0.0
        %v3251 = vsel %vm2599, %v3219, 0.0
        %v3252 = vsel %vm2600, %v3220, 0.0
        %v3253 = vsel %vm2601, %v3221, 0.0
        %v3254 = vsel %vm2602, %v3222, 0.0
        %v3255 = vsel %vm2603, %v3223, 0.0
        %v3256 = vsel %vm2604, %v3224, 0.0
        %v3257 = vsel %vm2605, %v3225, 0.0
        %v3258 = vsel %vm2606, %v3226, 0.0
        %v3259 = vsel %vm2607, %v3227, 0.0
        %v3260 = vsel %vm2608, %v3228, 0.0
        %v3261 = vsel %vm2609, %v3229, 0.0
        %s3262 = scalar_lea.vmem %s1, 32
        %v3263 = vld [vmem:[%s3262] sm:$0xf]
        %v3265 = vsel %vm848, %v3230, 0
        %v3268 = vsel %vm848, %v3231, 0
        %v3271 = vsel %vm848, %v3232, 0
        %v3274 = vsel %vm848, %v3233, 0
        %v3277 = vsel %vm848, %v3234, 0
        %v3280 = vsel %vm848, %v3235, 0
        %v3283 = vsel %vm848, %v3236, 0
        %v3286 = vsel %vm848, %v3237, 0
        %v3289 = vsel %vm848, %v3238, 0
        %v3292 = vsel %vm848, %v3239, 0
        %v3295 = vsel %vm848, %v3240, 0
        %v3298 = vsel %vm848, %v3241, 0
        %v3301 = vsel %vm848, %v3242, 0
        %v3304 = vsel %vm848, %v3243, 0
        %v3307 = vsel %vm848, %v3244, 0
        %v3310 = vsel %vm848, %v3245, 0
        %v3313 = vsel %vm848, %v3246, 0
        %v3316 = vsel %vm848, %v3247, 0
        %v3319 = vsel %vm848, %v3248, 0
        %v3322 = vsel %vm848, %v3249, 0
        %v3325 = vsel %vm848, %v3250, 0
        %v3328 = vsel %vm848, %v3251, 0
        %v3331 = vsel %vm848, %v3252, 0
        %v3334 = vsel %vm848, %v3253, 0
        %v3337 = vsel %vm848, %v3254, 0
        %v3340 = vsel %vm848, %v3255, 0
        %v3343 = vsel %vm848, %v3256, 0
        %v3346 = vsel %vm848, %v3257, 0
        %v3349 = vsel %vm848, %v3258, 0
        %v3352 = vsel %vm848, %v3259, 0
        %v3355 = vsel %vm848, %v3260, 0
        %v3358 = vsel %vm848, %v3261, 0
        %v3361 = vsel %vm945, %v3263, 0
        %3363 = vmatpush.msra.mxu0 0.0
        %3364 = vmatpush.msra.mxu0 0.0
        %3365 = vmatpush.msra.mxu0 0.0
        %3366 = vmatpush.msra.mxu0 0.0
        %3367 = vmatpush.msra.mxu0 0.0
        %3368 = vmatpush.msra.mxu0 0.0
        %3369 = vmatpush.msra.mxu0 0.0
        %3370 = vmatpush.msra.mxu0 0.0
        %3371 = vmatpush.msra.mxu0 0.0
        %3372 = vmatpush.msra.mxu0 0.0
        %3373 = vmatpush.msra.mxu0 0.0
        %3374 = vmatpush.msra.mxu0 0.0
        %3375 = vmatpush.msra.mxu0 0.0
        %3376 = vmatpush.msra.mxu0 0.0
        %3377 = vmatpush.msra.mxu0 0.0
        %3378 = vmatpush.msra.mxu0 %v3361
        %3379 = vmatmul.f32.gmra.mxu0 %v3265
        %v3380 = vpop.f32.mrf.mxu0
        %v3381 = vadd.f32 0.0, %v3380
        %3382 = vmatmul.f32.gmra.mxu0 %v3268
        %v3383 = vpop.f32.mrf.mxu0
        %v3384 = vadd.f32 0.0, %v3383
        %3385 = vmatmul.f32.gmra.mxu0 %v3271
        %v3386 = vpop.f32.mrf.mxu0
        %v3387 = vadd.f32 0.0, %v3386
        %3388 = vmatmul.f32.gmra.mxu0 %v3274
        %v3389 = vpop.f32.mrf.mxu0
        %v3390 = vadd.f32 0.0, %v3389
        %3391 = vmatmul.f32.gmra.mxu0 %v3277
        %v3392 = vpop.f32.mrf.mxu0
        %v3393 = vadd.f32 0.0, %v3392
        %3394 = vmatmul.f32.gmra.mxu0 %v3280
        %v3395 = vpop.f32.mrf.mxu0
        %v3396 = vadd.f32 0.0, %v3395
        %3397 = vmatmul.f32.gmra.mxu0 %v3283
        %v3398 = vpop.f32.mrf.mxu0
        %v3399 = vadd.f32 0.0, %v3398
        %3400 = vmatmul.f32.gmra.mxu0 %v3286
        %v3401 = vpop.f32.mrf.mxu0
        %v3402 = vadd.f32 0.0, %v3401
        %3403 = vmatmul.f32.gmra.mxu0 %v3289
        %v3404 = vpop.f32.mrf.mxu0
        %v3405 = vadd.f32 0.0, %v3404
        %3406 = vmatmul.f32.gmra.mxu0 %v3292
        %v3407 = vpop.f32.mrf.mxu0
        %v3408 = vadd.f32 0.0, %v3407
        %3409 = vmatmul.f32.gmra.mxu0 %v3295
        %v3410 = vpop.f32.mrf.mxu0
        %v3411 = vadd.f32 0.0, %v3410
        %3412 = vmatmul.f32.gmra.mxu0 %v3298
        %v3413 = vpop.f32.mrf.mxu0
        %v3414 = vadd.f32 0.0, %v3413
        %3415 = vmatmul.f32.gmra.mxu0 %v3301
        %v3416 = vpop.f32.mrf.mxu0
        %v3417 = vadd.f32 0.0, %v3416
        %3418 = vmatmul.f32.gmra.mxu0 %v3304
        %v3419 = vpop.f32.mrf.mxu0
        %v3420 = vadd.f32 0.0, %v3419
        %3421 = vmatmul.f32.gmra.mxu0 %v3307
        %v3422 = vpop.f32.mrf.mxu0
        %v3423 = vadd.f32 0.0, %v3422
        %3424 = vmatmul.f32.gmra.mxu0 %v3310
        %v3425 = vpop.f32.mrf.mxu0
        %v3426 = vadd.f32 0.0, %v3425
        %3427 = vmatmul.f32.gmra.mxu0 %v3313
        %v3428 = vpop.f32.mrf.mxu0
        %v3429 = vadd.f32 0.0, %v3428
        %3430 = vmatmul.f32.gmra.mxu0 %v3316
        %v3431 = vpop.f32.mrf.mxu0
        %v3432 = vadd.f32 0.0, %v3431
        %3433 = vmatmul.f32.gmra.mxu0 %v3319
        %v3434 = vpop.f32.mrf.mxu0
        %v3435 = vadd.f32 0.0, %v3434
        %3436 = vmatmul.f32.gmra.mxu0 %v3322
        %v3437 = vpop.f32.mrf.mxu0
        %v3438 = vadd.f32 0.0, %v3437
        %3439 = vmatmul.f32.gmra.mxu0 %v3325
        %v3440 = vpop.f32.mrf.mxu0
        %v3441 = vadd.f32 0.0, %v3440
        %3442 = vmatmul.f32.gmra.mxu0 %v3328
        %v3443 = vpop.f32.mrf.mxu0
        %v3444 = vadd.f32 0.0, %v3443
        %3445 = vmatmul.f32.gmra.mxu0 %v3331
        %v3446 = vpop.f32.mrf.mxu0
        %v3447 = vadd.f32 0.0, %v3446
        %3448 = vmatmul.f32.gmra.mxu0 %v3334
        %v3449 = vpop.f32.mrf.mxu0
        %v3450 = vadd.f32 0.0, %v3449
        %3451 = vmatmul.f32.gmra.mxu0 %v3337
        %v3452 = vpop.f32.mrf.mxu0
        %v3453 = vadd.f32 0.0, %v3452
        %3454 = vmatmul.f32.gmra.mxu0 %v3340
        %v3455 = vpop.f32.mrf.mxu0
        %v3456 = vadd.f32 0.0, %v3455
        %3457 = vmatmul.f32.gmra.mxu0 %v3343
        %v3458 = vpop.f32.mrf.mxu0
        %v3459 = vadd.f32 0.0, %v3458
        %3460 = vmatmul.f32.gmra.mxu0 %v3346
        %v3461 = vpop.f32.mrf.mxu0
        %v3462 = vadd.f32 0.0, %v3461
        %3463 = vmatmul.f32.gmra.mxu0 %v3349
        %v3464 = vpop.f32.mrf.mxu0
        %v3465 = vadd.f32 0.0, %v3464
        %3466 = vmatmul.f32.gmra.mxu0 %v3352
        %v3467 = vpop.f32.mrf.mxu0
        %v3468 = vadd.f32 0.0, %v3467
        %3469 = vmatmul.f32.gmra.mxu0 %v3355
        %v3470 = vpop.f32.mrf.mxu0
        %v3471 = vadd.f32 0.0, %v3470
        %3472 = vmatmul.f32.gmra.mxu0 %v3358
        %v3473 = vpop.f32.mrf.mxu0
        %v3474 = vadd.f32 0.0, %v3473
        %3475 = vdwg.mxu0
        %v3476 = vadd.f32 %v3166, %v3381
        %v3477 = vadd.f32 %v3167, %v3384
        %v3478 = vadd.f32 %v3168, %v3387
        %v3479 = vadd.f32 %v3169, %v3390
        %v3480 = vadd.f32 %v3170, %v3393
        %v3481 = vadd.f32 %v3171, %v3396
        %v3482 = vadd.f32 %v3172, %v3399
        %v3483 = vadd.f32 %v3173, %v3402
        %v3484 = vadd.f32 %v3174, %v3405
        %v3485 = vadd.f32 %v3175, %v3408
        %v3486 = vadd.f32 %v3176, %v3411
        %v3487 = vadd.f32 %v3177, %v3414
        %v3488 = vadd.f32 %v3178, %v3417
        %v3489 = vadd.f32 %v3179, %v3420
        %v3490 = vadd.f32 %v3180, %v3423
        %v3491 = vadd.f32 %v3181, %v3426
        %v3492 = vadd.f32 %v3182, %v3429
        %v3493 = vadd.f32 %v3183, %v3432
        %v3494 = vadd.f32 %v3184, %v3435
        %v3495 = vadd.f32 %v3185, %v3438
        %v3496 = vadd.f32 %v3186, %v3441
        %v3497 = vadd.f32 %v3187, %v3444
        %v3498 = vadd.f32 %v3188, %v3447
        %v3499 = vadd.f32 %v3189, %v3450
        %v3500 = vadd.f32 %v3190, %v3453
        %v3501 = vadd.f32 %v3191, %v3456
        %v3502 = vadd.f32 %v3192, %v3459
        %v3503 = vadd.f32 %v3193, %v3462
        %v3504 = vadd.f32 %v3194, %v3465
        %v3505 = vadd.f32 %v3195, %v3468
        %v3506 = vadd.f32 %v3196, %v3471
        %v3507 = vadd.f32 %v3197, %v3474
        %v3508 = vld [vmem:[%s2] sm:$0x1]
        %v3510 = vperm.slane %v3508, 0
        %v3512 = vadd.f32 %v3476, %v3510
        %v3513 = vadd.f32 %v3477, %v3510
        %v3514 = vadd.f32 %v3478, %v3510
        %v3515 = vadd.f32 %v3479, %v3510
        %v3516 = vadd.f32 %v3480, %v3510
        %v3517 = vadd.f32 %v3481, %v3510
        %v3518 = vadd.f32 %v3482, %v3510
        %v3519 = vadd.f32 %v3483, %v3510
        %v3520 = vadd.f32 %v3484, %v3510
        %v3521 = vadd.f32 %v3485, %v3510
        %v3522 = vadd.f32 %v3486, %v3510
        %v3523 = vadd.f32 %v3487, %v3510
        %v3524 = vadd.f32 %v3488, %v3510
        %v3525 = vadd.f32 %v3489, %v3510
        %v3526 = vadd.f32 %v3490, %v3510
        %v3527 = vadd.f32 %v3491, %v3510
        %v3528 = vadd.f32 %v3492, %v3510
        %v3529 = vadd.f32 %v3493, %v3510
        %v3530 = vadd.f32 %v3494, %v3510
        %v3531 = vadd.f32 %v3495, %v3510
        %v3532 = vadd.f32 %v3496, %v3510
        %v3533 = vadd.f32 %v3497, %v3510
        %v3534 = vadd.f32 %v3498, %v3510
        %v3535 = vadd.f32 %v3499, %v3510
        %v3536 = vadd.f32 %v3500, %v3510
        %v3537 = vadd.f32 %v3501, %v3510
        %v3538 = vadd.f32 %v3502, %v3510
        %v3539 = vadd.f32 %v3503, %v3510
        %v3540 = vadd.f32 %v3504, %v3510
        %v3541 = vadd.f32 %v3505, %v3510
        %v3542 = vadd.f32 %v3506, %v3510
        %v3543 = vadd.f32 %v3507, %v3510
        %v3544 = vxor.u32 %v3512, 2147483648
        %v3545 = vxor.u32 %v3513, 2147483648
        %v3546 = vxor.u32 %v3514, 2147483648
        %v3547 = vxor.u32 %v3515, 2147483648
        %v3548 = vxor.u32 %v3516, 2147483648
        %v3549 = vxor.u32 %v3517, 2147483648
        %v3550 = vxor.u32 %v3518, 2147483648
        %v3551 = vxor.u32 %v3519, 2147483648
        %v3552 = vxor.u32 %v3520, 2147483648
        %v3553 = vxor.u32 %v3521, 2147483648
        %v3554 = vxor.u32 %v3522, 2147483648
        %v3555 = vxor.u32 %v3523, 2147483648
        %v3556 = vxor.u32 %v3524, 2147483648
        %v3557 = vxor.u32 %v3525, 2147483648
        %v3558 = vxor.u32 %v3526, 2147483648
        %v3559 = vxor.u32 %v3527, 2147483648
        %v3560 = vxor.u32 %v3528, 2147483648
        %v3561 = vxor.u32 %v3529, 2147483648
        %v3562 = vxor.u32 %v3530, 2147483648
        %v3563 = vxor.u32 %v3531, 2147483648
        %v3564 = vxor.u32 %v3532, 2147483648
        %v3565 = vxor.u32 %v3533, 2147483648
        %v3566 = vxor.u32 %v3534, 2147483648
        %v3567 = vxor.u32 %v3535, 2147483648
        %v3568 = vxor.u32 %v3536, 2147483648
        %v3569 = vxor.u32 %v3537, 2147483648
        %v3570 = vxor.u32 %v3538, 2147483648
        %v3571 = vxor.u32 %v3539, 2147483648
        %v3572 = vxor.u32 %v3540, 2147483648
        %v3573 = vxor.u32 %v3541, 2147483648
        %v3574 = vxor.u32 %v3542, 2147483648
        %v3575 = vxor.u32 %v3543, 2147483648
        %v3576 = vmul.f32 %v3544, 1.442695
        %v3577 = vpow.pop %v3576
        %v3578 = vmul.f32 %v3545, 1.442695
        %v3579 = vpow.pop %v3578
        %v3580 = vmul.f32 %v3546, 1.442695
        %v3581 = vpow.pop %v3580
        %v3582 = vmul.f32 %v3547, 1.442695
        %v3583 = vpow.pop %v3582
        %v3584 = vmul.f32 %v3548, 1.442695
        %v3585 = vpow.pop %v3584
        %v3586 = vmul.f32 %v3549, 1.442695
        %v3587 = vpow.pop %v3586
        %v3588 = vmul.f32 %v3550, 1.442695
        %v3589 = vpow.pop %v3588
        %v3590 = vmul.f32 %v3551, 1.442695
        %v3591 = vpow.pop %v3590
        %v3592 = vmul.f32 %v3552, 1.442695
        %v3593 = vpow.pop %v3592
        %v3594 = vmul.f32 %v3553, 1.442695
        %v3595 = vpow.pop %v3594
        %v3596 = vmul.f32 %v3554, 1.442695
        %v3597 = vpow.pop %v3596
        %v3598 = vmul.f32 %v3555, 1.442695
        %v3599 = vpow.pop %v3598
        %v3600 = vmul.f32 %v3556, 1.442695
        %v3601 = vpow.pop %v3600
        %v3602 = vmul.f32 %v3557, 1.442695
        %v3603 = vpow.pop %v3602
        %v3604 = vmul.f32 %v3558, 1.442695
        %v3605 = vpow.pop %v3604
        %v3606 = vmul.f32 %v3559, 1.442695
        %v3607 = vpow.pop %v3606
        %v3608 = vmul.f32 %v3560, 1.442695
        %v3609 = vpow.pop %v3608
        %v3610 = vmul.f32 %v3561, 1.442695
        %v3611 = vpow.pop %v3610
        %v3612 = vmul.f32 %v3562, 1.442695
        %v3613 = vpow.pop %v3612
        %v3614 = vmul.f32 %v3563, 1.442695
        %v3615 = vpow.pop %v3614
        %v3616 = vmul.f32 %v3564, 1.442695
        %v3617 = vpow.pop %v3616
        %v3618 = vmul.f32 %v3565, 1.442695
        %v3619 = vpow.pop %v3618
        %v3620 = vmul.f32 %v3566, 1.442695
        %v3621 = vpow.pop %v3620
        %v3622 = vmul.f32 %v3567, 1.442695
        %v3623 = vpow.pop %v3622
        %v3624 = vmul.f32 %v3568, 1.442695
        %v3625 = vpow.pop %v3624
        %v3626 = vmul.f32 %v3569, 1.442695
        %v3627 = vpow.pop %v3626
        %v3628 = vmul.f32 %v3570, 1.442695
        %v3629 = vpow.pop %v3628
        %v3630 = vmul.f32 %v3571, 1.442695
        %v3631 = vpow.pop %v3630
        %v3632 = vmul.f32 %v3572, 1.442695
        %v3633 = vpow.pop %v3632
        %v3634 = vmul.f32 %v3573, 1.442695
        %v3635 = vpow.pop %v3634
        %v3636 = vmul.f32 %v3574, 1.442695
        %v3637 = vpow.pop %v3636
        %v3638 = vmul.f32 %v3575, 1.442695
        %v3639 = vpow.pop %v3638
        %v3640 = vadd.f32 %v3577, 1.0
        %v3641 = vadd.f32 %v3579, 1.0
        %v3642 = vadd.f32 %v3581, 1.0
        %v3643 = vadd.f32 %v3583, 1.0
        %v3644 = vadd.f32 %v3585, 1.0
        %v3645 = vadd.f32 %v3587, 1.0
        %v3646 = vadd.f32 %v3589, 1.0
        %v3647 = vadd.f32 %v3591, 1.0
        %v3648 = vadd.f32 %v3593, 1.0
        %v3649 = vadd.f32 %v3595, 1.0
        %v3650 = vadd.f32 %v3597, 1.0
        %v3651 = vadd.f32 %v3599, 1.0
        %v3652 = vadd.f32 %v3601, 1.0
        %v3653 = vadd.f32 %v3603, 1.0
        %v3654 = vadd.f32 %v3605, 1.0
        %v3655 = vadd.f32 %v3607, 1.0
        %v3656 = vadd.f32 %v3609, 1.0
        %v3657 = vadd.f32 %v3611, 1.0
        %v3658 = vadd.f32 %v3613, 1.0
        %v3659 = vadd.f32 %v3615, 1.0
        %v3660 = vadd.f32 %v3617, 1.0
        %v3661 = vadd.f32 %v3619, 1.0
        %v3662 = vadd.f32 %v3621, 1.0
        %v3663 = vadd.f32 %v3623, 1.0
        %v3664 = vadd.f32 %v3625, 1.0
        %v3665 = vadd.f32 %v3627, 1.0
        %v3666 = vadd.f32 %v3629, 1.0
        %v3667 = vadd.f32 %v3631, 1.0
        %v3668 = vadd.f32 %v3633, 1.0
        %v3669 = vadd.f32 %v3635, 1.0
        %v3670 = vadd.f32 %v3637, 1.0
        %v3671 = vadd.f32 %v3639, 1.0
        %v3672 = vrcp.pop %v3640
        %v3673 = vmul.f32 %v3640, %v3672
        %v3674 = vsub.f32 1.0, %v3673
        %v3675 = vmul.f32 %v3672, %v3674
        %v3676 = vadd.f32 %v3672, %v3675
        %vm3677 = vweird.f32 %v3640
        %vm3678 = vweird.f32 %v3672
        %vm3679 = vmor %vm3677, %vm3678
        %v3680 = vsel %vm3679, %v3672, %v3676
        %v3681 = vand.u32 2147483647, %v3640
        %vm3682 = vcmp.eq.f32.partialorder %v3681, 8.507059e+37
        %v3683 = vand.u32 %v3640, 2147483648
        %v3684 = vor.u32 1.1754944e-38, %v3683
        %v3685 = vsel %vm3682, %v3684, %v3680
        %v3686 = vmul.f32 1.0, %v3685
        %v3687 = vrcp.pop %v3641
        %v3688 = vmul.f32 %v3641, %v3687
        %v3689 = vsub.f32 1.0, %v3688
        %v3690 = vmul.f32 %v3687, %v3689
        %v3691 = vadd.f32 %v3687, %v3690
        %vm3692 = vweird.f32 %v3641
        %vm3693 = vweird.f32 %v3687
        %vm3694 = vmor %vm3692, %vm3693
        %v3695 = vsel %vm3694, %v3687, %v3691
        %v3696 = vand.u32 2147483647, %v3641
        %vm3697 = vcmp.eq.f32.partialorder %v3696, 8.507059e+37
        %v3698 = vand.u32 %v3641, 2147483648
        %v3699 = vor.u32 1.1754944e-38, %v3698
        %v3700 = vsel %vm3697, %v3699, %v3695
        %v3701 = vmul.f32 1.0, %v3700
        %v3702 = vrcp.pop %v3642
        %v3703 = vmul.f32 %v3642, %v3702
        %v3704 = vsub.f32 1.0, %v3703
        %v3705 = vmul.f32 %v3702, %v3704
        %v3706 = vadd.f32 %v3702, %v3705
        %vm3707 = vweird.f32 %v3642
        %vm3708 = vweird.f32 %v3702
        %vm3709 = vmor %vm3707, %vm3708
        %v3710 = vsel %vm3709, %v3702, %v3706
        %v3711 = vand.u32 2147483647, %v3642
        %vm3712 = vcmp.eq.f32.partialorder %v3711, 8.507059e+37
        %v3713 = vand.u32 %v3642, 2147483648
        %v3714 = vor.u32 1.1754944e-38, %v3713
        %v3715 = vsel %vm3712, %v3714, %v3710
        %v3716 = vmul.f32 1.0, %v3715
        %v3717 = vrcp.pop %v3643
        %v3718 = vmul.f32 %v3643, %v3717
        %v3719 = vsub.f32 1.0, %v3718
        %v3720 = vmul.f32 %v3717, %v3719
        %v3721 = vadd.f32 %v3717, %v3720
        %vm3722 = vweird.f32 %v3643
        %vm3723 = vweird.f32 %v3717
        %vm3724 = vmor %vm3722, %vm3723
        %v3725 = vsel %vm3724, %v3717, %v3721
        %v3726 = vand.u32 2147483647, %v3643
        %vm3727 = vcmp.eq.f32.partialorder %v3726, 8.507059e+37
        %v3728 = vand.u32 %v3643, 2147483648
        %v3729 = vor.u32 1.1754944e-38, %v3728
        %v3730 = vsel %vm3727, %v3729, %v3725
        %v3731 = vmul.f32 1.0, %v3730
        %v3732 = vrcp.pop %v3644
        %v3733 = vmul.f32 %v3644, %v3732
        %v3734 = vsub.f32 1.0, %v3733
        %v3735 = vmul.f32 %v3732, %v3734
        %v3736 = vadd.f32 %v3732, %v3735
        %vm3737 = vweird.f32 %v3644
        %vm3738 = vweird.f32 %v3732
        %vm3739 = vmor %vm3737, %vm3738
        %v3740 = vsel %vm3739, %v3732, %v3736
        %v3741 = vand.u32 2147483647, %v3644
        %vm3742 = vcmp.eq.f32.partialorder %v3741, 8.507059e+37
        %v3743 = vand.u32 %v3644, 2147483648
        %v3744 = vor.u32 1.1754944e-38, %v3743
        %v3745 = vsel %vm3742, %v3744, %v3740
        %v3746 = vmul.f32 1.0, %v3745
        %v3747 = vrcp.pop %v3645
        %v3748 = vmul.f32 %v3645, %v3747
        %v3749 = vsub.f32 1.0, %v3748
        %v3750 = vmul.f32 %v3747, %v3749
        %v3751 = vadd.f32 %v3747, %v3750
        %vm3752 = vweird.f32 %v3645
        %vm3753 = vweird.f32 %v3747
        %vm3754 = vmor %vm3752, %vm3753
        %v3755 = vsel %vm3754, %v3747, %v3751
        %v3756 = vand.u32 2147483647, %v3645
        %vm3757 = vcmp.eq.f32.partialorder %v3756, 8.507059e+37
        %v3758 = vand.u32 %v3645, 2147483648
        %v3759 = vor.u32 1.1754944e-38, %v3758
        %v3760 = vsel %vm3757, %v3759, %v3755
        %v3761 = vmul.f32 1.0, %v3760
        %v3762 = vrcp.pop %v3646
        %v3763 = vmul.f32 %v3646, %v3762
        %v3764 = vsub.f32 1.0, %v3763
        %v3765 = vmul.f32 %v3762, %v3764
        %v3766 = vadd.f32 %v3762, %v3765
        %vm3767 = vweird.f32 %v3646
        %vm3768 = vweird.f32 %v3762
        %vm3769 = vmor %vm3767, %vm3768
        %v3770 = vsel %vm3769, %v3762, %v3766
        %v3771 = vand.u32 2147483647, %v3646
        %vm3772 = vcmp.eq.f32.partialorder %v3771, 8.507059e+37
        %v3773 = vand.u32 %v3646, 2147483648
        %v3774 = vor.u32 1.1754944e-38, %v3773
        %v3775 = vsel %vm3772, %v3774, %v3770
        %v3776 = vmul.f32 1.0, %v3775
        %v3777 = vrcp.pop %v3647
        %v3778 = vmul.f32 %v3647, %v3777
        %v3779 = vsub.f32 1.0, %v3778
        %v3780 = vmul.f32 %v3777, %v3779
        %v3781 = vadd.f32 %v3777, %v3780
        %vm3782 = vweird.f32 %v3647
        %vm3783 = vweird.f32 %v3777
        %vm3784 = vmor %vm3782, %vm3783
        %v3785 = vsel %vm3784, %v3777, %v3781
        %v3786 = vand.u32 2147483647, %v3647
        %vm3787 = vcmp.eq.f32.partialorder %v3786, 8.507059e+37
        %v3788 = vand.u32 %v3647, 2147483648
        %v3789 = vor.u32 1.1754944e-38, %v3788
        %v3790 = vsel %vm3787, %v3789, %v3785
        %v3791 = vmul.f32 1.0, %v3790
        %v3792 = vrcp.pop %v3648
        %v3793 = vmul.f32 %v3648, %v3792
        %v3794 = vsub.f32 1.0, %v3793
        %v3795 = vmul.f32 %v3792, %v3794
        %v3796 = vadd.f32 %v3792, %v3795
        %vm3797 = vweird.f32 %v3648
        %vm3798 = vweird.f32 %v3792
        %vm3799 = vmor %vm3797, %vm3798
        %v3800 = vsel %vm3799, %v3792, %v3796
        %v3801 = vand.u32 2147483647, %v3648
        %vm3802 = vcmp.eq.f32.partialorder %v3801, 8.507059e+37
        %v3803 = vand.u32 %v3648, 2147483648
        %v3804 = vor.u32 1.1754944e-38, %v3803
        %v3805 = vsel %vm3802, %v3804, %v3800
        %v3806 = vmul.f32 1.0, %v3805
        %v3807 = vrcp.pop %v3649
        %v3808 = vmul.f32 %v3649, %v3807
        %v3809 = vsub.f32 1.0, %v3808
        %v3810 = vmul.f32 %v3807, %v3809
        %v3811 = vadd.f32 %v3807, %v3810
        %vm3812 = vweird.f32 %v3649
        %vm3813 = vweird.f32 %v3807
        %vm3814 = vmor %vm3812, %vm3813
        %v3815 = vsel %vm3814, %v3807, %v3811
        %v3816 = vand.u32 2147483647, %v3649
        %vm3817 = vcmp.eq.f32.partialorder %v3816, 8.507059e+37
        %v3818 = vand.u32 %v3649, 2147483648
        %v3819 = vor.u32 1.1754944e-38, %v3818
        %v3820 = vsel %vm3817, %v3819, %v3815
        %v3821 = vmul.f32 1.0, %v3820
        %v3822 = vrcp.pop %v3650
        %v3823 = vmul.f32 %v3650, %v3822
        %v3824 = vsub.f32 1.0, %v3823
        %v3825 = vmul.f32 %v3822, %v3824
        %v3826 = vadd.f32 %v3822, %v3825
        %vm3827 = vweird.f32 %v3650
        %vm3828 = vweird.f32 %v3822
        %vm3829 = vmor %vm3827, %vm3828
        %v3830 = vsel %vm3829, %v3822, %v3826
        %v3831 = vand.u32 2147483647, %v3650
        %vm3832 = vcmp.eq.f32.partialorder %v3831, 8.507059e+37
        %v3833 = vand.u32 %v3650, 2147483648
        %v3834 = vor.u32 1.1754944e-38, %v3833
        %v3835 = vsel %vm3832, %v3834, %v3830
        %v3836 = vmul.f32 1.0, %v3835
        %v3837 = vrcp.pop %v3651
        %v3838 = vmul.f32 %v3651, %v3837
        %v3839 = vsub.f32 1.0, %v3838
        %v3840 = vmul.f32 %v3837, %v3839
        %v3841 = vadd.f32 %v3837, %v3840
        %vm3842 = vweird.f32 %v3651
        %vm3843 = vweird.f32 %v3837
        %vm3844 = vmor %vm3842, %vm3843
        %v3845 = vsel %vm3844, %v3837, %v3841
        %v3846 = vand.u32 2147483647, %v3651
        %vm3847 = vcmp.eq.f32.partialorder %v3846, 8.507059e+37
        %v3848 = vand.u32 %v3651, 2147483648
        %v3849 = vor.u32 1.1754944e-38, %v3848
        %v3850 = vsel %vm3847, %v3849, %v3845
        %v3851 = vmul.f32 1.0, %v3850
        %v3852 = vrcp.pop %v3652
        %v3853 = vmul.f32 %v3652, %v3852
        %v3854 = vsub.f32 1.0, %v3853
        %v3855 = vmul.f32 %v3852, %v3854
        %v3856 = vadd.f32 %v3852, %v3855
        %vm3857 = vweird.f32 %v3652
        %vm3858 = vweird.f32 %v3852
        %vm3859 = vmor %vm3857, %vm3858
        %v3860 = vsel %vm3859, %v3852, %v3856
        %v3861 = vand.u32 2147483647, %v3652
        %vm3862 = vcmp.eq.f32.partialorder %v3861, 8.507059e+37
        %v3863 = vand.u32 %v3652, 2147483648
        %v3864 = vor.u32 1.1754944e-38, %v3863
        %v3865 = vsel %vm3862, %v3864, %v3860
        %v3866 = vmul.f32 1.0, %v3865
        %v3867 = vrcp.pop %v3653
        %v3868 = vmul.f32 %v3653, %v3867
        %v3869 = vsub.f32 1.0, %v3868
        %v3870 = vmul.f32 %v3867, %v3869
        %v3871 = vadd.f32 %v3867, %v3870
        %vm3872 = vweird.f32 %v3653
        %vm3873 = vweird.f32 %v3867
        %vm3874 = vmor %vm3872, %vm3873
        %v3875 = vsel %vm3874, %v3867, %v3871
        %v3876 = vand.u32 2147483647, %v3653
        %vm3877 = vcmp.eq.f32.partialorder %v3876, 8.507059e+37
        %v3878 = vand.u32 %v3653, 2147483648
        %v3879 = vor.u32 1.1754944e-38, %v3878
        %v3880 = vsel %vm3877, %v3879, %v3875
        %v3881 = vmul.f32 1.0, %v3880
        %v3882 = vrcp.pop %v3654
        %v3883 = vmul.f32 %v3654, %v3882
        %v3884 = vsub.f32 1.0, %v3883
        %v3885 = vmul.f32 %v3882, %v3884
        %v3886 = vadd.f32 %v3882, %v3885
        %vm3887 = vweird.f32 %v3654
        %vm3888 = vweird.f32 %v3882
        %vm3889 = vmor %vm3887, %vm3888
        %v3890 = vsel %vm3889, %v3882, %v3886
        %v3891 = vand.u32 2147483647, %v3654
        %vm3892 = vcmp.eq.f32.partialorder %v3891, 8.507059e+37
        %v3893 = vand.u32 %v3654, 2147483648
        %v3894 = vor.u32 1.1754944e-38, %v3893
        %v3895 = vsel %vm3892, %v3894, %v3890
        %v3896 = vmul.f32 1.0, %v3895
        %v3897 = vrcp.pop %v3655
        %v3898 = vmul.f32 %v3655, %v3897
        %v3899 = vsub.f32 1.0, %v3898
        %v3900 = vmul.f32 %v3897, %v3899
        %v3901 = vadd.f32 %v3897, %v3900
        %vm3902 = vweird.f32 %v3655
        %vm3903 = vweird.f32 %v3897
        %vm3904 = vmor %vm3902, %vm3903
        %v3905 = vsel %vm3904, %v3897, %v3901
        %v3906 = vand.u32 2147483647, %v3655
        %vm3907 = vcmp.eq.f32.partialorder %v3906, 8.507059e+37
        %v3908 = vand.u32 %v3655, 2147483648
        %v3909 = vor.u32 1.1754944e-38, %v3908
        %v3910 = vsel %vm3907, %v3909, %v3905
        %v3911 = vmul.f32 1.0, %v3910
        %v3912 = vrcp.pop %v3656
        %v3913 = vmul.f32 %v3656, %v3912
        %v3914 = vsub.f32 1.0, %v3913
        %v3915 = vmul.f32 %v3912, %v3914
        %v3916 = vadd.f32 %v3912, %v3915
        %vm3917 = vweird.f32 %v3656
        %vm3918 = vweird.f32 %v3912
        %vm3919 = vmor %vm3917, %vm3918
        %v3920 = vsel %vm3919, %v3912, %v3916
        %v3921 = vand.u32 2147483647, %v3656
        %vm3922 = vcmp.eq.f32.partialorder %v3921, 8.507059e+37
        %v3923 = vand.u32 %v3656, 2147483648
        %v3924 = vor.u32 1.1754944e-38, %v3923
        %v3925 = vsel %vm3922, %v3924, %v3920
        %v3926 = vmul.f32 1.0, %v3925
        %v3927 = vrcp.pop %v3657
        %v3928 = vmul.f32 %v3657, %v3927
        %v3929 = vsub.f32 1.0, %v3928
        %v3930 = vmul.f32 %v3927, %v3929
        %v3931 = vadd.f32 %v3927, %v3930
        %vm3932 = vweird.f32 %v3657
        %vm3933 = vweird.f32 %v3927
        %vm3934 = vmor %vm3932, %vm3933
        %v3935 = vsel %vm3934, %v3927, %v3931
        %v3936 = vand.u32 2147483647, %v3657
        %vm3937 = vcmp.eq.f32.partialorder %v3936, 8.507059e+37
        %v3938 = vand.u32 %v3657, 2147483648
        %v3939 = vor.u32 1.1754944e-38, %v3938
        %v3940 = vsel %vm3937, %v3939, %v3935
        %v3941 = vmul.f32 1.0, %v3940
        %v3942 = vrcp.pop %v3658
        %v3943 = vmul.f32 %v3658, %v3942
        %v3944 = vsub.f32 1.0, %v3943
        %v3945 = vmul.f32 %v3942, %v3944
        %v3946 = vadd.f32 %v3942, %v3945
        %vm3947 = vweird.f32 %v3658
        %vm3948 = vweird.f32 %v3942
        %vm3949 = vmor %vm3947, %vm3948
        %v3950 = vsel %vm3949, %v3942, %v3946
        %v3951 = vand.u32 2147483647, %v3658
        %vm3952 = vcmp.eq.f32.partialorder %v3951, 8.507059e+37
        %v3953 = vand.u32 %v3658, 2147483648
        %v3954 = vor.u32 1.1754944e-38, %v3953
        %v3955 = vsel %vm3952, %v3954, %v3950
        %v3956 = vmul.f32 1.0, %v3955
        %v3957 = vrcp.pop %v3659
        %v3958 = vmul.f32 %v3659, %v3957
        %v3959 = vsub.f32 1.0, %v3958
        %v3960 = vmul.f32 %v3957, %v3959
        %v3961 = vadd.f32 %v3957, %v3960
        %vm3962 = vweird.f32 %v3659
        %vm3963 = vweird.f32 %v3957
        %vm3964 = vmor %vm3962, %vm3963
        %v3965 = vsel %vm3964, %v3957, %v3961
        %v3966 = vand.u32 2147483647, %v3659
        %vm3967 = vcmp.eq.f32.partialorder %v3966, 8.507059e+37
        %v3968 = vand.u32 %v3659, 2147483648
        %v3969 = vor.u32 1.1754944e-38, %v3968
        %v3970 = vsel %vm3967, %v3969, %v3965
        %v3971 = vmul.f32 1.0, %v3970
        %v3972 = vrcp.pop %v3660
        %v3973 = vmul.f32 %v3660, %v3972
        %v3974 = vsub.f32 1.0, %v3973
        %v3975 = vmul.f32 %v3972, %v3974
        %v3976 = vadd.f32 %v3972, %v3975
        %vm3977 = vweird.f32 %v3660
        %vm3978 = vweird.f32 %v3972
        %vm3979 = vmor %vm3977, %vm3978
        %v3980 = vsel %vm3979, %v3972, %v3976
        %v3981 = vand.u32 2147483647, %v3660
        %vm3982 = vcmp.eq.f32.partialorder %v3981, 8.507059e+37
        %v3983 = vand.u32 %v3660, 2147483648
        %v3984 = vor.u32 1.1754944e-38, %v3983
        %v3985 = vsel %vm3982, %v3984, %v3980
        %v3986 = vmul.f32 1.0, %v3985
        %v3987 = vrcp.pop %v3661
        %v3988 = vmul.f32 %v3661, %v3987
        %v3989 = vsub.f32 1.0, %v3988
        %v3990 = vmul.f32 %v3987, %v3989
        %v3991 = vadd.f32 %v3987, %v3990
        %vm3992 = vweird.f32 %v3661
        %vm3993 = vweird.f32 %v3987
        %vm3994 = vmor %vm3992, %vm3993
        %v3995 = vsel %vm3994, %v3987, %v3991
        %v3996 = vand.u32 2147483647, %v3661
        %vm3997 = vcmp.eq.f32.partialorder %v3996, 8.507059e+37
        %v3998 = vand.u32 %v3661, 2147483648
        %v3999 = vor.u32 1.1754944e-38, %v3998
        %v4000 = vsel %vm3997, %v3999, %v3995
        %v4001 = vmul.f32 1.0, %v4000
        %v4002 = vrcp.pop %v3662
        %v4003 = vmul.f32 %v3662, %v4002
        %v4004 = vsub.f32 1.0, %v4003
        %v4005 = vmul.f32 %v4002, %v4004
        %v4006 = vadd.f32 %v4002, %v4005
        %vm4007 = vweird.f32 %v3662
        %vm4008 = vweird.f32 %v4002
        %vm4009 = vmor %vm4007, %vm4008
        %v4010 = vsel %vm4009, %v4002, %v4006
        %v4011 = vand.u32 2147483647, %v3662
        %vm4012 = vcmp.eq.f32.partialorder %v4011, 8.507059e+37
        %v4013 = vand.u32 %v3662, 2147483648
        %v4014 = vor.u32 1.1754944e-38, %v4013
        %v4015 = vsel %vm4012, %v4014, %v4010
        %v4016 = vmul.f32 1.0, %v4015
        %v4017 = vrcp.pop %v3663
        %v4018 = vmul.f32 %v3663, %v4017
        %v4019 = vsub.f32 1.0, %v4018
        %v4020 = vmul.f32 %v4017, %v4019
        %v4021 = vadd.f32 %v4017, %v4020
        %vm4022 = vweird.f32 %v3663
        %vm4023 = vweird.f32 %v4017
        %vm4024 = vmor %vm4022, %vm4023
        %v4025 = vsel %vm4024, %v4017, %v4021
        %v4026 = vand.u32 2147483647, %v3663
        %vm4027 = vcmp.eq.f32.partialorder %v4026, 8.507059e+37
        %v4028 = vand.u32 %v3663, 2147483648
        %v4029 = vor.u32 1.1754944e-38, %v4028
        %v4030 = vsel %vm4027, %v4029, %v4025
        %v4031 = vmul.f32 1.0, %v4030
        %v4032 = vrcp.pop %v3664
        %v4033 = vmul.f32 %v3664, %v4032
        %v4034 = vsub.f32 1.0, %v4033
        %v4035 = vmul.f32 %v4032, %v4034
        %v4036 = vadd.f32 %v4032, %v4035
        %vm4037 = vweird.f32 %v3664
        %vm4038 = vweird.f32 %v4032
        %vm4039 = vmor %vm4037, %vm4038
        %v4040 = vsel %vm4039, %v4032, %v4036
        %v4041 = vand.u32 2147483647, %v3664
        %vm4042 = vcmp.eq.f32.partialorder %v4041, 8.507059e+37
        %v4043 = vand.u32 %v3664, 2147483648
        %v4044 = vor.u32 1.1754944e-38, %v4043
        %v4045 = vsel %vm4042, %v4044, %v4040
        %v4046 = vmul.f32 1.0, %v4045
        %v4047 = vrcp.pop %v3665
        %v4048 = vmul.f32 %v3665, %v4047
        %v4049 = vsub.f32 1.0, %v4048
        %v4050 = vmul.f32 %v4047, %v4049
        %v4051 = vadd.f32 %v4047, %v4050
        %vm4052 = vweird.f32 %v3665
        %vm4053 = vweird.f32 %v4047
        %vm4054 = vmor %vm4052, %vm4053
        %v4055 = vsel %vm4054, %v4047, %v4051
        %v4056 = vand.u32 2147483647, %v3665
        %vm4057 = vcmp.eq.f32.partialorder %v4056, 8.507059e+37
        %v4058 = vand.u32 %v3665, 2147483648
        %v4059 = vor.u32 1.1754944e-38, %v4058
        %v4060 = vsel %vm4057, %v4059, %v4055
        %v4061 = vmul.f32 1.0, %v4060
        %v4062 = vrcp.pop %v3666
        %v4063 = vmul.f32 %v3666, %v4062
        %v4064 = vsub.f32 1.0, %v4063
        %v4065 = vmul.f32 %v4062, %v4064
        %v4066 = vadd.f32 %v4062, %v4065
        %vm4067 = vweird.f32 %v3666
        %vm4068 = vweird.f32 %v4062
        %vm4069 = vmor %vm4067, %vm4068
        %v4070 = vsel %vm4069, %v4062, %v4066
        %v4071 = vand.u32 2147483647, %v3666
        %vm4072 = vcmp.eq.f32.partialorder %v4071, 8.507059e+37
        %v4073 = vand.u32 %v3666, 2147483648
        %v4074 = vor.u32 1.1754944e-38, %v4073
        %v4075 = vsel %vm4072, %v4074, %v4070
        %v4076 = vmul.f32 1.0, %v4075
        %v4077 = vrcp.pop %v3667
        %v4078 = vmul.f32 %v3667, %v4077
        %v4079 = vsub.f32 1.0, %v4078
        %v4080 = vmul.f32 %v4077, %v4079
        %v4081 = vadd.f32 %v4077, %v4080
        %vm4082 = vweird.f32 %v3667
        %vm4083 = vweird.f32 %v4077
        %vm4084 = vmor %vm4082, %vm4083
        %v4085 = vsel %vm4084, %v4077, %v4081
        %v4086 = vand.u32 2147483647, %v3667
        %vm4087 = vcmp.eq.f32.partialorder %v4086, 8.507059e+37
        %v4088 = vand.u32 %v3667, 2147483648
        %v4089 = vor.u32 1.1754944e-38, %v4088
        %v4090 = vsel %vm4087, %v4089, %v4085
        %v4091 = vmul.f32 1.0, %v4090
        %v4092 = vrcp.pop %v3668
        %v4093 = vmul.f32 %v3668, %v4092
        %v4094 = vsub.f32 1.0, %v4093
        %v4095 = vmul.f32 %v4092, %v4094
        %v4096 = vadd.f32 %v4092, %v4095
        %vm4097 = vweird.f32 %v3668
        %vm4098 = vweird.f32 %v4092
        %vm4099 = vmor %vm4097, %vm4098
        %v4100 = vsel %vm4099, %v4092, %v4096
        %v4101 = vand.u32 2147483647, %v3668
        %vm4102 = vcmp.eq.f32.partialorder %v4101, 8.507059e+37
        %v4103 = vand.u32 %v3668, 2147483648
        %v4104 = vor.u32 1.1754944e-38, %v4103
        %v4105 = vsel %vm4102, %v4104, %v4100
        %v4106 = vmul.f32 1.0, %v4105
        %v4107 = vrcp.pop %v3669
        %v4108 = vmul.f32 %v3669, %v4107
        %v4109 = vsub.f32 1.0, %v4108
        %v4110 = vmul.f32 %v4107, %v4109
        %v4111 = vadd.f32 %v4107, %v4110
        %vm4112 = vweird.f32 %v3669
        %vm4113 = vweird.f32 %v4107
        %vm4114 = vmor %vm4112, %vm4113
        %v4115 = vsel %vm4114, %v4107, %v4111
        %v4116 = vand.u32 2147483647, %v3669
        %vm4117 = vcmp.eq.f32.partialorder %v4116, 8.507059e+37
        %v4118 = vand.u32 %v3669, 2147483648
        %v4119 = vor.u32 1.1754944e-38, %v4118
        %v4120 = vsel %vm4117, %v4119, %v4115
        %v4121 = vmul.f32 1.0, %v4120
        %v4122 = vrcp.pop %v3670
        %v4123 = vmul.f32 %v3670, %v4122
        %v4124 = vsub.f32 1.0, %v4123
        %v4125 = vmul.f32 %v4122, %v4124
        %v4126 = vadd.f32 %v4122, %v4125
        %vm4127 = vweird.f32 %v3670
        %vm4128 = vweird.f32 %v4122
        %vm4129 = vmor %vm4127, %vm4128
        %v4130 = vsel %vm4129, %v4122, %v4126
        %v4131 = vand.u32 2147483647, %v3670
        %vm4132 = vcmp.eq.f32.partialorder %v4131, 8.507059e+37
        %v4133 = vand.u32 %v3670, 2147483648
        %v4134 = vor.u32 1.1754944e-38, %v4133
        %v4135 = vsel %vm4132, %v4134, %v4130
        %v4136 = vmul.f32 1.0, %v4135
        %v4137 = vrcp.pop %v3671
        %v4138 = vmul.f32 %v3671, %v4137
        %v4139 = vsub.f32 1.0, %v4138
        %v4140 = vmul.f32 %v4137, %v4139
        %v4141 = vadd.f32 %v4137, %v4140
        %vm4142 = vweird.f32 %v3671
        %vm4143 = vweird.f32 %v4137
        %vm4144 = vmor %vm4142, %vm4143
        %v4145 = vsel %vm4144, %v4137, %v4141
        %v4146 = vand.u32 2147483647, %v3671
        %vm4147 = vcmp.eq.f32.partialorder %v4146, 8.507059e+37
        %v4148 = vand.u32 %v3671, 2147483648
        %v4149 = vor.u32 1.1754944e-38, %v4148
        %v4150 = vsel %vm4147, %v4149, %v4145
        %v4151 = vmul.f32 1.0, %v4150
        %v4152 = vmul.f32 %v3512, %v3686
        %v4153 = vmul.f32 %v3513, %v3701
        %v4154 = vmul.f32 %v3514, %v3716
        %v4155 = vmul.f32 %v3515, %v3731
        %v4156 = vmul.f32 %v3516, %v3746
        %v4157 = vmul.f32 %v3517, %v3761
        %v4158 = vmul.f32 %v3518, %v3776
        %v4159 = vmul.f32 %v3519, %v3791
        %v4160 = vmul.f32 %v3520, %v3806
        %v4161 = vmul.f32 %v3521, %v3821
        %v4162 = vmul.f32 %v3522, %v3836
        %v4163 = vmul.f32 %v3523, %v3851
        %v4164 = vmul.f32 %v3524, %v3866
        %v4165 = vmul.f32 %v3525, %v3881
        %v4166 = vmul.f32 %v3526, %v3896
        %v4167 = vmul.f32 %v3527, %v3911
        %v4168 = vmul.f32 %v3528, %v3926
        %v4169 = vmul.f32 %v3529, %v3941
        %v4170 = vmul.f32 %v3530, %v3956
        %v4171 = vmul.f32 %v3531, %v3971
        %v4172 = vmul.f32 %v3532, %v3986
        %v4173 = vmul.f32 %v3533, %v4001
        %v4174 = vmul.f32 %v3534, %v4016
        %v4175 = vmul.f32 %v3535, %v4031
        %v4176 = vmul.f32 %v3536, %v4046
        %v4177 = vmul.f32 %v3537, %v4061
        %v4178 = vmul.f32 %v3538, %v4076
        %v4179 = vmul.f32 %v3539, %v4091
        %v4180 = vmul.f32 %v3540, %v4106
        %v4181 = vmul.f32 %v3541, %v4121
        %v4182 = vmul.f32 %v3542, %v4136
        %v4183 = vmul.f32 %v3543, %v4151
        %4184 = vst [vmem:[%s163] sm:$0xff] %v4152
        %4185 = vst [vmem:[%s163 + $0x8] sm:$0xff] %v4153
        %4186 = vst [vmem:[%s163 + $0x10] sm:$0xff] %v4154
        %4187 = vst [vmem:[%s163 + $0x18] sm:$0xff] %v4155
        %4188 = vst [vmem:[%s163 + $0x20] sm:$0xff] %v4156
        %4189 = vst [vmem:[%s163 + $0x28] sm:$0xff] %v4157
        %4190 = vst [vmem:[%s163 + $0x30] sm:$0xff] %v4158
        %4191 = vst [vmem:[%s163 + $0x38] sm:$0xff] %v4159
        %4192 = vst [vmem:[%s163 + $0x40] sm:$0xff] %v4160
        %4193 = vst [vmem:[%s163 + $0x48] sm:$0xff] %v4161
        %4194 = vst [vmem:[%s163 + $0x50] sm:$0xff] %v4162
        %4195 = vst [vmem:[%s163 + $0x58] sm:$0xff] %v4163
        %4196 = vst [vmem:[%s163 + $0x60] sm:$0xff] %v4164
        %4197 = vst [vmem:[%s163 + $0x68] sm:$0xff] %v4165
        %4198 = vst [vmem:[%s163 + $0x70] sm:$0xff] %v4166
        %4199 = vst [vmem:[%s163 + $0x78] sm:$0xff] %v4167
        %4200 = vst [vmem:[%s163 + $0x80] sm:$0xff] %v4168
        %4201 = vst [vmem:[%s163 + $0x88] sm:$0xff] %v4169
        %4202 = vst [vmem:[%s163 + $0x90] sm:$0xff] %v4170
        %4203 = vst [vmem:[%s163 + $0x98] sm:$0xff] %v4171
        %4204 = vst [vmem:[%s163 + $0xa0] sm:$0xff] %v4172
        %4205 = vst [vmem:[%s163 + $0xa8] sm:$0xff] %v4173
        %4206 = vst [vmem:[%s163 + $0xb0] sm:$0xff] %v4174
        %4207 = vst [vmem:[%s163 + $0xb8] sm:$0xff] %v4175
        %4208 = vst [vmem:[%s163 + $0xc0] sm:$0xff] %v4176
        %4209 = vst [vmem:[%s163 + $0xc8] sm:$0xff] %v4177
        %4210 = vst [vmem:[%s163 + $0xd0] sm:$0xff] %v4178
        %4211 = vst [vmem:[%s163 + $0xd8] sm:$0xff] %v4179
        %4212 = vst [vmem:[%s163 + $0xe0] sm:$0xff] %v4180
        %4213 = vst [vmem:[%s163 + $0xe8] sm:$0xff] %v4181
        %4214 = vst [vmem:[%s163 + $0xf0] sm:$0xff] %v4182
        %4215 = vst [vmem:[%s163 + $0xf8] sm:$0xff] %v4183
        %s4216 = sand.u32 %s93, 1
        %s4217 = scalar_lea.sflag [#allocation3], %s4216
        %s4218 = sand.u32 %s93, 1
        %s4219 = smul.addr %s4218, 256
        %s4220 = scalar_lea.vmem [#allocation2], %s4219
        // Predicated region
        $region33: #{tpu_custom_call.1} parent=31 // pred_check
          %p4221 = pneg %p103
        $region34: #{tpu_custom_call.1} parent=31 // pred_check_branch
          %4223 = sbr.rel (%p4221) target = $region36
        $region35: #{tpu_custom_call.1} parent=31 // pred_region
          %s4224 = smul.u32 32, %s17
          %4226 = vsyncadd %s4217, 0
          %s4227 = smul.addr %s4224, 8
          %s4228 = scalar_lea.hbm %s3, %s4227
          %s4229 = sshll.u32 %s4220, 4
          %s4230 = int_to_ptr.vmem [resolvable:$true] %s4229
          %s4231 = sshll.u32 %s4228, 4
          %s4232 = int_to_ptr.hbm [resolvable:$true] %s4231
          %4237 = dma.vmem_to_hbm [thread:$0]  %s4230, 4096, %s4232, %s4217, 128, 128, 8
        $region36: #{tpu_custom_call.1} parent=31 // pred_fallthru
          _
      $region32: #{tpu_custom_call.1} parent=5 // pred_fallthru
        _
      %p4238 = scmp.le.s32.totalorder 2, %s12
      // Predicated region
      $region37: #{tpu_custom_call.1} parent=5 // pred_check
        %p4239 = pneg %p4238
      $region38: #{tpu_custom_call.1} parent=5 // pred_check_branch
        %4241 = sbr.rel (%p4239) target = $region40
      $region39: #{tpu_custom_call.1} parent=5 // pred_region
        %s4242 = ssub.s32 %s12, 2
        // Predicated region
        $region41: #{tpu_custom_call.1} parent=39 // pred_check
          %p4243 = pneg %p109
        $region42: #{tpu_custom_call.1} parent=39 // pred_check_branch
          %4245 = sbr.rel (%p4243) target = $region44
        $region43: #{tpu_custom_call.1} parent=39 // pred_region
          %s4246 = sand.u32 %s94, 1
          %s4247 = scalar_lea.sflag [#allocation3], %s4246
          %s4248 = sand.u32 %s94, 1
          %s4249 = smul.addr %s4248, 256
          %s4250 = scalar_lea.vmem [#allocation2], %s4249
          %4252 = dma.done %s4247, 4096
        $region44: #{tpu_custom_call.1} parent=39 // pred_fallthru
          _
      $region40: #{tpu_custom_call.1} parent=5 // pred_fallthru
        _
    $region6: #{tpu_custom_call.1} parent=1 // loop_footer
      %s16 = sadd.s32 1, %s12
    $region7: #{tpu_custom_call.1} parent=1 // loop_footer_branch
      %11 = sbr.rel target = $region3
    $region8: #{tpu_custom_call.1} parent=1 // loop_exit
      _
    %4253 = vsyncpa [#allocation3], 1
    %s4254 = scalar_lea.sflag [#allocation3], 1
    %4255 = vsyncpa %s4254, 1

</llo_original>
